<compile_context>
chip_gen: v5e
topology: v5e:2x2
jax: 0.10.0
libtpu: 0.0.40
codegen_flags: <defaults>
</compile_context>

<pallas_src>
import jax
import jax.numpy as jnp
from jax.experimental import pallas as pl
from jax.experimental.pallas import tpu as pltpu


def _round_up(x, m):
    return (x + m - 1) // m * m


def conv_encoder_forward(x_nchw, w_oihw, bias, gamma, beta, eps=1e-5,
                         mxu_dtype=jnp.bfloat16, conv_out_dtype=jnp.bfloat16):
    N, Cin, H, W = x_nchw.shape
    Cout = w_oihw.shape[0]
    assert H % 2 == 0 and W % 2 == 0, "MaxPool2d(2,2) needs even H, W"
    Ho, Wo = H // 2, W // 2
    Cinp = _round_up(Cin, 8)      # contraction-dim padding (sublane friendly)
    Cpad = _round_up(Cout, 128)   # lane-dense output channels
    Hp = H + 2                    # spatially padded height
    Wp = Wo + 1                   # parity-split padded width  ((W+2)/2)
    R = H * Wo                    # rows of the conv matmuls / conv_out

    # Conv bias is an exact no-op through training-mode BatchNorm (removed again by
    # the batch-mean subtraction), so it is dropped from the kernel math entirely.
    del bias

    # ---- layout plumbing (single pass over the input) ------------------------
    x = jnp.transpose(x_nchw, (0, 2, 3, 1)).astype(mxu_dtype)      # NHWC, bf16 operands
    xp = jnp.pad(x, ((0, 0), (1, 1), (1, 1), (0, Cinp - Cin)))     # (N, H+2, W+2, Cinp)
    x_even = xp[:, :, 0::2, :]                                     # (N, H+2, Wo+1, Cinp)
    x_odd = xp[:, :, 1::2, :]                                      # (N, H+2, Wo+1, Cinp)

    # OIHW -> (kh, kw, Cin, Cout), zero-pad channels, flatten taps.
    wt = jnp.transpose(w_oihw.astype(jnp.float32), (2, 3, 1, 0))   # (3, 3, Cin, Cout)
    wt = jnp.pad(wt, ((0, 0), (0, 0), (0, Cinp - Cin), (0, Cpad - Cout)))
    w_taps = wt.reshape(9, Cinp, Cpad).astype(mxu_dtype)           # (9, Cinp, Cpad)

    # ---- kernel 1: conv as 18 accumulated shifted matmuls + BN batch stats ---
    def conv_kernel(xe_ref, xo_ref, w_ref, o_ref, st_ref):
        par_refs = (xe_ref, xo_ref)
        s_sum = jnp.zeros((1, Cpad), jnp.float32)
        s_sq = jnp.zeros((1, Cpad), jnp.float32)
        for p in range(2):                       # output-column parity: w = 2*wo + p
            acc = jnp.zeros((R, Cpad), jnp.float32)
            for kh in range(3):
                for kw in range(3):
                    par = (p + kw) & 1           # which parity-split input to read
                    off = (p + kw) >> 1          # unit-stride column offset in it
                    slab = par_refs[par][0, kh:kh + H, off:off + Wo, :]
                    slab = slab.reshape(R, Cinp)
                    acc = acc + jnp.dot(slab, w_ref[kh * 3 + kw],
                                        preferred_element_type=jnp.float32)
            # lane-dense store: [.., 0:Cpad] = even-w columns, [.., Cpad:] = odd-w
            o_ref[0, :, p * Cpad:(p + 1) * Cpad] = acc.astype(o_ref.dtype)
            s_sum = s_sum + jnp.sum(acc, axis=0, keepdims=True)
            s_sq = s_sq + jnp.sum(acc * acc, axis=0, keepdims=True)
        # per-batch-element partial sums (reduced in the wrapper) -> grid stays parallel
        st_ref[0, 0:1, :] = s_sum
        st_ref[0, 1:2, :] = s_sq

    conv_out, stats = pl.pallas_call(
        conv_kernel,
        out_shape=(
            jax.ShapeDtypeStruct((N, R, 2 * Cpad), conv_out_dtype),
            jax.ShapeDtypeStruct((N, 2, Cpad), jnp.float32),
        ),
        grid_spec=pltpu.PrefetchScalarGridSpec(
            num_scalar_prefetch=0,
            grid=(N,),
            in_specs=[
                pl.BlockSpec((1, Hp, Wp, Cinp), lambda b: (b, 0, 0, 0)),
                pl.BlockSpec((1, Hp, Wp, Cinp), lambda b: (b, 0, 0, 0)),
                pl.BlockSpec((9, Cinp, Cpad), lambda b: (0, 0, 0)),
            ],
            out_specs=[
                pl.BlockSpec((1, R, 2 * Cpad), lambda b: (b, 0, 0)),
                pl.BlockSpec((1, 2, Cpad), lambda b: (b, 0, 0)),
            ],
        ),
        compiler_params=pltpu.CompilerParams(
            dimension_semantics=("parallel",),
            vmem_limit_bytes=32 * 1024 * 1024,
        ),
    )(x_even, x_odd, w_taps)

    # ---- training-mode BatchNorm statistics, folded to scale/shift (tiny) ----
    cnt = float(N * H * W)
    s1 = jnp.sum(stats[:, 0, :], axis=0)
    s2 = jnp.sum(stats[:, 1, :], axis=0)
    mean = s1 / cnt
    var = jnp.maximum(s2 / cnt - mean * mean, 0.0)   # guard tiny negatives (cancellation)
    gamma_p = jnp.pad(gamma.astype(jnp.float32), (0, Cpad - Cout))
    beta_p = jnp.pad(beta.astype(jnp.float32), (0, Cpad - Cout))
    scale = gamma_p / jnp.sqrt(var + eps)
    shift = beta_p - mean * scale
    scale2 = scale.reshape(1, Cpad)
    shift2 = shift.reshape(1, Cpad)

    # ---- kernel 2: fused BN affine + 2x2 max-pool + LeakyReLU(0.2) -----------
    def bn_pool_kernel(y_ref, scale_ref, shift_ref, o_ref):
        scl = scale_ref[...]                                  # (1, Cpad) f32
        sft = shift_ref[...]
        xe = y_ref[0, :, 0:Cpad].astype(jnp.float32)          # (R, Cpad) even-w cols
        xo = y_ref[0, :, Cpad:2 * Cpad].astype(jnp.float32)   # (R, Cpad) odd-w cols
        ze = xe * scl + sft
        zo = xo * scl + sft
        zw = jnp.maximum(ze, zo)                              # pooled over W
        z4 = zw.reshape(Ho, 2, Wo, Cpad)                      # free major-dim split
        zh = jnp.maximum(z4[:, 0, :, :], z4[:, 1, :, :])      # pooled over H
        # LeakyReLU is monotone -> commutes with max: apply it once, post-pool.
        o_ref[0] = jnp.where(zh >= 0.0, zh, 0.2 * zh)

    out_nhwc = pl.pallas_call(
        bn_pool_kernel,
        out_shape=jax.ShapeDtypeStruct((N, Ho, Wo, Cpad), jnp.float32),
        grid_spec=pltpu.PrefetchScalarGridSpec(
            num_scalar_prefetch=0,
            grid=(N,),
            in_specs=[
                pl.BlockSpec((1, R, 2 * Cpad), lambda b: (b, 0, 0)),
                pl.BlockSpec((1, Cpad), lambda b: (0, 0)),
                pl.BlockSpec((1, Cpad), lambda b: (0, 0)),
            ],
            out_specs=pl.BlockSpec((1, Ho, Wo, Cpad), lambda b: (b, 0, 0, 0)),
        ),
        compiler_params=pltpu.CompilerParams(
            dimension_semantics=("parallel",),
            vmem_limit_bytes=32 * 1024 * 1024,
        ),
    )(conv_out, scale2, shift2)

    # strip channel padding, NHWC -> NCHW to match the PyTorch module output
    return jnp.transpose(out_nhwc[:, :, :, :Cout], (0, 3, 1, 2))


# ------------------------------------------------------------------------------
# Pure-JAX f32 reference, faithful to the PyTorch module (training-mode BN)
# ------------------------------------------------------------------------------
def reference_forward(x, w, b, gamma, beta, eps=1e-5):
    y = jax.lax.conv_general_dilated(
        x, w, window_strides=(1, 1), padding=((1, 1), (1, 1)),
        dimension_numbers=("NCHW", "OIHW", "NCHW"),
        precision=jax.lax.Precision.HIGHEST)
    y = y + b[None, :, None, None]
    mean = jnp.mean(y, axis=(0, 2, 3), keepdims=True)
    var = jnp.var(y, axis=(0, 2, 3), keepdims=True)          # biased, like BN training
    z = (y - mean) / jnp.sqrt(var + eps)
    z = z * gamma[None, :, None, None] + beta[None, :, None, None]
    z = jnp.where(z >= 0.0, z, 0.2 * z)                      # LeakyReLU(0.2)
    n, c, h, w_ = z.shape
    return z.reshape(n, c, h // 2, 2, w_ // 2, 2).max(axis=(3, 5))


if __name__ == "__main__":
    key = jax.random.PRNGKey(0)
    k1, k2, k3, k4, k5 = jax.random.split(key, 5)

    N, nin, nout, H, W = 2, 4, 8, 16, 16
    x = jax.random.normal(k1, (N, nin, H, W), dtype=jnp.float32)
    w = 0.1 * jax.random.normal(k2, (nout, nin, 3, 3), dtype=jnp.float32)   # Conv2d weight
    b = 0.1 * jax.random.normal(k3, (nout,), dtype=jnp.float32)             # Conv2d bias
    gamma = 1.0 + 0.1 * jax.random.normal(k4, (nout,), dtype=jnp.float32)   # BN weight
    beta = 0.1 * jax.random.normal(k5, (nout,), dtype=jnp.float32)          # BN bias

    # Performance configuration: bf16 MXU operands, bf16 cross-kernel intermediate.
    out = conv_encoder_forward(x, w, b, gamma, beta)
    out = jax.block_until_ready(out)
    assert out.shape == (N, nout, H // 2, W // 2), out.shape

    ref = reference_forward(x, w, b, gamma, beta)
    err_fast = float(jnp.max(jnp.abs(out - ref)))
    assert err_fast < 1e-1, f"bf16 path vs f32 reference: max abs err {err_fast}"

    # Tight structural check: same bf16 MXU operands but an f32 intermediate,
    # compared against the f32 reference fed with identically bf16-quantized conv
    # operands (remaining differences: accumulation order / single-pass variance).
    out_tight = conv_encoder_forward(x, w, b, gamma, beta,
                                     conv_out_dtype=jnp.float32)
    out_tight = jax.block_until_ready(out_tight)
    xq = x.astype(jnp.bfloat16).astype(jnp.float32)
    wq = w.astype(jnp.bfloat16).astype(jnp.float32)
    ref_q = reference_forward(xq, wq, b, gamma, beta)
    err_tight = float(jnp.max(jnp.abs(out_tight - ref_q)))
    assert err_tight < 2e-3, f"quantization-matched reference: max abs err {err_tight}"

    print("KERNEL_OK")
</pallas_src>

<mosaic_0001>
module attributes {stable_mosaic.version = 11 : i64} {
  func.func @conv_kernel(%arg0: i32, %arg1: memref<1x18x9x8xbf16, #tpu.memory_space<vmem>>, %arg2: memref<1x18x9x8xbf16, #tpu.memory_space<vmem>>, %arg3: memref<9x8x128xbf16, #tpu.memory_space<vmem>>, %arg4: memref<1x128x256xbf16, #tpu.memory_space<vmem>>, %arg5: memref<1x2x128xf32, #tpu.memory_space<vmem>>) attributes {dimension_semantics = [#tpu.dimension_semantics<parallel>], iteration_bounds = array<i64: 2>, scalar_prefetch = 0 : i64, scratch_operands = 0 : i64, tpu.core_type = #tpu.core_type<tc>, window_params = [{transform_indices = @transform_0, window_bounds = array<i64: 1, 18, 9, 8>}, {transform_indices = @transform_1, window_bounds = array<i64: 1, 18, 9, 8>}, {pipeline_mode = #tpu.pipeline_mode<synchronous>, transform_indices = @transform_2, window_bounds = array<i64: 9, 8, 128>}, {transform_indices = @transform_3, window_bounds = array<i64: 1, 128, 256>}, {transform_indices = @transform_4, window_bounds = array<i64: 1, 2, 128>}]} {
    %cst = arith.constant 0.000000e+00 : f32
    %0 = vector.broadcast %cst : f32 to vector<1x128xf32>
    %cst_0 = arith.constant 0.000000e+00 : f32
    %1 = vector.broadcast %cst_0 : f32 to vector<1x128xf32>
    %cst_1 = arith.constant 0.000000e+00 : f32
    %2 = vector.broadcast %cst_1 : f32 to vector<128x128xf32>
    %c0 = arith.constant 0 : index
    %c0_2 = arith.constant 0 : index
    %c0_3 = arith.constant 0 : index
    %c0_4 = arith.constant 0 : index
    %3 = vector.load %arg1[%c0, %c0_2, %c0_3, %c0_4] : memref<1x18x9x8xbf16, #tpu.memory_space<vmem>>, vector<1x16x8x8xbf16>
    %4 = vector.shape_cast %3 : vector<1x16x8x8xbf16> to vector<16x8x8xbf16>
    %5 = vector.shape_cast %4 : vector<16x8x8xbf16> to vector<128x8xbf16>
    %c0_5 = arith.constant 0 : index
    %c0_6 = arith.constant 0 : index
    %c0_7 = arith.constant 0 : index
    %6 = vector.load %arg3[%c0_5, %c0_6, %c0_7] : memref<9x8x128xbf16, #tpu.memory_space<vmem>>, vector<1x8x128xbf16>
    %7 = vector.shape_cast %6 : vector<1x8x128xbf16> to vector<8x128xbf16>
    %cst_8 = arith.constant dense<0.000000e+00> : vector<128x128xf32>
    %8 = tpu.matmul %5, %7, %cst_8 {dimension_numbers = #tpu.dot_dimension_numbers<[1], [0], [0], [1], [0, 0, 1, 1], [], []>} : vector<128x8xbf16>, vector<8x128xbf16>, vector<128x128xf32> -> vector<128x128xf32>
    %9 = arith.addf %2, %8 : vector<128x128xf32>
    %c0_9 = arith.constant 0 : index
    %c0_10 = arith.constant 0 : index
    %c0_11 = arith.constant 0 : index
    %c0_12 = arith.constant 0 : index
    %10 = vector.load %arg2[%c0_9, %c0_10, %c0_11, %c0_12] : memref<1x18x9x8xbf16, #tpu.memory_space<vmem>>, vector<1x16x8x8xbf16>
    %11 = vector.shape_cast %10 : vector<1x16x8x8xbf16> to vector<16x8x8xbf16>
    %12 = vector.shape_cast %11 : vector<16x8x8xbf16> to vector<128x8xbf16>
    %c1 = arith.constant 1 : index
    %c0_13 = arith.constant 0 : index
    %c0_14 = arith.constant 0 : index
    %13 = vector.load %arg3[%c1, %c0_13, %c0_14] : memref<9x8x128xbf16, #tpu.memory_space<vmem>>, vector<1x8x128xbf16>
    %14 = vector.shape_cast %13 : vector<1x8x128xbf16> to vector<8x128xbf16>
    %cst_15 = arith.constant dense<0.000000e+00> : vector<128x128xf32>
    %15 = tpu.matmul %12, %14, %cst_15 {dimension_numbers = #tpu.dot_dimension_numbers<[1], [0], [0], [1], [0, 0, 1, 1], [], []>} : vector<128x8xbf16>, vector<8x128xbf16>, vector<128x128xf32> -> vector<128x128xf32>
    %16 = arith.addf %9, %15 : vector<128x128xf32>
    %c0_16 = arith.constant 0 : index
    %c0_17 = arith.constant 0 : index
    %c1_18 = arith.constant 1 : index
    %c0_19 = arith.constant 0 : index
    %17 = vector.load %arg1[%c0_16, %c0_17, %c1_18, %c0_19] : memref<1x18x9x8xbf16, #tpu.memory_space<vmem>>, vector<1x16x8x8xbf16>
    %18 = vector.shape_cast %17 : vector<1x16x8x8xbf16> to vector<16x8x8xbf16>
    %19 = vector.shape_cast %18 : vector<16x8x8xbf16> to vector<128x8xbf16>
    %c2 = arith.constant 2 : index
    %c0_20 = arith.constant 0 : index
    %c0_21 = arith.constant 0 : index
    %20 = vector.load %arg3[%c2, %c0_20, %c0_21] : memref<9x8x128xbf16, #tpu.memory_space<vmem>>, vector<1x8x128xbf16>
    %21 = vector.shape_cast %20 : vector<1x8x128xbf16> to vector<8x128xbf16>
    %cst_22 = arith.constant dense<0.000000e+00> : vector<128x128xf32>
    %22 = tpu.matmul %19, %21, %cst_22 {dimension_numbers = #tpu.dot_dimension_numbers<[1], [0], [0], [1], [0, 0, 1, 1], [], []>} : vector<128x8xbf16>, vector<8x128xbf16>, vector<128x128xf32> -> vector<128x128xf32>
    %23 = arith.addf %16, %22 : vector<128x128xf32>
    %c0_23 = arith.constant 0 : index
    %c1_24 = arith.constant 1 : index
    %c0_25 = arith.constant 0 : index
    %c0_26 = arith.constant 0 : index
    %24 = vector.load %arg1[%c0_23, %c1_24, %c0_25, %c0_26] : memref<1x18x9x8xbf16, #tpu.memory_space<vmem>>, vector<1x16x8x8xbf16>
    %25 = vector.shape_cast %24 : vector<1x16x8x8xbf16> to vector<16x8x8xbf16>
    %26 = vector.shape_cast %25 : vector<16x8x8xbf16> to vector<128x8xbf16>
    %c3 = arith.constant 3 : index
    %c0_27 = arith.constant 0 : index
    %c0_28 = arith.constant 0 : index
    %27 = vector.load %arg3[%c3, %c0_27, %c0_28] : memref<9x8x128xbf16, #tpu.memory_space<vmem>>, vector<1x8x128xbf16>
    %28 = vector.shape_cast %27 : vector<1x8x128xbf16> to vector<8x128xbf16>
    %cst_29 = arith.constant dense<0.000000e+00> : vector<128x128xf32>
    %29 = tpu.matmul %26, %28, %cst_29 {dimension_numbers = #tpu.dot_dimension_numbers<[1], [0], [0], [1], [0, 0, 1, 1], [], []>} : vector<128x8xbf16>, vector<8x128xbf16>, vector<128x128xf32> -> vector<128x128xf32>
    %30 = arith.addf %23, %29 : vector<128x128xf32>
    %c0_30 = arith.constant 0 : index
    %c1_31 = arith.constant 1 : index
    %c0_32 = arith.constant 0 : index
    %c0_33 = arith.constant 0 : index
    %31 = vector.load %arg2[%c0_30, %c1_31, %c0_32, %c0_33] : memref<1x18x9x8xbf16, #tpu.memory_space<vmem>>, vector<1x16x8x8xbf16>
    %32 = vector.shape_cast %31 : vector<1x16x8x8xbf16> to vector<16x8x8xbf16>
    %33 = vector.shape_cast %32 : vector<16x8x8xbf16> to vector<128x8xbf16>
    %c4 = arith.constant 4 : index
    %c0_34 = arith.constant 0 : index
    %c0_35 = arith.constant 0 : index
    %34 = vector.load %arg3[%c4, %c0_34, %c0_35] : memref<9x8x128xbf16, #tpu.memory_space<vmem>>, vector<1x8x128xbf16>
    %35 = vector.shape_cast %34 : vector<1x8x128xbf16> to vector<8x128xbf16>
    %cst_36 = arith.constant dense<0.000000e+00> : vector<128x128xf32>
    %36 = tpu.matmul %33, %35, %cst_36 {dimension_numbers = #tpu.dot_dimension_numbers<[1], [0], [0], [1], [0, 0, 1, 1], [], []>} : vector<128x8xbf16>, vector<8x128xbf16>, vector<128x128xf32> -> vector<128x128xf32>
    %37 = arith.addf %30, %36 : vector<128x128xf32>
    %c0_37 = arith.constant 0 : index
    %c1_38 = arith.constant 1 : index
    %c1_39 = arith.constant 1 : index
    %c0_40 = arith.constant 0 : index
    %38 = vector.load %arg1[%c0_37, %c1_38, %c1_39, %c0_40] : memref<1x18x9x8xbf16, #tpu.memory_space<vmem>>, vector<1x16x8x8xbf16>
    %39 = vector.shape_cast %38 : vector<1x16x8x8xbf16> to vector<16x8x8xbf16>
    %40 = vector.shape_cast %39 : vector<16x8x8xbf16> to vector<128x8xbf16>
    %c5 = arith.constant 5 : index
    %c0_41 = arith.constant 0 : index
    %c0_42 = arith.constant 0 : index
    %41 = vector.load %arg3[%c5, %c0_41, %c0_42] : memref<9x8x128xbf16, #tpu.memory_space<vmem>>, vector<1x8x128xbf16>
    %42 = vector.shape_cast %41 : vector<1x8x128xbf16> to vector<8x128xbf16>
    %cst_43 = arith.constant dense<0.000000e+00> : vector<128x128xf32>
    %43 = tpu.matmul %40, %42, %cst_43 {dimension_numbers = #tpu.dot_dimension_numbers<[1], [0], [0], [1], [0, 0, 1, 1], [], []>} : vector<128x8xbf16>, vector<8x128xbf16>, vector<128x128xf32> -> vector<128x128xf32>
    %44 = arith.addf %37, %43 : vector<128x128xf32>
    %c0_44 = arith.constant 0 : index
    %c2_45 = arith.constant 2 : index
    %c0_46 = arith.constant 0 : index
    %c0_47 = arith.constant 0 : index
    %45 = vector.load %arg1[%c0_44, %c2_45, %c0_46, %c0_47] : memref<1x18x9x8xbf16, #tpu.memory_space<vmem>>, vector<1x16x8x8xbf16>
    %46 = vector.shape_cast %45 : vector<1x16x8x8xbf16> to vector<16x8x8xbf16>
    %47 = vector.shape_cast %46 : vector<16x8x8xbf16> to vector<128x8xbf16>
    %c6 = arith.constant 6 : index
    %c0_48 = arith.constant 0 : index
    %c0_49 = arith.constant 0 : index
    %48 = vector.load %arg3[%c6, %c0_48, %c0_49] : memref<9x8x128xbf16, #tpu.memory_space<vmem>>, vector<1x8x128xbf16>
    %49 = vector.shape_cast %48 : vector<1x8x128xbf16> to vector<8x128xbf16>
    %cst_50 = arith.constant dense<0.000000e+00> : vector<128x128xf32>
    %50 = tpu.matmul %47, %49, %cst_50 {dimension_numbers = #tpu.dot_dimension_numbers<[1], [0], [0], [1], [0, 0, 1, 1], [], []>} : vector<128x8xbf16>, vector<8x128xbf16>, vector<128x128xf32> -> vector<128x128xf32>
    %51 = arith.addf %44, %50 : vector<128x128xf32>
    %c0_51 = arith.constant 0 : index
    %c2_52 = arith.constant 2 : index
    %c0_53 = arith.constant 0 : index
    %c0_54 = arith.constant 0 : index
    %52 = vector.load %arg2[%c0_51, %c2_52, %c0_53, %c0_54] : memref<1x18x9x8xbf16, #tpu.memory_space<vmem>>, vector<1x16x8x8xbf16>
    %53 = vector.shape_cast %52 : vector<1x16x8x8xbf16> to vector<16x8x8xbf16>
    %54 = vector.shape_cast %53 : vector<16x8x8xbf16> to vector<128x8xbf16>
    %c7 = arith.constant 7 : index
    %c0_55 = arith.constant 0 : index
    %c0_56 = arith.constant 0 : index
    %55 = vector.load %arg3[%c7, %c0_55, %c0_56] : memref<9x8x128xbf16, #tpu.memory_space<vmem>>, vector<1x8x128xbf16>
    %56 = vector.shape_cast %55 : vector<1x8x128xbf16> to vector<8x128xbf16>
    %cst_57 = arith.constant dense<0.000000e+00> : vector<128x128xf32>
    %57 = tpu.matmul %54, %56, %cst_57 {dimension_numbers = #tpu.dot_dimension_numbers<[1], [0], [0], [1], [0, 0, 1, 1], [], []>} : vector<128x8xbf16>, vector<8x128xbf16>, vector<128x128xf32> -> vector<128x128xf32>
    %58 = arith.addf %51, %57 : vector<128x128xf32>
    %c0_58 = arith.constant 0 : index
    %c2_59 = arith.constant 2 : index
    %c1_60 = arith.constant 1 : index
    %c0_61 = arith.constant 0 : index
    %59 = vector.load %arg1[%c0_58, %c2_59, %c1_60, %c0_61] : memref<1x18x9x8xbf16, #tpu.memory_space<vmem>>, vector<1x16x8x8xbf16>
    %60 = vector.shape_cast %59 : vector<1x16x8x8xbf16> to vector<16x8x8xbf16>
    %61 = vector.shape_cast %60 : vector<16x8x8xbf16> to vector<128x8xbf16>
    %c8 = arith.constant 8 : index
    %c0_62 = arith.constant 0 : index
    %c0_63 = arith.constant 0 : index
    %62 = vector.load %arg3[%c8, %c0_62, %c0_63] : memref<9x8x128xbf16, #tpu.memory_space<vmem>>, vector<1x8x128xbf16>
    %63 = vector.shape_cast %62 : vector<1x8x128xbf16> to vector<8x128xbf16>
    %cst_64 = arith.constant dense<0.000000e+00> : vector<128x128xf32>
    %64 = tpu.matmul %61, %63, %cst_64 {dimension_numbers = #tpu.dot_dimension_numbers<[1], [0], [0], [1], [0, 0, 1, 1], [], []>} : vector<128x8xbf16>, vector<8x128xbf16>, vector<128x128xf32> -> vector<128x128xf32>
    %65 = arith.addf %58, %64 : vector<128x128xf32>
    %66 = arith.truncf %65 : vector<128x128xf32> to vector<128x128xbf16>
    %c0_65 = arith.constant 0 : index
    %c0_66 = arith.constant 0 : index
    %c0_67 = arith.constant 0 : index
    %67 = vector.load %arg4[%c0_65, %c0_66, %c0_67] : memref<1x128x256xbf16, #tpu.memory_space<vmem>>, vector<1x128x128xbf16>
    %68 = vector.shape_cast %67 : vector<1x128x128xbf16> to vector<128x128xbf16>
    %69 = vector.shape_cast %66 : vector<128x128xbf16> to vector<1x128x128xbf16>
    tpu.vector_store %arg4[%c0_65, %c0_66, %c0_67], %69 {strides = array<i32>} : memref<1x128x256xbf16, #tpu.memory_space<vmem>>, vector<1x128x128xbf16>,
    %cst_68 = arith.constant dense<0.000000e+00> : vector<128xf32>
    %70 = vector.multi_reduction <add>, %65, %cst_68 [0] : vector<128x128xf32> to vector<128xf32>
    %71 = vector.shape_cast %70 : vector<128xf32> to vector<1x128xf32>
    %72 = arith.addf %0, %71 : vector<1x128xf32>
    %73 = arith.mulf %65, %65 : vector<128x128xf32>
    %cst_69 = arith.constant dense<0.000000e+00> : vector<128xf32>
    %74 = vector.multi_reduction <add>, %73, %cst_69 [0] : vector<128x128xf32> to vector<128xf32>
    %75 = vector.shape_cast %74 : vector<128xf32> to vector<1x128xf32>
    %76 = arith.addf %1, %75 : vector<1x128xf32>
    %cst_70 = arith.constant 0.000000e+00 : f32
    %77 = vector.broadcast %cst_70 : f32 to vector<128x128xf32>
    %c0_71 = arith.constant 0 : index
    %c0_72 = arith.constant 0 : index
    %c0_73 = arith.constant 0 : index
    %c0_74 = arith.constant 0 : index
    %78 = vector.load %arg2[%c0_71, %c0_72, %c0_73, %c0_74] : memref<1x18x9x8xbf16, #tpu.memory_space<vmem>>, vector<1x16x8x8xbf16>
    %79 = vector.shape_cast %78 : vector<1x16x8x8xbf16> to vector<16x8x8xbf16>
    %80 = vector.shape_cast %79 : vector<16x8x8xbf16> to vector<128x8xbf16>
    %c0_75 = arith.constant 0 : index
    %c0_76 = arith.constant 0 : index
    %c0_77 = arith.constant 0 : index
    %81 = vector.load %arg3[%c0_75, %c0_76, %c0_77] : memref<9x8x128xbf16, #tpu.memory_space<vmem>>, vector<1x8x128xbf16>
    %82 = vector.shape_cast %81 : vector<1x8x128xbf16> to vector<8x128xbf16>
    %cst_78 = arith.constant dense<0.000000e+00> : vector<128x128xf32>
    %83 = tpu.matmul %80, %82, %cst_78 {dimension_numbers = #tpu.dot_dimension_numbers<[1], [0], [0], [1], [0, 0, 1, 1], [], []>} : vector<128x8xbf16>, vector<8x128xbf16>, vector<128x128xf32> -> vector<128x128xf32>
    %84 = arith.addf %77, %83 : vector<128x128xf32>
    %c0_79 = arith.constant 0 : index
    %c0_80 = arith.constant 0 : index
    %c1_81 = arith.constant 1 : index
    %c0_82 = arith.constant 0 : index
    %85 = vector.load %arg1[%c0_79, %c0_80, %c1_81, %c0_82] : memref<1x18x9x8xbf16, #tpu.memory_space<vmem>>, vector<1x16x8x8xbf16>
    %86 = vector.shape_cast %85 : vector<1x16x8x8xbf16> to vector<16x8x8xbf16>
    %87 = vector.shape_cast %86 : vector<16x8x8xbf16> to vector<128x8xbf16>
    %c1_83 = arith.constant 1 : index
    %c0_84 = arith.constant 0 : index
    %c0_85 = arith.constant 0 : index
    %88 = vector.load %arg3[%c1_83, %c0_84, %c0_85] : memref<9x8x128xbf16, #tpu.memory_space<vmem>>, vector<1x8x128xbf16>
    %89 = vector.shape_cast %88 : vector<1x8x128xbf16> to vector<8x128xbf16>
    %cst_86 = arith.constant dense<0.000000e+00> : vector<128x128xf32>
    %90 = tpu.matmul %87, %89, %cst_86 {dimension_numbers = #tpu.dot_dimension_numbers<[1], [0], [0], [1], [0, 0, 1, 1], [], []>} : vector<128x8xbf16>, vector<8x128xbf16>, vector<128x128xf32> -> vector<128x128xf32>
    %91 = arith.addf %84, %90 : vector<128x128xf32>
    %c0_87 = arith.constant 0 : index
    %c0_88 = arith.constant 0 : index
    %c1_89 = arith.constant 1 : index
    %c0_90 = arith.constant 0 : index
    %92 = vector.load %arg2[%c0_87, %c0_88, %c1_89, %c0_90] : memref<1x18x9x8xbf16, #tpu.memory_space<vmem>>, vector<1x16x8x8xbf16>
    %93 = vector.shape_cast %92 : vector<1x16x8x8xbf16> to vector<16x8x8xbf16>
    %94 = vector.shape_cast %93 : vector<16x8x8xbf16> to vector<128x8xbf16>
    %c2_91 = arith.constant 2 : index
    %c0_92 = arith.constant 0 : index
    %c0_93 = arith.constant 0 : index
    %95 = vector.load %arg3[%c2_91, %c0_92, %c0_93] : memref<9x8x128xbf16, #tpu.memory_space<vmem>>, vector<1x8x128xbf16>
    %96 = vector.shape_cast %95 : vector<1x8x128xbf16> to vector<8x128xbf16>
    %cst_94 = arith.constant dense<0.000000e+00> : vector<128x128xf32>
    %97 = tpu.matmul %94, %96, %cst_94 {dimension_numbers = #tpu.dot_dimension_numbers<[1], [0], [0], [1], [0, 0, 1, 1], [], []>} : vector<128x8xbf16>, vector<8x128xbf16>, vector<128x128xf32> -> vector<128x128xf32>
    %98 = arith.addf %91, %97 : vector<128x128xf32>
    %c0_95 = arith.constant 0 : index
    %c1_96 = arith.constant 1 : index
    %c0_97 = arith.constant 0 : index
    %c0_98 = arith.constant 0 : index
    %99 = vector.load %arg2[%c0_95, %c1_96, %c0_97, %c0_98] : memref<1x18x9x8xbf16, #tpu.memory_space<vmem>>, vector<1x16x8x8xbf16>
    %100 = vector.shape_cast %99 : vector<1x16x8x8xbf16> to vector<16x8x8xbf16>
    %101 = vector.shape_cast %100 : vector<16x8x8xbf16> to vector<128x8xbf16>
    %c3_99 = arith.constant 3 : index
    %c0_100 = arith.constant 0 : index
    %c0_101 = arith.constant 0 : index
    %102 = vector.load %arg3[%c3_99, %c0_100, %c0_101] : memref<9x8x128xbf16, #tpu.memory_space<vmem>>, vector<1x8x128xbf16>
    %103 = vector.shape_cast %102 : vector<1x8x128xbf16> to vector<8x128xbf16>
    %cst_102 = arith.constant dense<0.000000e+00> : vector<128x128xf32>
    %104 = tpu.matmul %101, %103, %cst_102 {dimension_numbers = #tpu.dot_dimension_numbers<[1], [0], [0], [1], [0, 0, 1, 1], [], []>} : vector<128x8xbf16>, vector<8x128xbf16>, vector<128x128xf32> -> vector<128x128xf32>
    %105 = arith.addf %98, %104 : vector<128x128xf32>
    %c0_103 = arith.constant 0 : index
    %c1_104 = arith.constant 1 : index
    %c1_105 = arith.constant 1 : index
    %c0_106 = arith.constant 0 : index
    %106 = vector.load %arg1[%c0_103, %c1_104, %c1_105, %c0_106] : memref<1x18x9x8xbf16, #tpu.memory_space<vmem>>, vector<1x16x8x8xbf16>
    %107 = vector.shape_cast %106 : vector<1x16x8x8xbf16> to vector<16x8x8xbf16>
    %108 = vector.shape_cast %107 : vector<16x8x8xbf16> to vector<128x8xbf16>
    %c4_107 = arith.constant 4 : index
    %c0_108 = arith.constant 0 : index
    %c0_109 = arith.constant 0 : index
    %109 = vector.load %arg3[%c4_107, %c0_108, %c0_109] : memref<9x8x128xbf16, #tpu.memory_space<vmem>>, vector<1x8x128xbf16>
    %110 = vector.shape_cast %109 : vector<1x8x128xbf16> to vector<8x128xbf16>
    %cst_110 = arith.constant dense<0.000000e+00> : vector<128x128xf32>
    %111 = tpu.matmul %108, %110, %cst_110 {dimension_numbers = #tpu.dot_dimension_numbers<[1], [0], [0], [1], [0, 0, 1, 1], [], []>} : vector<128x8xbf16>, vector<8x128xbf16>, vector<128x128xf32> -> vector<128x128xf32>
    %112 = arith.addf %105, %111 : vector<128x128xf32>
    %c0_111 = arith.constant 0 : index
    %c1_112 = arith.constant 1 : index
    %c1_113 = arith.constant 1 : index
    %c0_114 = arith.constant 0 : index
    %113 = vector.load %arg2[%c0_111, %c1_112, %c1_113, %c0_114] : memref<1x18x9x8xbf16, #tpu.memory_space<vmem>>, vector<1x16x8x8xbf16>
    %114 = vector.shape_cast %113 : vector<1x16x8x8xbf16> to vector<16x8x8xbf16>
    %115 = vector.shape_cast %114 : vector<16x8x8xbf16> to vector<128x8xbf16>
    %c5_115 = arith.constant 5 : index
    %c0_116 = arith.constant 0 : index
    %c0_117 = arith.constant 0 : index
    %116 = vector.load %arg3[%c5_115, %c0_116, %c0_117] : memref<9x8x128xbf16, #tpu.memory_space<vmem>>, vector<1x8x128xbf16>
    %117 = vector.shape_cast %116 : vector<1x8x128xbf16> to vector<8x128xbf16>
    %cst_118 = arith.constant dense<0.000000e+00> : vector<128x128xf32>
    %118 = tpu.matmul %115, %117, %cst_118 {dimension_numbers = #tpu.dot_dimension_numbers<[1], [0], [0], [1], [0, 0, 1, 1], [], []>} : vector<128x8xbf16>, vector<8x128xbf16>, vector<128x128xf32> -> vector<128x128xf32>
    %119 = arith.addf %112, %118 : vector<128x128xf32>
    %c0_119 = arith.constant 0 : index
    %c2_120 = arith.constant 2 : index
    %c0_121 = arith.constant 0 : index
    %c0_122 = arith.constant 0 : index
    %120 = vector.load %arg2[%c0_119, %c2_120, %c0_121, %c0_122] : memref<1x18x9x8xbf16, #tpu.memory_space<vmem>>, vector<1x16x8x8xbf16>
    %121 = vector.shape_cast %120 : vector<1x16x8x8xbf16> to vector<16x8x8xbf16>
    %122 = vector.shape_cast %121 : vector<16x8x8xbf16> to vector<128x8xbf16>
    %c6_123 = arith.constant 6 : index
    %c0_124 = arith.constant 0 : index
    %c0_125 = arith.constant 0 : index
    %123 = vector.load %arg3[%c6_123, %c0_124, %c0_125] : memref<9x8x128xbf16, #tpu.memory_space<vmem>>, vector<1x8x128xbf16>
    %124 = vector.shape_cast %123 : vector<1x8x128xbf16> to vector<8x128xbf16>
    %cst_126 = arith.constant dense<0.000000e+00> : vector<128x128xf32>
    %125 = tpu.matmul %122, %124, %cst_126 {dimension_numbers = #tpu.dot_dimension_numbers<[1], [0], [0], [1], [0, 0, 1, 1], [], []>} : vector<128x8xbf16>, vector<8x128xbf16>, vector<128x128xf32> -> vector<128x128xf32>
    %126 = arith.addf %119, %125 : vector<128x128xf32>
    %c0_127 = arith.constant 0 : index
    %c2_128 = arith.constant 2 : index
    %c1_129 = arith.constant 1 : index
    %c0_130 = arith.constant 0 : index
    %127 = vector.load %arg1[%c0_127, %c2_128, %c1_129, %c0_130] : memref<1x18x9x8xbf16, #tpu.memory_space<vmem>>, vector<1x16x8x8xbf16>
    %128 = vector.shape_cast %127 : vector<1x16x8x8xbf16> to vector<16x8x8xbf16>
    %129 = vector.shape_cast %128 : vector<16x8x8xbf16> to vector<128x8xbf16>
    %c7_131 = arith.constant 7 : index
    %c0_132 = arith.constant 0 : index
    %c0_133 = arith.constant 0 : index
    %130 = vector.load %arg3[%c7_131, %c0_132, %c0_133] : memref<9x8x128xbf16, #tpu.memory_space<vmem>>, vector<1x8x128xbf16>
    %131 = vector.shape_cast %130 : vector<1x8x128xbf16> to vector<8x128xbf16>
    %cst_134 = arith.constant dense<0.000000e+00> : vector<128x128xf32>
    %132 = tpu.matmul %129, %131, %cst_134 {dimension_numbers = #tpu.dot_dimension_numbers<[1], [0], [0], [1], [0, 0, 1, 1], [], []>} : vector<128x8xbf16>, vector<8x128xbf16>, vector<128x128xf32> -> vector<128x128xf32>
    %133 = arith.addf %126, %132 : vector<128x128xf32>
    %c0_135 = arith.constant 0 : index
    %c2_136 = arith.constant 2 : index
    %c1_137 = arith.constant 1 : index
    %c0_138 = arith.constant 0 : index
    %134 = vector.load %arg2[%c0_135, %c2_136, %c1_137, %c0_138] : memref<1x18x9x8xbf16, #tpu.memory_space<vmem>>, vector<1x16x8x8xbf16>
    %135 = vector.shape_cast %134 : vector<1x16x8x8xbf16> to vector<16x8x8xbf16>
    %136 = vector.shape_cast %135 : vector<16x8x8xbf16> to vector<128x8xbf16>
    %c8_139 = arith.constant 8 : index
    %c0_140 = arith.constant 0 : index
    %c0_141 = arith.constant 0 : index
    %137 = vector.load %arg3[%c8_139, %c0_140, %c0_141] : memref<9x8x128xbf16, #tpu.memory_space<vmem>>, vector<1x8x128xbf16>
    %138 = vector.shape_cast %137 : vector<1x8x128xbf16> to vector<8x128xbf16>
    %cst_142 = arith.constant dense<0.000000e+00> : vector<128x128xf32>
    %139 = tpu.matmul %136, %138, %cst_142 {dimension_numbers = #tpu.dot_dimension_numbers<[1], [0], [0], [1], [0, 0, 1, 1], [], []>} : vector<128x8xbf16>, vector<8x128xbf16>, vector<128x128xf32> -> vector<128x128xf32>
    %140 = arith.addf %133, %139 : vector<128x128xf32>
    %141 = arith.truncf %140 : vector<128x128xf32> to vector<128x128xbf16>
    %c0_143 = arith.constant 0 : index
    %c0_144 = arith.constant 0 : index
    %c128 = arith.constant 128 : index
    %142 = vector.load %arg4[%c0_143, %c0_144, %c128] : memref<1x128x256xbf16, #tpu.memory_space<vmem>>, vector<1x128x128xbf16>
    %143 = vector.shape_cast %142 : vector<1x128x128xbf16> to vector<128x128xbf16>
    %144 = vector.shape_cast %141 : vector<128x128xbf16> to vector<1x128x128xbf16>
    tpu.vector_store %arg4[%c0_143, %c0_144, %c128], %144 {strides = array<i32>} : memref<1x128x256xbf16, #tpu.memory_space<vmem>>, vector<1x128x128xbf16>,
    %cst_145 = arith.constant dense<0.000000e+00> : vector<128xf32>
    %145 = vector.multi_reduction <add>, %140, %cst_145 [0] : vector<128x128xf32> to vector<128xf32>
    %146 = vector.shape_cast %145 : vector<128xf32> to vector<1x128xf32>
    %147 = arith.addf %72, %146 : vector<1x128xf32>
    %148 = arith.mulf %140, %140 : vector<128x128xf32>
    %cst_146 = arith.constant dense<0.000000e+00> : vector<128xf32>
    %149 = vector.multi_reduction <add>, %148, %cst_146 [0] : vector<128x128xf32> to vector<128xf32>
    %150 = vector.shape_cast %149 : vector<128xf32> to vector<1x128xf32>
    %151 = arith.addf %76, %150 : vector<1x128xf32>
    %c0_147 = arith.constant 0 : index
    %c0_148 = arith.constant 0 : index
    %c0_149 = arith.constant 0 : index
    %152 = vector.load %arg5[%c0_147, %c0_148, %c0_149] : memref<1x2x128xf32, #tpu.memory_space<vmem>>, vector<1x1x128xf32>
    %153 = vector.shape_cast %152 : vector<1x1x128xf32> to vector<1x128xf32>
    %154 = vector.shape_cast %147 : vector<1x128xf32> to vector<1x1x128xf32>
    tpu.vector_store %arg5[%c0_147, %c0_148, %c0_149], %154 {strides = array<i32>} : memref<1x2x128xf32, #tpu.memory_space<vmem>>, vector<1x1x128xf32>,
    %c0_150 = arith.constant 0 : index
    %c1_151 = arith.constant 1 : index
    %c0_152 = arith.constant 0 : index
    %155 = vector.load %arg5[%c0_150, %c1_151, %c0_152] : memref<1x2x128xf32, #tpu.memory_space<vmem>>, vector<1x1x128xf32>
    %156 = vector.shape_cast %155 : vector<1x1x128xf32> to vector<1x128xf32>
    %157 = vector.shape_cast %151 : vector<1x128xf32> to vector<1x1x128xf32>
    tpu.vector_store %arg5[%c0_150, %c1_151, %c0_152], %157 {strides = array<i32>} : memref<1x2x128xf32, #tpu.memory_space<vmem>>, vector<1x1x128xf32>,
    return
  }
  func.func @transform_0(%arg0: i32) -> (i32, i32, i32, i32) {
    %c0_i32 = arith.constant 0 : i32
    %c0_i32_0 = arith.constant 0 : i32
    %c0_i32_1 = arith.constant 0 : i32
    %c0_i32_2 = arith.constant 0 : i32
    return %arg0, %c0_i32, %c0_i32_0, %c0_i32_1 : i32, i32, i32, i32
  }
  func.func @transform_1(%arg0: i32) -> (i32, i32, i32, i32) {
    %c0_i32 = arith.constant 0 : i32
    %c0_i32_0 = arith.constant 0 : i32
    %c0_i32_1 = arith.constant 0 : i32
    %c0_i32_2 = arith.constant 0 : i32
    return %arg0, %c0_i32, %c0_i32_0, %c0_i32_1 : i32, i32, i32, i32
  }
  func.func @transform_2(%arg0: i32) -> (i32, i32, i32) {
    %c0_i32 = arith.constant 0 : i32
    %c0_i32_0 = arith.constant 0 : i32
    %c0_i32_1 = arith.constant 0 : i32
    %c0_i32_2 = arith.constant 0 : i32
    return %c0_i32, %c0_i32_0, %c0_i32_1 : i32, i32, i32
  }
  func.func @transform_3(%arg0: i32) -> (i32, i32, i32) {
    %c0_i32 = arith.constant 0 : i32
    %c0_i32_0 = arith.constant 0 : i32
    %c0_i32_1 = arith.constant 0 : i32
    return %arg0, %c0_i32, %c0_i32_0 : i32, i32, i32
  }
  func.func @transform_4(%arg0: i32) -> (i32, i32, i32) {
    %c0_i32 = arith.constant 0 : i32
    %c0_i32_0 = arith.constant 0 : i32
    %c0_i32_1 = arith.constant 0 : i32
    return %arg0, %c0_i32, %c0_i32_0 : i32, i32, i32
  }
}

</mosaic_0001>

<llo_original>
// kernel: tpu_custom_call.1
$region0: #{tpu_custom_call.1}
  #allocation0 [shape = 'u32[]', space=smem, size = 0x4, offset = 0x4, fixed_abs, tag = 'smem constant byte address 0x4 - core index']
  #allocation1 [shape = 'u32[72,128]{1,0:T(1,128)}', space=vmem, size = 0x9000, scoped, tag = 'internal scratch']
  %s0 = inlined_call_operand.vmem [shape: bf16[2,18,9,8], index: 0, kind: input, shape index: {}]
  %s1 = inlined_call_operand.vmem [shape: bf16[2,18,9,8], index: 1, kind: input, shape index: {}]
  %s2 = inlined_call_operand.vmem [shape: bf16[9,8,128], index: 2, kind: input, shape index: {}]
  %s3 = inlined_call_operand.hbm [shape: bf16[2,128,256], index: 3, kind: output, shape index: {0}]
  %s4 = inlined_call_operand.hbm [shape: f32[2,2,128], index: 4, kind: output, shape index: {1}]
  %5 = xla_tuple %s3, %s4
  %s6 = sld [smem:[#allocation0]]
  $region53: #{tpu_custom_call.1} parent=0
    _
  %s8 = ssub.s32 1, %s6
  %s9 = scalar_select 0, %s8, %s6
  $region1: #{tpu_custom_call.1} parent=0
    #allocation2 [shape = 'u8[131072]{0}', space=vmem, size = 0x20000, scoped, tag = 'output window, operand 0']
    #allocation3 [shape = 's32[2]{0}', space=sflag, size = 0x8, scoped, tag = 'scoped memory for tpu_custom_call.1']
    #allocation4 [shape = 'u8[2048]{0}', space=vmem, size = 0x800, scoped, tag = 'output window, operand 1']
    #allocation5 [shape = 's32[2]{0}', space=sflag, size = 0x8, scoped, tag = 'scoped memory for tpu_custom_call.1']
    %10 = vsyncpa [#allocation3], 0
    %s11 = scalar_lea.sflag [#allocation3], 1
    %12 = vsyncpa %s11, 0
    %13 = vsyncpa [#allocation5], 0
    %s14 = scalar_lea.sflag [#allocation5], 1
    %15 = vsyncpa %s14, 0
    loop: start=0, step=1, limit=4
    $region2: #{tpu_custom_call.1} parent=1 // loop_pre_header
      _
    $region3: #{tpu_custom_call.1} parent=1 // loop_header
      %s17 = sphi 0, %s21
      %p18 = scmp.ge.s32.totalorder %s17, 4
      %s27 = sphi 0, %s29
      %s30 = sphi 0, %s27
      %s31 = sphi 0, %s30
      %s47 = sphi 0, %s31
      %s53 = sphi 0, %s55
      %s56 = sphi 0, %s53
      %s57 = sphi 0, %s56
      %s73 = sphi 0, %s57
      %s77 = sphi 0, %s77
      %s79 = sphi 0, %s77
      %s80 = sphi 0, %s79
      %s94 = sphi 0, %s80
      %s100 = sphi 0, %s102
      %s103 = sphi 0, %s100
      %s104 = sphi 0, %s103
      %s120 = sphi 0, %s104
      %s126 = sphi 0, %s128
      %s129 = sphi 0, %s126
      %s130 = sphi 0, %s129
      %s146 = sphi 0, %s130
    $region4: #{tpu_custom_call.1} parent=1 // loop_header_branch
      %20 = sbr.rel (%p18) target = $region8
    $region5: #{tpu_custom_call.1} parent=1 // loop_body
      %s22 = ssub.s32 %s17, 1
      %s23 = ssub.s32 %s17, 2
      %s24 = sadd.s32 %s17, 1
      %s25 = ssub.s32 %s17, %s24
      %p26 = scmp.eq.s32.totalorder %s25, 0
      %s28 = sadd.s32 %s27, 1
      %s29 = scalar_select %p26, %s27, %s28
      %p32 = pneg %p26
      %p33 = scmp.eq.s32.totalorder %s17, 1
      %p34 = por %p32, %p33
      %p35 = scmp.ne.s32.totalorder %s27, %s30
      %p36 = scmp.eq.s32.totalorder %s17, 0
      %p37 = por %p35, %p36
      %p38 = scmp.ne.s32.totalorder %s27, %s30
      %p39 = scmp.eq.s32.totalorder %s22, 1
      %p40 = por %p38, %p39
      %p41 = scmp.ne.s32.totalorder %s30, %s31
      %p42 = scmp.eq.s32.totalorder %s22, 0
      %p43 = por %p41, %p42
      %p44 = scmp.ne.s32.totalorder %s30, %s31
      %p45 = scmp.eq.s32.totalorder %s23, 1
      %p46 = por %p44, %p45
      %p48 = scmp.ne.s32.totalorder %s31, %s47
      %p49 = scmp.eq.s32.totalorder %s23, 0
      %p50 = por %p48, %p49
      %s51 = ssub.s32 %s17, %s24
      %p52 = scmp.eq.s32.totalorder %s51, 0
      %s54 = sadd.s32 %s53, 1
      %s55 = scalar_select %p52, %s53, %s54
      %p58 = pneg %p52
      %p59 = scmp.eq.s32.totalorder %s17, 1
      %p60 = por %p58, %p59
      %p61 = scmp.ne.s32.totalorder %s53, %s56
      %p62 = scmp.eq.s32.totalorder %s17, 0
      %p63 = por %p61, %p62
      %p64 = scmp.ne.s32.totalorder %s53, %s56
      %p65 = scmp.eq.s32.totalorder %s22, 1
      %p66 = por %p64, %p65
      %p67 = scmp.ne.s32.totalorder %s56, %s57
      %p68 = scmp.eq.s32.totalorder %s22, 0
      %p69 = por %p67, %p68
      %p70 = scmp.ne.s32.totalorder %s56, %s57
      %p71 = scmp.eq.s32.totalorder %s23, 1
      %p72 = por %p70, %p71
      %p74 = scmp.ne.s32.totalorder %s57, %s73
      %p75 = scmp.eq.s32.totalorder %s23, 0
      %p76 = por %p74, %p75
      %s78 = sadd.s32 %s77, 1
      %p81 = scmp.eq.s32.totalorder %s17, 1
      %p82 = scmp.ne.s32.totalorder %s77, %s79
      %p83 = scmp.eq.s32.totalorder %s17, 0
      %p84 = por %p82, %p83
      %p85 = scmp.ne.s32.totalorder %s77, %s79
      %p86 = scmp.eq.s32.totalorder %s22, 1
      %p87 = por %p85, %p86
      %p88 = scmp.ne.s32.totalorder %s79, %s80
      %p89 = scmp.eq.s32.totalorder %s22, 0
      %p90 = por %p88, %p89
      %p91 = scmp.ne.s32.totalorder %s79, %s80
      %p92 = scmp.eq.s32.totalorder %s23, 1
      %p93 = por %p91, %p92
      %p95 = scmp.ne.s32.totalorder %s80, %s94
      %p96 = scmp.eq.s32.totalorder %s23, 0
      %p97 = por %p95, %p96
      %s98 = ssub.s32 %s17, %s24
      %p99 = scmp.eq.s32.totalorder %s98, 0
      %s101 = sadd.s32 %s100, 1
      %s102 = scalar_select %p99, %s100, %s101
      %p105 = pneg %p99
      %p106 = scmp.eq.s32.totalorder %s17, 1
      %p107 = por %p105, %p106
      %p108 = scmp.ne.s32.totalorder %s100, %s103
      %p109 = scmp.eq.s32.totalorder %s17, 0
      %p110 = por %p108, %p109
      %p111 = scmp.ne.s32.totalorder %s100, %s103
      %p112 = scmp.eq.s32.totalorder %s22, 1
      %p113 = por %p111, %p112
      %p114 = scmp.ne.s32.totalorder %s103, %s104
      %p115 = scmp.eq.s32.totalorder %s22, 0
      %p116 = por %p114, %p115
      %p117 = scmp.ne.s32.totalorder %s103, %s104
      %p118 = scmp.eq.s32.totalorder %s23, 1
      %p119 = por %p117, %p118
      %p121 = scmp.ne.s32.totalorder %s104, %s120
      %p122 = scmp.eq.s32.totalorder %s23, 0
      %p123 = por %p121, %p122
      %s124 = ssub.s32 %s17, %s24
      %p125 = scmp.eq.s32.totalorder %s124, 0
      %s127 = sadd.s32 %s126, 1
      %s128 = scalar_select %p125, %s126, %s127
      %p131 = pneg %p125
      %p132 = scmp.eq.s32.totalorder %s17, 1
      %p133 = por %p131, %p132
      %p134 = scmp.ne.s32.totalorder %s126, %s129
      %p135 = scmp.eq.s32.totalorder %s17, 0
      %p136 = por %p134, %p135
      %p137 = scmp.ne.s32.totalorder %s126, %s129
      %p138 = scmp.eq.s32.totalorder %s22, 1
      %p139 = por %p137, %p138
      %p140 = scmp.ne.s32.totalorder %s129, %s130
      %p141 = scmp.eq.s32.totalorder %s22, 0
      %p142 = por %p140, %p141
      %p143 = scmp.ne.s32.totalorder %s129, %s130
      %p144 = scmp.eq.s32.totalorder %s23, 1
      %p145 = por %p143, %p144
      %p147 = scmp.ne.s32.totalorder %s130, %s146
      %p148 = scmp.eq.s32.totalorder %s23, 0
      %p149 = por %p147, %p148
      %p150 = scmp.le.s32.totalorder 1, %s17
      %p151 = scmp.lt.s32.totalorder %s17, 3
      %p152 = pnand %p150, %p151
      %p153 = pneg %p152
      // Predicated region
      $region9: #{tpu_custom_call.1} parent=5 // pred_check
        _
      $region10: #{tpu_custom_call.1} parent=5 // pred_check_branch
        %155 = sbr.rel (%p152) target = $region12
      $region11: #{tpu_custom_call.1} parent=5 // pred_region
        %s156 = ssub.s32 %s17, 1
        // Predicated region
        $region13: #{tpu_custom_call.1} parent=11 // pred_check
          %p157 = pneg %p90
        $region14: #{tpu_custom_call.1} parent=11 // pred_check_branch
          %159 = sbr.rel (%p157) target = $region16
        $region15: #{tpu_custom_call.1} parent=11 // pred_region
          _
        $region16: #{tpu_custom_call.1} parent=11 // pred_fallthru
          _
      $region12: #{tpu_custom_call.1} parent=5 // pred_fallthru
        _
      %p160 = scmp.lt.s32.totalorder %s17, 2
      // Predicated region
      $region17: #{tpu_custom_call.1} parent=5 // pred_check
        %p161 = pneg %p160
      $region18: #{tpu_custom_call.1} parent=5 // pred_check_branch
        %163 = sbr.rel (%p161) target = $region20
      $region19: #{tpu_custom_call.1} parent=5 // pred_region
        // Predicated region
        $region21: #{tpu_custom_call.1} parent=19 // pred_check
          %p164 = pneg %p37
        $region22: #{tpu_custom_call.1} parent=19 // pred_check_branch
          %166 = sbr.rel (%p164) target = $region24
        $region23: #{tpu_custom_call.1} parent=19 // pred_region
          %p167 = scmp.lt.s32.totalorder %s17, 1
          %s168 = scalar_select %p167, %s17, 1
          %s169 = smul.addr %s168, 36
          %s170 = smul.addr %s169, 4
          %s171 = scalar_lea.vmem %s0, %s170
        $region24: #{tpu_custom_call.1} parent=19 // pred_fallthru
          _
        // Predicated region
        $region25: #{tpu_custom_call.1} parent=19 // pred_check
          %p172 = pneg %p63
        $region26: #{tpu_custom_call.1} parent=19 // pred_check_branch
          %174 = sbr.rel (%p172) target = $region28
        $region27: #{tpu_custom_call.1} parent=19 // pred_region
          %p175 = scmp.lt.s32.totalorder %s17, 1
          %s176 = scalar_select %p175, %s17, 1
          %s177 = smul.addr %s176, 36
          %s178 = smul.addr %s177, 4
          %s179 = scalar_lea.vmem %s1, %s178
        $region28: #{tpu_custom_call.1} parent=19 // pred_fallthru
          _
      $region20: #{tpu_custom_call.1} parent=5 // pred_fallthru
        _
      %p180 = scmp.le.s32.totalorder 1, %s17
      %p181 = scmp.lt.s32.totalorder %s17, 3
      %p182 = pnand %p180, %p181
      %p183 = pneg %p182
      // Predicated region
      $region29: #{tpu_custom_call.1} parent=5 // pred_check
        _
      $region30: #{tpu_custom_call.1} parent=5 // pred_check_branch
        %185 = sbr.rel (%p182) target = $region32
      $region31: #{tpu_custom_call.1} parent=5 // pred_region
        %s186 = ssub.s32 %s17, 1
        %p187 = scmp.lt.s32.totalorder %s22, 1
        %s188 = scalar_select %p187, %s22, 1
        %s189 = smul.addr %s188, 36
        %s190 = smul.addr %s189, 4
        %s191 = scalar_lea.vmem %s0, %s190
        %p192 = pneg %p43
        %p193 = pneg %p40
        %p194 = scmp.lt.s32.totalorder %s22, 1
        %s195 = scalar_select %p194, %s22, 1
        %s196 = smul.addr %s195, 36
        %s197 = smul.addr %s196, 4
        %s198 = scalar_lea.vmem %s1, %s197
        %p199 = pneg %p69
        %p200 = pneg %p66
        %p201 = pneg %p90
        %p202 = pneg %p87
        %p203 = pneg %p116
        %p204 = pneg %p113
        %s205 = sand.u32 %s103, 1
        %s206 = scalar_lea.sflag [#allocation3], %s205
        %s207 = sand.u32 %s103, 1
        %s208 = smul.addr %s207, 128
        %s209 = scalar_lea.vmem [#allocation2], %s208
        %p210 = pneg %p142
        %p211 = pneg %p139
        %s212 = sand.u32 %s129, 1
        %s213 = scalar_lea.sflag [#allocation5], %s212
        %s214 = sand.u32 %s129, 1
        %s215 = smul.addr %s214, 2
        %s216 = scalar_lea.vmem [#allocation4], %s215
        %p217 = scmp.lt.s32.totalorder %s22, 1
        %s218 = scalar_select %p217, %s22, 1
        %s219 = smul.addr %s218, 36
        %s220 = smul.addr %s219, 4
        %s221 = scalar_lea.vmem %s0, %s220
        %p222 = scmp.lt.s32.totalorder %s22, 1
        %s223 = scalar_select %p222, %s22, 1
        %s224 = smul.addr %s223, 36
        %s225 = smul.addr %s224, 4
        %s226 = scalar_lea.vmem %s1, %s225
        %v228 = vld [vmem:[%s221] sm:$0xf]
        %v229 = vld [vmem:[%s221 + $0x8] sm:$0xf]
        %v230 = vld [vmem:[%s221 + $0x10] sm:$0xf]
        %v231 = vld [vmem:[%s221 + $0x18] sm:$0xf]
        %v232 = vld [vmem:[%s221 + $0x20] sm:$0xf]
        %v233 = vld [vmem:[%s221 + $0x28] sm:$0xf]
        %v234 = vld [vmem:[%s221 + $0x30] sm:$0xf]
        %v235 = vld [vmem:[%s221 + $0x38] sm:$0xf]
        %v236 = vld [vmem:[%s221 + $0x40] sm:$0xf]
        %v237 = vld [vmem:[%s221 + $0x48] sm:$0xf]
        %v238 = vld [vmem:[%s221 + $0x50] sm:$0xf]
        %v239 = vld [vmem:[%s221 + $0x58] sm:$0xf]
        %v240 = vld [vmem:[%s221 + $0x60] sm:$0xf]
        %v241 = vld [vmem:[%s221 + $0x68] sm:$0xf]
        %v242 = vld [vmem:[%s221 + $0x70] sm:$0xf]
        %v243 = vld [vmem:[%s221 + $0x78] sm:$0xf]
        %v244 = vld [vmem:[%s2] sm:$0xf]
        %v245 = vld [vmem:[%s226] sm:$0xf]
        %v246 = vld [vmem:[%s226 + $0x8] sm:$0xf]
        %v247 = vld [vmem:[%s226 + $0x10] sm:$0xf]
        %v248 = vld [vmem:[%s226 + $0x18] sm:$0xf]
        %v249 = vld [vmem:[%s226 + $0x20] sm:$0xf]
        %v250 = vld [vmem:[%s226 + $0x28] sm:$0xf]
        %v251 = vld [vmem:[%s226 + $0x30] sm:$0xf]
        %v252 = vld [vmem:[%s226 + $0x38] sm:$0xf]
        %v253 = vld [vmem:[%s226 + $0x40] sm:$0xf]
        %v254 = vld [vmem:[%s226 + $0x48] sm:$0xf]
        %v255 = vld [vmem:[%s226 + $0x50] sm:$0xf]
        %v256 = vld [vmem:[%s226 + $0x58] sm:$0xf]
        %v257 = vld [vmem:[%s226 + $0x60] sm:$0xf]
        %v258 = vld [vmem:[%s226 + $0x68] sm:$0xf]
        %v259 = vld [vmem:[%s226 + $0x70] sm:$0xf]
        %v260 = vld [vmem:[%s226 + $0x78] sm:$0xf]
        %s261 = scalar_lea.vmem %s2, 4
        %v262 = vld [vmem:[%s261] sm:$0xf]
        %v279 = vunpack.c.l.b16 %v245
        %v280 = vunpack.c.l.b16 %v246
        %v281 = vunpack.c.l.b16 %v247
        %v282 = vunpack.c.l.b16 %v248
        %v283 = vunpack.c.l.b16 %v249
        %v284 = vunpack.c.l.b16 %v250
        %v285 = vunpack.c.l.b16 %v251
        %v286 = vunpack.c.l.b16 %v252
        %v287 = vunpack.c.l.b16 %v253
        %v288 = vunpack.c.l.b16 %v254
        %v289 = vunpack.c.l.b16 %v255
        %v290 = vunpack.c.l.b16 %v256
        %v291 = vunpack.c.l.b16 %v257
        %v292 = vunpack.c.l.b16 %v258
        %v293 = vunpack.c.l.b16 %v259
        %v294 = vunpack.c.l.b16 %v260
        %v295 = vpack.c.b16 %v280, %v279
        %v296 = vpack.c.b16 %v282, %v281
        %v297 = vpack.c.b16 %v284, %v283
        %v298 = vpack.c.b16 %v286, %v285
        %v299 = vpack.c.b16 %v288, %v287
        %v300 = vpack.c.b16 %v290, %v289
        %v301 = vpack.c.b16 %v292, %v291
        %v302 = vpack.c.b16 %v294, %v293
        %vm303 = vcmask 64512
        %v305 = vsel %vm303, %v295, 0
        %v308 = vsel %vm303, %v296, 0
        %v311 = vsel %vm303, %v297, 0
        %v314 = vsel %vm303, %v298, 0
        %v317 = vsel %vm303, %v299, 0
        %v320 = vsel %vm303, %v300, 0
        %v323 = vsel %vm303, %v301, 0
        %v326 = vsel %vm303, %v302, 0
        %vm328 = vcmask 1043456
        %v330 = vsel %vm328, %v262, 0
        %332 = vmatpush.bf16.msra.mxu0 0
        %333 = vmatpush.bf16.msra.mxu0 0
        %334 = vmatpush.bf16.msra.mxu0 0
        %335 = vmatpush.bf16.msra.mxu0 0
        %336 = vmatpush.bf16.msra.mxu0 0
        %337 = vmatpush.bf16.msra.mxu0 0
        %338 = vmatpush.bf16.msra.mxu0 0
        %339 = vmatpush.bf16.msra.mxu0 %v330
        %340 = vmatmul.bf16.gmra.mxu0 %v305
        %v341 = vpop.f32.mrf.mxu0
        %v342 = vadd.f32 0.0, %v341
        %v343 = vpop.f32.mrf.mxu0
        %v344 = vadd.f32 0.0, %v343
        %345 = vmatmul.bf16.gmra.mxu0 %v308
        %v346 = vpop.f32.mrf.mxu0
        %v347 = vadd.f32 0.0, %v346
        %v348 = vpop.f32.mrf.mxu0
        %v349 = vadd.f32 0.0, %v348
        %350 = vmatmul.bf16.gmra.mxu0 %v311
        %v351 = vpop.f32.mrf.mxu0
        %v352 = vadd.f32 0.0, %v351
        %v353 = vpop.f32.mrf.mxu0
        %v354 = vadd.f32 0.0, %v353
        %355 = vmatmul.bf16.gmra.mxu0 %v314
        %v356 = vpop.f32.mrf.mxu0
        %v357 = vadd.f32 0.0, %v356
        %v358 = vpop.f32.mrf.mxu0
        %v359 = vadd.f32 0.0, %v358
        %360 = vmatmul.bf16.gmra.mxu0 %v317
        %v361 = vpop.f32.mrf.mxu0
        %v362 = vadd.f32 0.0, %v361
        %v363 = vpop.f32.mrf.mxu0
        %v364 = vadd.f32 0.0, %v363
        %365 = vmatmul.bf16.gmra.mxu0 %v320
        %v366 = vpop.f32.mrf.mxu0
        %v367 = vadd.f32 0.0, %v366
        %v368 = vpop.f32.mrf.mxu0
        %v369 = vadd.f32 0.0, %v368
        %370 = vmatmul.bf16.gmra.mxu0 %v323
        %v371 = vpop.f32.mrf.mxu0
        %v372 = vadd.f32 0.0, %v371
        %v373 = vpop.f32.mrf.mxu0
        %v374 = vadd.f32 0.0, %v373
        %375 = vmatmul.bf16.gmra.mxu0 %v326
        %v376 = vpop.f32.mrf.mxu0
        %v377 = vadd.f32 0.0, %v376
        %v378 = vpop.f32.mrf.mxu0
        %v379 = vadd.f32 0.0, %v378
        %380 = vdwg.mxu0
        %v397 = vunpack.c.l.b16 %v228
        %v398 = vunpack.c.l.b16 %v229
        %v399 = vunpack.c.l.b16 %v230
        %v400 = vunpack.c.l.b16 %v231
        %v401 = vunpack.c.l.b16 %v232
        %v402 = vunpack.c.l.b16 %v233
        %v403 = vunpack.c.l.b16 %v234
        %v404 = vunpack.c.l.b16 %v235
        %v405 = vunpack.c.l.b16 %v236
        %v406 = vunpack.c.l.b16 %v237
        %v407 = vunpack.c.l.b16 %v238
        %v408 = vunpack.c.l.b16 %v239
        %v409 = vunpack.c.l.b16 %v240
        %v410 = vunpack.c.l.b16 %v241
        %v411 = vunpack.c.l.b16 %v242
        %v412 = vunpack.c.l.b16 %v243
        %v413 = vpack.c.b16 %v398, %v397
        %v414 = vpack.c.b16 %v400, %v399
        %v415 = vpack.c.b16 %v402, %v401
        %v416 = vpack.c.b16 %v404, %v403
        %v417 = vpack.c.b16 %v406, %v405
        %v418 = vpack.c.b16 %v408, %v407
        %v419 = vpack.c.b16 %v410, %v409
        %v420 = vpack.c.b16 %v412, %v411
        %v422 = vsel %vm303, %v413, 0
        %v425 = vsel %vm303, %v414, 0
        %v428 = vsel %vm303, %v415, 0
        %v431 = vsel %vm303, %v416, 0
        %v434 = vsel %vm303, %v417, 0
        %v437 = vsel %vm303, %v418, 0
        %v440 = vsel %vm303, %v419, 0
        %v443 = vsel %vm303, %v420, 0
        %v446 = vsel %vm328, %v244, 0
        %448 = vmatpush.bf16.msra.mxu0 0
        %449 = vmatpush.bf16.msra.mxu0 0
        %450 = vmatpush.bf16.msra.mxu0 0
        %451 = vmatpush.bf16.msra.mxu0 0
        %452 = vmatpush.bf16.msra.mxu0 0
        %453 = vmatpush.bf16.msra.mxu0 0
        %454 = vmatpush.bf16.msra.mxu0 0
        %455 = vmatpush.bf16.msra.mxu0 %v446
        %456 = vmatmul.bf16.gmra.mxu0 %v422
        %v457 = vpop.f32.mrf.mxu0
        %v458 = vadd.f32 %v342, %v457
        %v459 = vpop.f32.mrf.mxu0
        %v460 = vadd.f32 %v344, %v459
        %461 = vmatmul.bf16.gmra.mxu0 %v425
        %v462 = vpop.f32.mrf.mxu0
        %v463 = vadd.f32 %v347, %v462
        %v464 = vpop.f32.mrf.mxu0
        %v465 = vadd.f32 %v349, %v464
        %466 = vmatmul.bf16.gmra.mxu0 %v428
        %v467 = vpop.f32.mrf.mxu0
        %v468 = vadd.f32 %v352, %v467
        %v469 = vpop.f32.mrf.mxu0
        %v470 = vadd.f32 %v354, %v469
        %471 = vmatmul.bf16.gmra.mxu0 %v431
        %v472 = vpop.f32.mrf.mxu0
        %v473 = vadd.f32 %v357, %v472
        %v474 = vpop.f32.mrf.mxu0
        %v475 = vadd.f32 %v359, %v474
        %476 = vmatmul.bf16.gmra.mxu0 %v434
        %v477 = vpop.f32.mrf.mxu0
        %v478 = vadd.f32 %v362, %v477
        %v479 = vpop.f32.mrf.mxu0
        %v480 = vadd.f32 %v364, %v479
        %481 = vmatmul.bf16.gmra.mxu0 %v437
        %v482 = vpop.f32.mrf.mxu0
        %v483 = vadd.f32 %v367, %v482
        %v484 = vpop.f32.mrf.mxu0
        %v485 = vadd.f32 %v369, %v484
        %486 = vmatmul.bf16.gmra.mxu0 %v440
        %v487 = vpop.f32.mrf.mxu0
        %v488 = vadd.f32 %v372, %v487
        %v489 = vpop.f32.mrf.mxu0
        %v490 = vadd.f32 %v374, %v489
        %491 = vmatmul.bf16.gmra.mxu0 %v443
        %v492 = vpop.f32.mrf.mxu0
        %v493 = vadd.f32 %v377, %v492
        %v494 = vpop.f32.mrf.mxu0
        %v495 = vadd.f32 %v379, %v494
        %496 = vdwg.mxu0
        %v497 = vld [vmem:[%s221] sm:$0xf]
        %v498 = vld [vmem:[%s221 + $0x4] sm:$0x1]
        %v499 = vld [vmem:[%s221 + $0x8] sm:$0xf]
        %v500 = vld [vmem:[%s221 + $0xc] sm:$0x1]
        %v501 = vld [vmem:[%s221 + $0x10] sm:$0xf]
        %v502 = vld [vmem:[%s221 + $0x14] sm:$0x1]
        %v503 = vld [vmem:[%s221 + $0x18] sm:$0xf]
        %v504 = vld [vmem:[%s221 + $0x1c] sm:$0x1]
        %v505 = vld [vmem:[%s221 + $0x20] sm:$0xf]
        %v506 = vld [vmem:[%s221 + $0x24] sm:$0x1]
        %v507 = vld [vmem:[%s221 + $0x28] sm:$0xf]
        %v508 = vld [vmem:[%s221 + $0x2c] sm:$0x1]
        %v509 = vld [vmem:[%s221 + $0x30] sm:$0xf]
        %v510 = vld [vmem:[%s221 + $0x34] sm:$0x1]
        %v511 = vld [vmem:[%s221 + $0x38] sm:$0xf]
        %v512 = vld [vmem:[%s221 + $0x3c] sm:$0x1]
        %v513 = vld [vmem:[%s221 + $0x40] sm:$0xf]
        %v514 = vld [vmem:[%s221 + $0x44] sm:$0x1]
        %v515 = vld [vmem:[%s221 + $0x48] sm:$0xf]
        %v516 = vld [vmem:[%s221 + $0x4c] sm:$0x1]
        %v517 = vld [vmem:[%s221 + $0x50] sm:$0xf]
        %v518 = vld [vmem:[%s221 + $0x54] sm:$0x1]
        %v519 = vld [vmem:[%s221 + $0x58] sm:$0xf]
        %v520 = vld [vmem:[%s221 + $0x5c] sm:$0x1]
        %v521 = vld [vmem:[%s221 + $0x60] sm:$0xf]
        %v522 = vld [vmem:[%s221 + $0x64] sm:$0x1]
        %v523 = vld [vmem:[%s221 + $0x68] sm:$0xf]
        %v524 = vld [vmem:[%s221 + $0x6c] sm:$0x1]
        %v525 = vld [vmem:[%s221 + $0x70] sm:$0xf]
        %v526 = vld [vmem:[%s221 + $0x74] sm:$0x1]
        %v527 = vld [vmem:[%s221 + $0x78] sm:$0xf]
        %v528 = vld [vmem:[%s221 + $0x7c] sm:$0x1]
        %vm529 = vsmask.f32 3328
        %vm530 = vsmask.f32 7440
        %vm531 = vmor %vm529, %vm530
        %v533 = vshrl.u32 %v497, 16
        %v535 = vrot.slane %v533, 4
        %v536 = vshll.u32 %v497, 16
        %v538 = vrot.slane %v536, 5
        %v539 = vor.u32 %v535, %v538
        %v540 = vrot.slane %v539, 4
        %v542 = vshll.u32 %v498, 16
        %v544 = vrot.slane %v542, 5
        %v545 = vsel %vm531, %v540, %v544
        %v547 = vshrl.u32 %v499, 16
        %v549 = vrot.slane %v547, 4
        %v550 = vshll.u32 %v499, 16
        %v552 = vrot.slane %v550, 5
        %v553 = vor.u32 %v549, %v552
        %v554 = vrot.slane %v553, 4
        %v556 = vshll.u32 %v500, 16
        %v558 = vrot.slane %v556, 5
        %v559 = vsel %vm531, %v554, %v558
        %v561 = vshrl.u32 %v501, 16
        %v563 = vrot.slane %v561, 4
        %v564 = vshll.u32 %v501, 16
        %v566 = vrot.slane %v564, 5
        %v567 = vor.u32 %v563, %v566
        %v568 = vrot.slane %v567, 4
        %v570 = vshll.u32 %v502, 16
        %v572 = vrot.slane %v570, 5
        %v573 = vsel %vm531, %v568, %v572
        %v575 = vshrl.u32 %v503, 16
        %v577 = vrot.slane %v575, 4
        %v578 = vshll.u32 %v503, 16
        %v580 = vrot.slane %v578, 5
        %v581 = vor.u32 %v577, %v580
        %v582 = vrot.slane %v581, 4
        %v584 = vshll.u32 %v504, 16
        %v586 = vrot.slane %v584, 5
        %v587 = vsel %vm531, %v582, %v586
        %v589 = vshrl.u32 %v505, 16
        %v591 = vrot.slane %v589, 4
        %v592 = vshll.u32 %v505, 16
        %v594 = vrot.slane %v592, 5
        %v595 = vor.u32 %v591, %v594
        %v596 = vrot.slane %v595, 4
        %v598 = vshll.u32 %v506, 16
        %v600 = vrot.slane %v598, 5
        %v601 = vsel %vm531, %v596, %v600
        %v603 = vshrl.u32 %v507, 16
        %v605 = vrot.slane %v603, 4
        %v606 = vshll.u32 %v507, 16
        %v608 = vrot.slane %v606, 5
        %v609 = vor.u32 %v605, %v608
        %v610 = vrot.slane %v609, 4
        %v612 = vshll.u32 %v508, 16
        %v614 = vrot.slane %v612, 5
        %v615 = vsel %vm531, %v610, %v614
        %v617 = vshrl.u32 %v509, 16
        %v619 = vrot.slane %v617, 4
        %v620 = vshll.u32 %v509, 16
        %v622 = vrot.slane %v620, 5
        %v623 = vor.u32 %v619, %v622
        %v624 = vrot.slane %v623, 4
        %v626 = vshll.u32 %v510, 16
        %v628 = vrot.slane %v626, 5
        %v629 = vsel %vm531, %v624, %v628
        %v631 = vshrl.u32 %v511, 16
        %v633 = vrot.slane %v631, 4
        %v634 = vshll.u32 %v511, 16
        %v636 = vrot.slane %v634, 5
        %v637 = vor.u32 %v633, %v636
        %v638 = vrot.slane %v637, 4
        %v640 = vshll.u32 %v512, 16
        %v642 = vrot.slane %v640, 5
        %v643 = vsel %vm531, %v638, %v642
        %v645 = vshrl.u32 %v513, 16
        %v647 = vrot.slane %v645, 4
        %v648 = vshll.u32 %v513, 16
        %v650 = vrot.slane %v648, 5
        %v651 = vor.u32 %v647, %v650
        %v652 = vrot.slane %v651, 4
        %v654 = vshll.u32 %v514, 16
        %v656 = vrot.slane %v654, 5
        %v657 = vsel %vm531, %v652, %v656
        %v659 = vshrl.u32 %v515, 16
        %v661 = vrot.slane %v659, 4
        %v662 = vshll.u32 %v515, 16
        %v664 = vrot.slane %v662, 5
        %v665 = vor.u32 %v661, %v664
        %v666 = vrot.slane %v665, 4
        %v668 = vshll.u32 %v516, 16
        %v670 = vrot.slane %v668, 5
        %v671 = vsel %vm531, %v666, %v670
        %v673 = vshrl.u32 %v517, 16
        %v675 = vrot.slane %v673, 4
        %v676 = vshll.u32 %v517, 16
        %v678 = vrot.slane %v676, 5
        %v679 = vor.u32 %v675, %v678
        %v680 = vrot.slane %v679, 4
        %v682 = vshll.u32 %v518, 16
        %v684 = vrot.slane %v682, 5
        %v685 = vsel %vm531, %v680, %v684
        %v687 = vshrl.u32 %v519, 16
        %v689 = vrot.slane %v687, 4
        %v690 = vshll.u32 %v519, 16
        %v692 = vrot.slane %v690, 5
        %v693 = vor.u32 %v689, %v692
        %v694 = vrot.slane %v693, 4
        %v696 = vshll.u32 %v520, 16
        %v698 = vrot.slane %v696, 5
        %v699 = vsel %vm531, %v694, %v698
        %v701 = vshrl.u32 %v521, 16
        %v703 = vrot.slane %v701, 4
        %v704 = vshll.u32 %v521, 16
        %v706 = vrot.slane %v704, 5
        %v707 = vor.u32 %v703, %v706
        %v708 = vrot.slane %v707, 4
        %v710 = vshll.u32 %v522, 16
        %v712 = vrot.slane %v710, 5
        %v713 = vsel %vm531, %v708, %v712
        %v715 = vshrl.u32 %v523, 16
        %v717 = vrot.slane %v715, 4
        %v718 = vshll.u32 %v523, 16
        %v720 = vrot.slane %v718, 5
        %v721 = vor.u32 %v717, %v720
        %v722 = vrot.slane %v721, 4
        %v724 = vshll.u32 %v524, 16
        %v726 = vrot.slane %v724, 5
        %v727 = vsel %vm531, %v722, %v726
        %v729 = vshrl.u32 %v525, 16
        %v731 = vrot.slane %v729, 4
        %v732 = vshll.u32 %v525, 16
        %v734 = vrot.slane %v732, 5
        %v735 = vor.u32 %v731, %v734
        %v736 = vrot.slane %v735, 4
        %v738 = vshll.u32 %v526, 16
        %v740 = vrot.slane %v738, 5
        %v741 = vsel %vm531, %v736, %v740
        %v743 = vshrl.u32 %v527, 16
        %v745 = vrot.slane %v743, 4
        %v746 = vshll.u32 %v527, 16
        %v748 = vrot.slane %v746, 5
        %v749 = vor.u32 %v745, %v748
        %v750 = vrot.slane %v749, 4
        %v752 = vshll.u32 %v528, 16
        %v754 = vrot.slane %v752, 5
        %v755 = vsel %vm531, %v750, %v754
        %s756 = scalar_lea.vmem %s2, 8
        %v757 = vld [vmem:[%s756] sm:$0xf]
        %v758 = vunpack.c.l.b16 %v545
        %v759 = vunpack.c.l.b16 %v559
        %v760 = vunpack.c.l.b16 %v573
        %v761 = vunpack.c.l.b16 %v587
        %v762 = vunpack.c.l.b16 %v601
        %v763 = vunpack.c.l.b16 %v615
        %v764 = vunpack.c.l.b16 %v629
        %v765 = vunpack.c.l.b16 %v643
        %v766 = vunpack.c.l.b16 %v657
        %v767 = vunpack.c.l.b16 %v671
        %v768 = vunpack.c.l.b16 %v685
        %v769 = vunpack.c.l.b16 %v699
        %v770 = vunpack.c.l.b16 %v713
        %v771 = vunpack.c.l.b16 %v727
        %v772 = vunpack.c.l.b16 %v741
        %v773 = vunpack.c.l.b16 %v755
        %v774 = vpack.c.b16 %v759, %v758
        %v775 = vpack.c.b16 %v761, %v760
        %v776 = vpack.c.b16 %v763, %v762
        %v777 = vpack.c.b16 %v765, %v764
        %v778 = vpack.c.b16 %v767, %v766
        %v779 = vpack.c.b16 %v769, %v768
        %v780 = vpack.c.b16 %v771, %v770
        %v781 = vpack.c.b16 %v773, %v772
        %v783 = vsel %vm303, %v774, 0
        %v786 = vsel %vm303, %v775, 0
        %v789 = vsel %vm303, %v776, 0
        %v792 = vsel %vm303, %v777, 0
        %v795 = vsel %vm303, %v778, 0
        %v798 = vsel %vm303, %v779, 0
        %v801 = vsel %vm303, %v780, 0
        %v804 = vsel %vm303, %v781, 0
        %v807 = vsel %vm328, %v757, 0
        %809 = vmatpush.bf16.msra.mxu0 0
        %810 = vmatpush.bf16.msra.mxu0 0
        %811 = vmatpush.bf16.msra.mxu0 0
        %812 = vmatpush.bf16.msra.mxu0 0
        %813 = vmatpush.bf16.msra.mxu0 0
        %814 = vmatpush.bf16.msra.mxu0 0
        %815 = vmatpush.bf16.msra.mxu0 0
        %816 = vmatpush.bf16.msra.mxu0 %v807
        %817 = vmatmul.bf16.gmra.mxu0 %v783
        %v818 = vpop.f32.mrf.mxu0
        %v819 = vadd.f32 0.0, %v818
        %v820 = vpop.f32.mrf.mxu0
        %v821 = vadd.f32 0.0, %v820
        %822 = vmatmul.bf16.gmra.mxu0 %v786
        %v823 = vpop.f32.mrf.mxu0
        %v824 = vadd.f32 0.0, %v823
        %v825 = vpop.f32.mrf.mxu0
        %v826 = vadd.f32 0.0, %v825
        %827 = vmatmul.bf16.gmra.mxu0 %v789
        %v828 = vpop.f32.mrf.mxu0
        %v829 = vadd.f32 0.0, %v828
        %v830 = vpop.f32.mrf.mxu0
        %v831 = vadd.f32 0.0, %v830
        %832 = vmatmul.bf16.gmra.mxu0 %v792
        %v833 = vpop.f32.mrf.mxu0
        %v834 = vadd.f32 0.0, %v833
        %v835 = vpop.f32.mrf.mxu0
        %v836 = vadd.f32 0.0, %v835
        %837 = vmatmul.bf16.gmra.mxu0 %v795
        %v838 = vpop.f32.mrf.mxu0
        %v839 = vadd.f32 0.0, %v838
        %v840 = vpop.f32.mrf.mxu0
        %v841 = vadd.f32 0.0, %v840
        %842 = vmatmul.bf16.gmra.mxu0 %v798
        %v843 = vpop.f32.mrf.mxu0
        %v844 = vadd.f32 0.0, %v843
        %v845 = vpop.f32.mrf.mxu0
        %v846 = vadd.f32 0.0, %v845
        %847 = vmatmul.bf16.gmra.mxu0 %v801
        %v848 = vpop.f32.mrf.mxu0
        %v849 = vadd.f32 0.0, %v848
        %v850 = vpop.f32.mrf.mxu0
        %v851 = vadd.f32 0.0, %v850
        %852 = vmatmul.bf16.gmra.mxu0 %v804
        %v853 = vpop.f32.mrf.mxu0
        %v854 = vadd.f32 0.0, %v853
        %v855 = vpop.f32.mrf.mxu0
        %v856 = vadd.f32 0.0, %v855
        %857 = vdwg.mxu0
        %v858 = vadd.f32 %v458, %v819
        %v859 = vadd.f32 %v460, %v821
        %v860 = vadd.f32 %v463, %v824
        %v861 = vadd.f32 %v465, %v826
        %v862 = vadd.f32 %v468, %v829
        %v863 = vadd.f32 %v470, %v831
        %v864 = vadd.f32 %v473, %v834
        %v865 = vadd.f32 %v475, %v836
        %v866 = vadd.f32 %v478, %v839
        %v867 = vadd.f32 %v480, %v841
        %v868 = vadd.f32 %v483, %v844
        %v869 = vadd.f32 %v485, %v846
        %v870 = vadd.f32 %v488, %v849
        %v871 = vadd.f32 %v490, %v851
        %v872 = vadd.f32 %v493, %v854
        %v873 = vadd.f32 %v495, %v856
        %s874 = scalar_lea.vmem %s221, 8
        %v875 = vld [vmem:[%s874] sm:$0xf]
        %v876 = vld [vmem:[%s874 + $0x8] sm:$0xf]
        %v877 = vld [vmem:[%s874 + $0x10] sm:$0xf]
        %v878 = vld [vmem:[%s874 + $0x18] sm:$0xf]
        %v879 = vld [vmem:[%s874 + $0x20] sm:$0xf]
        %v880 = vld [vmem:[%s874 + $0x28] sm:$0xf]
        %v881 = vld [vmem:[%s874 + $0x30] sm:$0xf]
        %v882 = vld [vmem:[%s874 + $0x38] sm:$0xf]
        %v883 = vld [vmem:[%s874 + $0x40] sm:$0xf]
        %v884 = vld [vmem:[%s874 + $0x48] sm:$0xf]
        %v885 = vld [vmem:[%s874 + $0x50] sm:$0xf]
        %v886 = vld [vmem:[%s874 + $0x58] sm:$0xf]
        %v887 = vld [vmem:[%s874 + $0x60] sm:$0xf]
        %v888 = vld [vmem:[%s874 + $0x68] sm:$0xf]
        %v889 = vld [vmem:[%s874 + $0x70] sm:$0xf]
        %v890 = vld [vmem:[%s874 + $0x78] sm:$0xf]
        %s891 = scalar_lea.vmem %s2, 12
        %v892 = vld [vmem:[%s891] sm:$0xf]
        %v909 = vunpack.c.l.b16 %v875
        %v910 = vunpack.c.l.b16 %v876
        %v911 = vunpack.c.l.b16 %v877
        %v912 = vunpack.c.l.b16 %v878
        %v913 = vunpack.c.l.b16 %v879
        %v914 = vunpack.c.l.b16 %v880
        %v915 = vunpack.c.l.b16 %v881
        %v916 = vunpack.c.l.b16 %v882
        %v917 = vunpack.c.l.b16 %v883
        %v918 = vunpack.c.l.b16 %v884
        %v919 = vunpack.c.l.b16 %v885
        %v920 = vunpack.c.l.b16 %v886
        %v921 = vunpack.c.l.b16 %v887
        %v922 = vunpack.c.l.b16 %v888
        %v923 = vunpack.c.l.b16 %v889
        %v924 = vunpack.c.l.b16 %v890
        %v925 = vpack.c.b16 %v910, %v909
        %v926 = vpack.c.b16 %v912, %v911
        %v927 = vpack.c.b16 %v914, %v913
        %v928 = vpack.c.b16 %v916, %v915
        %v929 = vpack.c.b16 %v918, %v917
        %v930 = vpack.c.b16 %v920, %v919
        %v931 = vpack.c.b16 %v922, %v921
        %v932 = vpack.c.b16 %v924, %v923
        %v934 = vsel %vm303, %v925, 0
        %v937 = vsel %vm303, %v926, 0
        %v940 = vsel %vm303, %v927, 0
        %v943 = vsel %vm303, %v928, 0
        %v946 = vsel %vm303, %v929, 0
        %v949 = vsel %vm303, %v930, 0
        %v952 = vsel %vm303, %v931, 0
        %v955 = vsel %vm303, %v932, 0
        %v958 = vsel %vm328, %v892, 0
        %960 = vmatpush.bf16.msra.mxu0 0
        %961 = vmatpush.bf16.msra.mxu0 0
        %962 = vmatpush.bf16.msra.mxu0 0
        %963 = vmatpush.bf16.msra.mxu0 0
        %964 = vmatpush.bf16.msra.mxu0 0
        %965 = vmatpush.bf16.msra.mxu0 0
        %966 = vmatpush.bf16.msra.mxu0 0
        %967 = vmatpush.bf16.msra.mxu0 %v958
        %968 = vmatmul.bf16.gmra.mxu0 %v934
        %v969 = vpop.f32.mrf.mxu0
        %v970 = vadd.f32 0.0, %v969
        %v971 = vpop.f32.mrf.mxu0
        %v972 = vadd.f32 0.0, %v971
        %973 = vmatmul.bf16.gmra.mxu0 %v937
        %v974 = vpop.f32.mrf.mxu0
        %v975 = vadd.f32 0.0, %v974
        %v976 = vpop.f32.mrf.mxu0
        %v977 = vadd.f32 0.0, %v976
        %978 = vmatmul.bf16.gmra.mxu0 %v940
        %v979 = vpop.f32.mrf.mxu0
        %v980 = vadd.f32 0.0, %v979
        %v981 = vpop.f32.mrf.mxu0
        %v982 = vadd.f32 0.0, %v981
        %983 = vmatmul.bf16.gmra.mxu0 %v943
        %v984 = vpop.f32.mrf.mxu0
        %v985 = vadd.f32 0.0, %v984
        %v986 = vpop.f32.mrf.mxu0
        %v987 = vadd.f32 0.0, %v986
        %988 = vmatmul.bf16.gmra.mxu0 %v946
        %v989 = vpop.f32.mrf.mxu0
        %v990 = vadd.f32 0.0, %v989
        %v991 = vpop.f32.mrf.mxu0
        %v992 = vadd.f32 0.0, %v991
        %993 = vmatmul.bf16.gmra.mxu0 %v949
        %v994 = vpop.f32.mrf.mxu0
        %v995 = vadd.f32 0.0, %v994
        %v996 = vpop.f32.mrf.mxu0
        %v997 = vadd.f32 0.0, %v996
        %998 = vmatmul.bf16.gmra.mxu0 %v952
        %v999 = vpop.f32.mrf.mxu0
        %v1000 = vadd.f32 0.0, %v999
        %v1001 = vpop.f32.mrf.mxu0
        %v1002 = vadd.f32 0.0, %v1001
        %1003 = vmatmul.bf16.gmra.mxu0 %v955
        %v1004 = vpop.f32.mrf.mxu0
        %v1005 = vadd.f32 0.0, %v1004
        %v1006 = vpop.f32.mrf.mxu0
        %v1007 = vadd.f32 0.0, %v1006
        %1008 = vdwg.mxu0
        %v1009 = vadd.f32 %v858, %v970
        %v1010 = vadd.f32 %v859, %v972
        %v1011 = vadd.f32 %v860, %v975
        %v1012 = vadd.f32 %v861, %v977
        %v1013 = vadd.f32 %v862, %v980
        %v1014 = vadd.f32 %v863, %v982
        %v1015 = vadd.f32 %v864, %v985
        %v1016 = vadd.f32 %v865, %v987
        %v1017 = vadd.f32 %v866, %v990
        %v1018 = vadd.f32 %v867, %v992
        %v1019 = vadd.f32 %v868, %v995
        %v1020 = vadd.f32 %v869, %v997
        %v1021 = vadd.f32 %v870, %v1000
        %v1022 = vadd.f32 %v871, %v1002
        %v1023 = vadd.f32 %v872, %v1005
        %v1024 = vadd.f32 %v873, %v1007
        %s1025 = scalar_lea.vmem %s226, 8
        %v1026 = vld [vmem:[%s1025] sm:$0xf]
        %v1027 = vld [vmem:[%s1025 + $0x8] sm:$0xf]
        %v1028 = vld [vmem:[%s1025 + $0x10] sm:$0xf]
        %v1029 = vld [vmem:[%s1025 + $0x18] sm:$0xf]
        %v1030 = vld [vmem:[%s1025 + $0x20] sm:$0xf]
        %v1031 = vld [vmem:[%s1025 + $0x28] sm:$0xf]
        %v1032 = vld [vmem:[%s1025 + $0x30] sm:$0xf]
        %v1033 = vld [vmem:[%s1025 + $0x38] sm:$0xf]
        %v1034 = vld [vmem:[%s1025 + $0x40] sm:$0xf]
        %v1035 = vld [vmem:[%s1025 + $0x48] sm:$0xf]
        %v1036 = vld [vmem:[%s1025 + $0x50] sm:$0xf]
        %v1037 = vld [vmem:[%s1025 + $0x58] sm:$0xf]
        %v1038 = vld [vmem:[%s1025 + $0x60] sm:$0xf]
        %v1039 = vld [vmem:[%s1025 + $0x68] sm:$0xf]
        %v1040 = vld [vmem:[%s1025 + $0x70] sm:$0xf]
        %v1041 = vld [vmem:[%s1025 + $0x78] sm:$0xf]
        %s1042 = scalar_lea.vmem %s2, 16
        %v1043 = vld [vmem:[%s1042] sm:$0xf]
        %v1060 = vunpack.c.l.b16 %v1026
        %v1061 = vunpack.c.l.b16 %v1027
        %v1062 = vunpack.c.l.b16 %v1028
        %v1063 = vunpack.c.l.b16 %v1029
        %v1064 = vunpack.c.l.b16 %v1030
        %v1065 = vunpack.c.l.b16 %v1031
        %v1066 = vunpack.c.l.b16 %v1032
        %v1067 = vunpack.c.l.b16 %v1033
        %v1068 = vunpack.c.l.b16 %v1034
        %v1069 = vunpack.c.l.b16 %v1035
        %v1070 = vunpack.c.l.b16 %v1036
        %v1071 = vunpack.c.l.b16 %v1037
        %v1072 = vunpack.c.l.b16 %v1038
        %v1073 = vunpack.c.l.b16 %v1039
        %v1074 = vunpack.c.l.b16 %v1040
        %v1075 = vunpack.c.l.b16 %v1041
        %v1076 = vpack.c.b16 %v1061, %v1060
        %v1077 = vpack.c.b16 %v1063, %v1062
        %v1078 = vpack.c.b16 %v1065, %v1064
        %v1079 = vpack.c.b16 %v1067, %v1066
        %v1080 = vpack.c.b16 %v1069, %v1068
        %v1081 = vpack.c.b16 %v1071, %v1070
        %v1082 = vpack.c.b16 %v1073, %v1072
        %v1083 = vpack.c.b16 %v1075, %v1074
        %v1085 = vsel %vm303, %v1076, 0
        %v1088 = vsel %vm303, %v1077, 0
        %v1091 = vsel %vm303, %v1078, 0
        %v1094 = vsel %vm303, %v1079, 0
        %v1097 = vsel %vm303, %v1080, 0
        %v1100 = vsel %vm303, %v1081, 0
        %v1103 = vsel %vm303, %v1082, 0
        %v1106 = vsel %vm303, %v1083, 0
        %v1109 = vsel %vm328, %v1043, 0
        %1111 = vmatpush.bf16.msra.mxu0 0
        %1112 = vmatpush.bf16.msra.mxu0 0
        %1113 = vmatpush.bf16.msra.mxu0 0
        %1114 = vmatpush.bf16.msra.mxu0 0
        %1115 = vmatpush.bf16.msra.mxu0 0
        %1116 = vmatpush.bf16.msra.mxu0 0
        %1117 = vmatpush.bf16.msra.mxu0 0
        %1118 = vmatpush.bf16.msra.mxu0 %v1109
        %1119 = vmatmul.bf16.gmra.mxu0 %v1085
        %v1120 = vpop.f32.mrf.mxu0
        %v1121 = vadd.f32 0.0, %v1120
        %v1122 = vpop.f32.mrf.mxu0
        %v1123 = vadd.f32 0.0, %v1122
        %1124 = vmatmul.bf16.gmra.mxu0 %v1088
        %v1125 = vpop.f32.mrf.mxu0
        %v1126 = vadd.f32 0.0, %v1125
        %v1127 = vpop.f32.mrf.mxu0
        %v1128 = vadd.f32 0.0, %v1127
        %1129 = vmatmul.bf16.gmra.mxu0 %v1091
        %v1130 = vpop.f32.mrf.mxu0
        %v1131 = vadd.f32 0.0, %v1130
        %v1132 = vpop.f32.mrf.mxu0
        %v1133 = vadd.f32 0.0, %v1132
        %1134 = vmatmul.bf16.gmra.mxu0 %v1094
        %v1135 = vpop.f32.mrf.mxu0
        %v1136 = vadd.f32 0.0, %v1135
        %v1137 = vpop.f32.mrf.mxu0
        %v1138 = vadd.f32 0.0, %v1137
        %1139 = vmatmul.bf16.gmra.mxu0 %v1097
        %v1140 = vpop.f32.mrf.mxu0
        %v1141 = vadd.f32 0.0, %v1140
        %v1142 = vpop.f32.mrf.mxu0
        %v1143 = vadd.f32 0.0, %v1142
        %1144 = vmatmul.bf16.gmra.mxu0 %v1100
        %v1145 = vpop.f32.mrf.mxu0
        %v1146 = vadd.f32 0.0, %v1145
        %v1147 = vpop.f32.mrf.mxu0
        %v1148 = vadd.f32 0.0, %v1147
        %1149 = vmatmul.bf16.gmra.mxu0 %v1103
        %v1150 = vpop.f32.mrf.mxu0
        %v1151 = vadd.f32 0.0, %v1150
        %v1152 = vpop.f32.mrf.mxu0
        %v1153 = vadd.f32 0.0, %v1152
        %1154 = vmatmul.bf16.gmra.mxu0 %v1106
        %v1155 = vpop.f32.mrf.mxu0
        %v1156 = vadd.f32 0.0, %v1155
        %v1157 = vpop.f32.mrf.mxu0
        %v1158 = vadd.f32 0.0, %v1157
        %1159 = vdwg.mxu0
        %v1160 = vadd.f32 %v1009, %v1121
        %v1161 = vadd.f32 %v1010, %v1123
        %v1162 = vadd.f32 %v1011, %v1126
        %v1163 = vadd.f32 %v1012, %v1128
        %v1164 = vadd.f32 %v1013, %v1131
        %v1165 = vadd.f32 %v1014, %v1133
        %v1166 = vadd.f32 %v1015, %v1136
        %v1167 = vadd.f32 %v1016, %v1138
        %v1168 = vadd.f32 %v1017, %v1141
        %v1169 = vadd.f32 %v1018, %v1143
        %v1170 = vadd.f32 %v1019, %v1146
        %v1171 = vadd.f32 %v1020, %v1148
        %v1172 = vadd.f32 %v1021, %v1151
        %v1173 = vadd.f32 %v1022, %v1153
        %v1174 = vadd.f32 %v1023, %v1156
        %v1175 = vadd.f32 %v1024, %v1158
        %v1176 = vld [vmem:[%s874] sm:$0xf]
        %v1177 = vld [vmem:[%s874 + $0x4] sm:$0x1]
        %v1178 = vld [vmem:[%s874 + $0x8] sm:$0xf]
        %v1179 = vld [vmem:[%s874 + $0xc] sm:$0x1]
        %v1180 = vld [vmem:[%s874 + $0x10] sm:$0xf]
        %v1181 = vld [vmem:[%s874 + $0x14] sm:$0x1]
        %v1182 = vld [vmem:[%s874 + $0x18] sm:$0xf]
        %v1183 = vld [vmem:[%s874 + $0x1c] sm:$0x1]
        %v1184 = vld [vmem:[%s874 + $0x20] sm:$0xf]
        %v1185 = vld [vmem:[%s874 + $0x24] sm:$0x1]
        %v1186 = vld [vmem:[%s874 + $0x28] sm:$0xf]
        %v1187 = vld [vmem:[%s874 + $0x2c] sm:$0x1]
        %v1188 = vld [vmem:[%s874 + $0x30] sm:$0xf]
        %v1189 = vld [vmem:[%s874 + $0x34] sm:$0x1]
        %v1190 = vld [vmem:[%s874 + $0x38] sm:$0xf]
        %v1191 = vld [vmem:[%s874 + $0x3c] sm:$0x1]
        %v1192 = vld [vmem:[%s874 + $0x40] sm:$0xf]
        %v1193 = vld [vmem:[%s874 + $0x44] sm:$0x1]
        %v1194 = vld [vmem:[%s874 + $0x48] sm:$0xf]
        %v1195 = vld [vmem:[%s874 + $0x4c] sm:$0x1]
        %v1196 = vld [vmem:[%s874 + $0x50] sm:$0xf]
        %v1197 = vld [vmem:[%s874 + $0x54] sm:$0x1]
        %v1198 = vld [vmem:[%s874 + $0x58] sm:$0xf]
        %v1199 = vld [vmem:[%s874 + $0x5c] sm:$0x1]
        %v1200 = vld [vmem:[%s874 + $0x60] sm:$0xf]
        %v1201 = vld [vmem:[%s874 + $0x64] sm:$0x1]
        %v1202 = vld [vmem:[%s874 + $0x68] sm:$0xf]
        %v1203 = vld [vmem:[%s874 + $0x6c] sm:$0x1]
        %v1204 = vld [vmem:[%s874 + $0x70] sm:$0xf]
        %v1205 = vld [vmem:[%s874 + $0x74] sm:$0x1]
        %v1206 = vld [vmem:[%s874 + $0x78] sm:$0xf]
        %v1207 = vld [vmem:[%s874 + $0x7c] sm:$0x1]
        %v1209 = vshrl.u32 %v1176, 16
        %v1211 = vrot.slane %v1209, 4
        %v1212 = vshll.u32 %v1176, 16
        %v1214 = vrot.slane %v1212, 5
        %v1215 = vor.u32 %v1211, %v1214
        %v1216 = vrot.slane %v1215, 4
        %v1218 = vshll.u32 %v1177, 16
        %v1220 = vrot.slane %v1218, 5
        %v1221 = vsel %vm531, %v1216, %v1220
        %v1223 = vshrl.u32 %v1178, 16
        %v1225 = vrot.slane %v1223, 4
        %v1226 = vshll.u32 %v1178, 16
        %v1228 = vrot.slane %v1226, 5
        %v1229 = vor.u32 %v1225, %v1228
        %v1230 = vrot.slane %v1229, 4
        %v1232 = vshll.u32 %v1179, 16
        %v1234 = vrot.slane %v1232, 5
        %v1235 = vsel %vm531, %v1230, %v1234
        %v1237 = vshrl.u32 %v1180, 16
        %v1239 = vrot.slane %v1237, 4
        %v1240 = vshll.u32 %v1180, 16
        %v1242 = vrot.slane %v1240, 5
        %v1243 = vor.u32 %v1239, %v1242
        %v1244 = vrot.slane %v1243, 4
        %v1246 = vshll.u32 %v1181, 16
        %v1248 = vrot.slane %v1246, 5
        %v1249 = vsel %vm531, %v1244, %v1248
        %v1251 = vshrl.u32 %v1182, 16
        %v1253 = vrot.slane %v1251, 4
        %v1254 = vshll.u32 %v1182, 16
        %v1256 = vrot.slane %v1254, 5
        %v1257 = vor.u32 %v1253, %v1256
        %v1258 = vrot.slane %v1257, 4
        %v1260 = vshll.u32 %v1183, 16
        %v1262 = vrot.slane %v1260, 5
        %v1263 = vsel %vm531, %v1258, %v1262
        %v1265 = vshrl.u32 %v1184, 16
        %v1267 = vrot.slane %v1265, 4
        %v1268 = vshll.u32 %v1184, 16
        %v1270 = vrot.slane %v1268, 5
        %v1271 = vor.u32 %v1267, %v1270
        %v1272 = vrot.slane %v1271, 4
        %v1274 = vshll.u32 %v1185, 16
        %v1276 = vrot.slane %v1274, 5
        %v1277 = vsel %vm531, %v1272, %v1276
        %v1279 = vshrl.u32 %v1186, 16
        %v1281 = vrot.slane %v1279, 4
        %v1282 = vshll.u32 %v1186, 16
        %v1284 = vrot.slane %v1282, 5
        %v1285 = vor.u32 %v1281, %v1284
        %v1286 = vrot.slane %v1285, 4
        %v1288 = vshll.u32 %v1187, 16
        %v1290 = vrot.slane %v1288, 5
        %v1291 = vsel %vm531, %v1286, %v1290
        %v1293 = vshrl.u32 %v1188, 16
        %v1295 = vrot.slane %v1293, 4
        %v1296 = vshll.u32 %v1188, 16
        %v1298 = vrot.slane %v1296, 5
        %v1299 = vor.u32 %v1295, %v1298
        %v1300 = vrot.slane %v1299, 4
        %v1302 = vshll.u32 %v1189, 16
        %v1304 = vrot.slane %v1302, 5
        %v1305 = vsel %vm531, %v1300, %v1304
        %v1307 = vshrl.u32 %v1190, 16
        %v1309 = vrot.slane %v1307, 4
        %v1310 = vshll.u32 %v1190, 16
        %v1312 = vrot.slane %v1310, 5
        %v1313 = vor.u32 %v1309, %v1312
        %v1314 = vrot.slane %v1313, 4
        %v1316 = vshll.u32 %v1191, 16
        %v1318 = vrot.slane %v1316, 5
        %v1319 = vsel %vm531, %v1314, %v1318
        %v1321 = vshrl.u32 %v1192, 16
        %v1323 = vrot.slane %v1321, 4
        %v1324 = vshll.u32 %v1192, 16
        %v1326 = vrot.slane %v1324, 5
        %v1327 = vor.u32 %v1323, %v1326
        %v1328 = vrot.slane %v1327, 4
        %v1330 = vshll.u32 %v1193, 16
        %v1332 = vrot.slane %v1330, 5
        %v1333 = vsel %vm531, %v1328, %v1332
        %v1335 = vshrl.u32 %v1194, 16
        %v1337 = vrot.slane %v1335, 4
        %v1338 = vshll.u32 %v1194, 16
        %v1340 = vrot.slane %v1338, 5
        %v1341 = vor.u32 %v1337, %v1340
        %v1342 = vrot.slane %v1341, 4
        %v1344 = vshll.u32 %v1195, 16
        %v1346 = vrot.slane %v1344, 5
        %v1347 = vsel %vm531, %v1342, %v1346
        %v1349 = vshrl.u32 %v1196, 16
        %v1351 = vrot.slane %v1349, 4
        %v1352 = vshll.u32 %v1196, 16
        %v1354 = vrot.slane %v1352, 5
        %v1355 = vor.u32 %v1351, %v1354
        %v1356 = vrot.slane %v1355, 4
        %v1358 = vshll.u32 %v1197, 16
        %v1360 = vrot.slane %v1358, 5
        %v1361 = vsel %vm531, %v1356, %v1360
        %v1363 = vshrl.u32 %v1198, 16
        %v1365 = vrot.slane %v1363, 4
        %v1366 = vshll.u32 %v1198, 16
        %v1368 = vrot.slane %v1366, 5
        %v1369 = vor.u32 %v1365, %v1368
        %v1370 = vrot.slane %v1369, 4
        %v1372 = vshll.u32 %v1199, 16
        %v1374 = vrot.slane %v1372, 5
        %v1375 = vsel %vm531, %v1370, %v1374
        %v1377 = vshrl.u32 %v1200, 16
        %v1379 = vrot.slane %v1377, 4
        %v1380 = vshll.u32 %v1200, 16
        %v1382 = vrot.slane %v1380, 5
        %v1383 = vor.u32 %v1379, %v1382
        %v1384 = vrot.slane %v1383, 4
        %v1386 = vshll.u32 %v1201, 16
        %v1388 = vrot.slane %v1386, 5
        %v1389 = vsel %vm531, %v1384, %v1388
        %v1391 = vshrl.u32 %v1202, 16
        %v1393 = vrot.slane %v1391, 4
        %v1394 = vshll.u32 %v1202, 16
        %v1396 = vrot.slane %v1394, 5
        %v1397 = vor.u32 %v1393, %v1396
        %v1398 = vrot.slane %v1397, 4
        %v1400 = vshll.u32 %v1203, 16
        %v1402 = vrot.slane %v1400, 5
        %v1403 = vsel %vm531, %v1398, %v1402
        %v1405 = vshrl.u32 %v1204, 16
        %v1407 = vrot.slane %v1405, 4
        %v1408 = vshll.u32 %v1204, 16
        %v1410 = vrot.slane %v1408, 5
        %v1411 = vor.u32 %v1407, %v1410
        %v1412 = vrot.slane %v1411, 4
        %v1414 = vshll.u32 %v1205, 16
        %v1416 = vrot.slane %v1414, 5
        %v1417 = vsel %vm531, %v1412, %v1416
        %v1419 = vshrl.u32 %v1206, 16
        %v1421 = vrot.slane %v1419, 4
        %v1422 = vshll.u32 %v1206, 16
        %v1424 = vrot.slane %v1422, 5
        %v1425 = vor.u32 %v1421, %v1424
        %v1426 = vrot.slane %v1425, 4
        %v1428 = vshll.u32 %v1207, 16
        %v1430 = vrot.slane %v1428, 5
        %v1431 = vsel %vm531, %v1426, %v1430
        %s1432 = scalar_lea.vmem %s2, 20
        %v1433 = vld [vmem:[%s1432] sm:$0xf]
        %v1434 = vunpack.c.l.b16 %v1221
        %v1435 = vunpack.c.l.b16 %v1235
        %v1436 = vunpack.c.l.b16 %v1249
        %v1437 = vunpack.c.l.b16 %v1263
        %v1438 = vunpack.c.l.b16 %v1277
        %v1439 = vunpack.c.l.b16 %v1291
        %v1440 = vunpack.c.l.b16 %v1305
        %v1441 = vunpack.c.l.b16 %v1319
        %v1442 = vunpack.c.l.b16 %v1333
        %v1443 = vunpack.c.l.b16 %v1347
        %v1444 = vunpack.c.l.b16 %v1361
        %v1445 = vunpack.c.l.b16 %v1375
        %v1446 = vunpack.c.l.b16 %v1389
        %v1447 = vunpack.c.l.b16 %v1403
        %v1448 = vunpack.c.l.b16 %v1417
        %v1449 = vunpack.c.l.b16 %v1431
        %v1450 = vpack.c.b16 %v1435, %v1434
        %v1451 = vpack.c.b16 %v1437, %v1436
        %v1452 = vpack.c.b16 %v1439, %v1438
        %v1453 = vpack.c.b16 %v1441, %v1440
        %v1454 = vpack.c.b16 %v1443, %v1442
        %v1455 = vpack.c.b16 %v1445, %v1444
        %v1456 = vpack.c.b16 %v1447, %v1446
        %v1457 = vpack.c.b16 %v1449, %v1448
        %v1459 = vsel %vm303, %v1450, 0
        %v1462 = vsel %vm303, %v1451, 0
        %v1465 = vsel %vm303, %v1452, 0
        %v1468 = vsel %vm303, %v1453, 0
        %v1471 = vsel %vm303, %v1454, 0
        %v1474 = vsel %vm303, %v1455, 0
        %v1477 = vsel %vm303, %v1456, 0
        %v1480 = vsel %vm303, %v1457, 0
        %v1483 = vsel %vm328, %v1433, 0
        %1485 = vmatpush.bf16.msra.mxu0 0
        %1486 = vmatpush.bf16.msra.mxu0 0
        %1487 = vmatpush.bf16.msra.mxu0 0
        %1488 = vmatpush.bf16.msra.mxu0 0
        %1489 = vmatpush.bf16.msra.mxu0 0
        %1490 = vmatpush.bf16.msra.mxu0 0
        %1491 = vmatpush.bf16.msra.mxu0 0
        %1492 = vmatpush.bf16.msra.mxu0 %v1483
        %1493 = vmatmul.bf16.gmra.mxu0 %v1459
        %v1494 = vpop.f32.mrf.mxu0
        %v1495 = vadd.f32 0.0, %v1494
        %v1496 = vpop.f32.mrf.mxu0
        %v1497 = vadd.f32 0.0, %v1496
        %1498 = vmatmul.bf16.gmra.mxu0 %v1462
        %v1499 = vpop.f32.mrf.mxu0
        %v1500 = vadd.f32 0.0, %v1499
        %v1501 = vpop.f32.mrf.mxu0
        %v1502 = vadd.f32 0.0, %v1501
        %1503 = vmatmul.bf16.gmra.mxu0 %v1465
        %v1504 = vpop.f32.mrf.mxu0
        %v1505 = vadd.f32 0.0, %v1504
        %v1506 = vpop.f32.mrf.mxu0
        %v1507 = vadd.f32 0.0, %v1506
        %1508 = vmatmul.bf16.gmra.mxu0 %v1468
        %v1509 = vpop.f32.mrf.mxu0
        %v1510 = vadd.f32 0.0, %v1509
        %v1511 = vpop.f32.mrf.mxu0
        %v1512 = vadd.f32 0.0, %v1511
        %1513 = vmatmul.bf16.gmra.mxu0 %v1471
        %v1514 = vpop.f32.mrf.mxu0
        %v1515 = vadd.f32 0.0, %v1514
        %v1516 = vpop.f32.mrf.mxu0
        %v1517 = vadd.f32 0.0, %v1516
        %1518 = vmatmul.bf16.gmra.mxu0 %v1474
        %v1519 = vpop.f32.mrf.mxu0
        %v1520 = vadd.f32 0.0, %v1519
        %v1521 = vpop.f32.mrf.mxu0
        %v1522 = vadd.f32 0.0, %v1521
        %1523 = vmatmul.bf16.gmra.mxu0 %v1477
        %v1524 = vpop.f32.mrf.mxu0
        %v1525 = vadd.f32 0.0, %v1524
        %v1526 = vpop.f32.mrf.mxu0
        %v1527 = vadd.f32 0.0, %v1526
        %1528 = vmatmul.bf16.gmra.mxu0 %v1480
        %v1529 = vpop.f32.mrf.mxu0
        %v1530 = vadd.f32 0.0, %v1529
        %v1531 = vpop.f32.mrf.mxu0
        %v1532 = vadd.f32 0.0, %v1531
        %1533 = vdwg.mxu0
        %v1534 = vadd.f32 %v1160, %v1495
        %v1535 = vadd.f32 %v1161, %v1497
        %v1536 = vadd.f32 %v1162, %v1500
        %v1537 = vadd.f32 %v1163, %v1502
        %v1538 = vadd.f32 %v1164, %v1505
        %v1539 = vadd.f32 %v1165, %v1507
        %v1540 = vadd.f32 %v1166, %v1510
        %v1541 = vadd.f32 %v1167, %v1512
        %v1542 = vadd.f32 %v1168, %v1515
        %v1543 = vadd.f32 %v1169, %v1517
        %v1544 = vadd.f32 %v1170, %v1520
        %v1545 = vadd.f32 %v1171, %v1522
        %v1546 = vadd.f32 %v1172, %v1525
        %v1547 = vadd.f32 %v1173, %v1527
        %v1548 = vadd.f32 %v1174, %v1530
        %v1549 = vadd.f32 %v1175, %v1532
        %s1550 = scalar_lea.vmem %s221, 16
        %v1551 = vld [vmem:[%s1550] sm:$0xf]
        %v1552 = vld [vmem:[%s1550 + $0x8] sm:$0xf]
        %v1553 = vld [vmem:[%s1550 + $0x10] sm:$0xf]
        %v1554 = vld [vmem:[%s1550 + $0x18] sm:$0xf]
        %v1555 = vld [vmem:[%s1550 + $0x20] sm:$0xf]
        %v1556 = vld [vmem:[%s1550 + $0x28] sm:$0xf]
        %v1557 = vld [vmem:[%s1550 + $0x30] sm:$0xf]
        %v1558 = vld [vmem:[%s1550 + $0x38] sm:$0xf]
        %v1559 = vld [vmem:[%s1550 + $0x40] sm:$0xf]
        %v1560 = vld [vmem:[%s1550 + $0x48] sm:$0xf]
        %v1561 = vld [vmem:[%s1550 + $0x50] sm:$0xf]
        %v1562 = vld [vmem:[%s1550 + $0x58] sm:$0xf]
        %v1563 = vld [vmem:[%s1550 + $0x60] sm:$0xf]
        %v1564 = vld [vmem:[%s1550 + $0x68] sm:$0xf]
        %v1565 = vld [vmem:[%s1550 + $0x70] sm:$0xf]
        %v1566 = vld [vmem:[%s1550 + $0x78] sm:$0xf]
        %s1567 = scalar_lea.vmem %s2, 24
        %v1568 = vld [vmem:[%s1567] sm:$0xf]
        %v1585 = vunpack.c.l.b16 %v1551
        %v1586 = vunpack.c.l.b16 %v1552
        %v1587 = vunpack.c.l.b16 %v1553
        %v1588 = vunpack.c.l.b16 %v1554
        %v1589 = vunpack.c.l.b16 %v1555
        %v1590 = vunpack.c.l.b16 %v1556
        %v1591 = vunpack.c.l.b16 %v1557
        %v1592 = vunpack.c.l.b16 %v1558
        %v1593 = vunpack.c.l.b16 %v1559
        %v1594 = vunpack.c.l.b16 %v1560
        %v1595 = vunpack.c.l.b16 %v1561
        %v1596 = vunpack.c.l.b16 %v1562
        %v1597 = vunpack.c.l.b16 %v1563
        %v1598 = vunpack.c.l.b16 %v1564
        %v1599 = vunpack.c.l.b16 %v1565
        %v1600 = vunpack.c.l.b16 %v1566
        %v1601 = vpack.c.b16 %v1586, %v1585
        %v1602 = vpack.c.b16 %v1588, %v1587
        %v1603 = vpack.c.b16 %v1590, %v1589
        %v1604 = vpack.c.b16 %v1592, %v1591
        %v1605 = vpack.c.b16 %v1594, %v1593
        %v1606 = vpack.c.b16 %v1596, %v1595
        %v1607 = vpack.c.b16 %v1598, %v1597
        %v1608 = vpack.c.b16 %v1600, %v1599
        %v1610 = vsel %vm303, %v1601, 0
        %v1613 = vsel %vm303, %v1602, 0
        %v1616 = vsel %vm303, %v1603, 0
        %v1619 = vsel %vm303, %v1604, 0
        %v1622 = vsel %vm303, %v1605, 0
        %v1625 = vsel %vm303, %v1606, 0
        %v1628 = vsel %vm303, %v1607, 0
        %v1631 = vsel %vm303, %v1608, 0
        %v1634 = vsel %vm328, %v1568, 0
        %1636 = vmatpush.bf16.msra.mxu0 0
        %1637 = vmatpush.bf16.msra.mxu0 0
        %1638 = vmatpush.bf16.msra.mxu0 0
        %1639 = vmatpush.bf16.msra.mxu0 0
        %1640 = vmatpush.bf16.msra.mxu0 0
        %1641 = vmatpush.bf16.msra.mxu0 0
        %1642 = vmatpush.bf16.msra.mxu0 0
        %1643 = vmatpush.bf16.msra.mxu0 %v1634
        %1644 = vmatmul.bf16.gmra.mxu0 %v1610
        %v1645 = vpop.f32.mrf.mxu0
        %v1646 = vadd.f32 0.0, %v1645
        %v1647 = vpop.f32.mrf.mxu0
        %v1648 = vadd.f32 0.0, %v1647
        %1649 = vmatmul.bf16.gmra.mxu0 %v1613
        %v1650 = vpop.f32.mrf.mxu0
        %v1651 = vadd.f32 0.0, %v1650
        %v1652 = vpop.f32.mrf.mxu0
        %v1653 = vadd.f32 0.0, %v1652
        %1654 = vmatmul.bf16.gmra.mxu0 %v1616
        %v1655 = vpop.f32.mrf.mxu0
        %v1656 = vadd.f32 0.0, %v1655
        %v1657 = vpop.f32.mrf.mxu0
        %v1658 = vadd.f32 0.0, %v1657
        %1659 = vmatmul.bf16.gmra.mxu0 %v1619
        %v1660 = vpop.f32.mrf.mxu0
        %v1661 = vadd.f32 0.0, %v1660
        %v1662 = vpop.f32.mrf.mxu0
        %v1663 = vadd.f32 0.0, %v1662
        %1664 = vmatmul.bf16.gmra.mxu0 %v1622
        %v1665 = vpop.f32.mrf.mxu0
        %v1666 = vadd.f32 0.0, %v1665
        %v1667 = vpop.f32.mrf.mxu0
        %v1668 = vadd.f32 0.0, %v1667
        %1669 = vmatmul.bf16.gmra.mxu0 %v1625
        %v1670 = vpop.f32.mrf.mxu0
        %v1671 = vadd.f32 0.0, %v1670
        %v1672 = vpop.f32.mrf.mxu0
        %v1673 = vadd.f32 0.0, %v1672
        %1674 = vmatmul.bf16.gmra.mxu0 %v1628
        %v1675 = vpop.f32.mrf.mxu0
        %v1676 = vadd.f32 0.0, %v1675
        %v1677 = vpop.f32.mrf.mxu0
        %v1678 = vadd.f32 0.0, %v1677
        %1679 = vmatmul.bf16.gmra.mxu0 %v1631
        %v1680 = vpop.f32.mrf.mxu0
        %v1681 = vadd.f32 0.0, %v1680
        %v1682 = vpop.f32.mrf.mxu0
        %v1683 = vadd.f32 0.0, %v1682
        %1684 = vdwg.mxu0
        %v1685 = vadd.f32 %v1534, %v1646
        %v1686 = vadd.f32 %v1535, %v1648
        %v1687 = vadd.f32 %v1536, %v1651
        %v1688 = vadd.f32 %v1537, %v1653
        %v1689 = vadd.f32 %v1538, %v1656
        %v1690 = vadd.f32 %v1539, %v1658
        %v1691 = vadd.f32 %v1540, %v1661
        %v1692 = vadd.f32 %v1541, %v1663
        %v1693 = vadd.f32 %v1542, %v1666
        %v1694 = vadd.f32 %v1543, %v1668
        %v1695 = vadd.f32 %v1544, %v1671
        %v1696 = vadd.f32 %v1545, %v1673
        %v1697 = vadd.f32 %v1546, %v1676
        %v1698 = vadd.f32 %v1547, %v1678
        %v1699 = vadd.f32 %v1548, %v1681
        %v1700 = vadd.f32 %v1549, %v1683
        %s1701 = scalar_lea.vmem %s226, 16
        %v1702 = vld [vmem:[%s1701] sm:$0xf]
        %v1703 = vld [vmem:[%s1701 + $0x8] sm:$0xf]
        %v1704 = vld [vmem:[%s1701 + $0x10] sm:$0xf]
        %v1705 = vld [vmem:[%s1701 + $0x18] sm:$0xf]
        %v1706 = vld [vmem:[%s1701 + $0x20] sm:$0xf]
        %v1707 = vld [vmem:[%s1701 + $0x28] sm:$0xf]
        %v1708 = vld [vmem:[%s1701 + $0x30] sm:$0xf]
        %v1709 = vld [vmem:[%s1701 + $0x38] sm:$0xf]
        %v1710 = vld [vmem:[%s1701 + $0x40] sm:$0xf]
        %v1711 = vld [vmem:[%s1701 + $0x48] sm:$0xf]
        %v1712 = vld [vmem:[%s1701 + $0x50] sm:$0xf]
        %v1713 = vld [vmem:[%s1701 + $0x58] sm:$0xf]
        %v1714 = vld [vmem:[%s1701 + $0x60] sm:$0xf]
        %v1715 = vld [vmem:[%s1701 + $0x68] sm:$0xf]
        %v1716 = vld [vmem:[%s1701 + $0x70] sm:$0xf]
        %v1717 = vld [vmem:[%s1701 + $0x78] sm:$0xf]
        %s1718 = scalar_lea.vmem %s2, 28
        %v1719 = vld [vmem:[%s1718] sm:$0xf]
        %v1736 = vunpack.c.l.b16 %v1702
        %v1737 = vunpack.c.l.b16 %v1703
        %v1738 = vunpack.c.l.b16 %v1704
        %v1739 = vunpack.c.l.b16 %v1705
        %v1740 = vunpack.c.l.b16 %v1706
        %v1741 = vunpack.c.l.b16 %v1707
        %v1742 = vunpack.c.l.b16 %v1708
        %v1743 = vunpack.c.l.b16 %v1709
        %v1744 = vunpack.c.l.b16 %v1710
        %v1745 = vunpack.c.l.b16 %v1711
        %v1746 = vunpack.c.l.b16 %v1712
        %v1747 = vunpack.c.l.b16 %v1713
        %v1748 = vunpack.c.l.b16 %v1714
        %v1749 = vunpack.c.l.b16 %v1715
        %v1750 = vunpack.c.l.b16 %v1716
        %v1751 = vunpack.c.l.b16 %v1717
        %v1752 = vpack.c.b16 %v1737, %v1736
        %v1753 = vpack.c.b16 %v1739, %v1738
        %v1754 = vpack.c.b16 %v1741, %v1740
        %v1755 = vpack.c.b16 %v1743, %v1742
        %v1756 = vpack.c.b16 %v1745, %v1744
        %v1757 = vpack.c.b16 %v1747, %v1746
        %v1758 = vpack.c.b16 %v1749, %v1748
        %v1759 = vpack.c.b16 %v1751, %v1750
        %v1761 = vsel %vm303, %v1752, 0
        %v1764 = vsel %vm303, %v1753, 0
        %v1767 = vsel %vm303, %v1754, 0
        %v1770 = vsel %vm303, %v1755, 0
        %v1773 = vsel %vm303, %v1756, 0
        %v1776 = vsel %vm303, %v1757, 0
        %v1779 = vsel %vm303, %v1758, 0
        %v1782 = vsel %vm303, %v1759, 0
        %v1785 = vsel %vm328, %v1719, 0
        %1787 = vmatpush.bf16.msra.mxu0 0
        %1788 = vmatpush.bf16.msra.mxu0 0
        %1789 = vmatpush.bf16.msra.mxu0 0
        %1790 = vmatpush.bf16.msra.mxu0 0
        %1791 = vmatpush.bf16.msra.mxu0 0
        %1792 = vmatpush.bf16.msra.mxu0 0
        %1793 = vmatpush.bf16.msra.mxu0 0
        %1794 = vmatpush.bf16.msra.mxu0 %v1785
        %1795 = vmatmul.bf16.gmra.mxu0 %v1761
        %v1796 = vpop.f32.mrf.mxu0
        %v1797 = vadd.f32 0.0, %v1796
        %v1798 = vpop.f32.mrf.mxu0
        %v1799 = vadd.f32 0.0, %v1798
        %1800 = vmatmul.bf16.gmra.mxu0 %v1764
        %v1801 = vpop.f32.mrf.mxu0
        %v1802 = vadd.f32 0.0, %v1801
        %v1803 = vpop.f32.mrf.mxu0
        %v1804 = vadd.f32 0.0, %v1803
        %1805 = vmatmul.bf16.gmra.mxu0 %v1767
        %v1806 = vpop.f32.mrf.mxu0
        %v1807 = vadd.f32 0.0, %v1806
        %v1808 = vpop.f32.mrf.mxu0
        %v1809 = vadd.f32 0.0, %v1808
        %1810 = vmatmul.bf16.gmra.mxu0 %v1770
        %v1811 = vpop.f32.mrf.mxu0
        %v1812 = vadd.f32 0.0, %v1811
        %v1813 = vpop.f32.mrf.mxu0
        %v1814 = vadd.f32 0.0, %v1813
        %1815 = vmatmul.bf16.gmra.mxu0 %v1773
        %v1816 = vpop.f32.mrf.mxu0
        %v1817 = vadd.f32 0.0, %v1816
        %v1818 = vpop.f32.mrf.mxu0
        %v1819 = vadd.f32 0.0, %v1818
        %1820 = vmatmul.bf16.gmra.mxu0 %v1776
        %v1821 = vpop.f32.mrf.mxu0
        %v1822 = vadd.f32 0.0, %v1821
        %v1823 = vpop.f32.mrf.mxu0
        %v1824 = vadd.f32 0.0, %v1823
        %1825 = vmatmul.bf16.gmra.mxu0 %v1779
        %v1826 = vpop.f32.mrf.mxu0
        %v1827 = vadd.f32 0.0, %v1826
        %v1828 = vpop.f32.mrf.mxu0
        %v1829 = vadd.f32 0.0, %v1828
        %1830 = vmatmul.bf16.gmra.mxu0 %v1782
        %v1831 = vpop.f32.mrf.mxu0
        %v1832 = vadd.f32 0.0, %v1831
        %v1833 = vpop.f32.mrf.mxu0
        %v1834 = vadd.f32 0.0, %v1833
        %1835 = vdwg.mxu0
        %v1836 = vadd.f32 %v1685, %v1797
        %v1837 = vadd.f32 %v1686, %v1799
        %v1838 = vadd.f32 %v1687, %v1802
        %v1839 = vadd.f32 %v1688, %v1804
        %v1840 = vadd.f32 %v1689, %v1807
        %v1841 = vadd.f32 %v1690, %v1809
        %v1842 = vadd.f32 %v1691, %v1812
        %v1843 = vadd.f32 %v1692, %v1814
        %v1844 = vadd.f32 %v1693, %v1817
        %v1845 = vadd.f32 %v1694, %v1819
        %v1846 = vadd.f32 %v1695, %v1822
        %v1847 = vadd.f32 %v1696, %v1824
        %v1848 = vadd.f32 %v1697, %v1827
        %v1849 = vadd.f32 %v1698, %v1829
        %v1850 = vadd.f32 %v1699, %v1832
        %v1851 = vadd.f32 %v1700, %v1834
        %v1852 = vld [vmem:[%s1550] sm:$0xf]
        %v1853 = vld [vmem:[%s1550 + $0x4] sm:$0x1]
        %v1854 = vld [vmem:[%s1550 + $0x8] sm:$0xf]
        %v1855 = vld [vmem:[%s1550 + $0xc] sm:$0x1]
        %v1856 = vld [vmem:[%s1550 + $0x10] sm:$0xf]
        %v1857 = vld [vmem:[%s1550 + $0x14] sm:$0x1]
        %v1858 = vld [vmem:[%s1550 + $0x18] sm:$0xf]
        %v1859 = vld [vmem:[%s1550 + $0x1c] sm:$0x1]
        %v1860 = vld [vmem:[%s1550 + $0x20] sm:$0xf]
        %v1861 = vld [vmem:[%s1550 + $0x24] sm:$0x1]
        %v1862 = vld [vmem:[%s1550 + $0x28] sm:$0xf]
        %v1863 = vld [vmem:[%s1550 + $0x2c] sm:$0x1]
        %v1864 = vld [vmem:[%s1550 + $0x30] sm:$0xf]
        %v1865 = vld [vmem:[%s1550 + $0x34] sm:$0x1]
        %v1866 = vld [vmem:[%s1550 + $0x38] sm:$0xf]
        %v1867 = vld [vmem:[%s1550 + $0x3c] sm:$0x1]
        %v1868 = vld [vmem:[%s1550 + $0x40] sm:$0xf]
        %v1869 = vld [vmem:[%s1550 + $0x44] sm:$0x1]
        %v1870 = vld [vmem:[%s1550 + $0x48] sm:$0xf]
        %v1871 = vld [vmem:[%s1550 + $0x4c] sm:$0x1]
        %v1872 = vld [vmem:[%s1550 + $0x50] sm:$0xf]
        %v1873 = vld [vmem:[%s1550 + $0x54] sm:$0x1]
        %v1874 = vld [vmem:[%s1550 + $0x58] sm:$0xf]
        %v1875 = vld [vmem:[%s1550 + $0x5c] sm:$0x1]
        %v1876 = vld [vmem:[%s1550 + $0x60] sm:$0xf]
        %v1877 = vld [vmem:[%s1550 + $0x64] sm:$0x1]
        %v1878 = vld [vmem:[%s1550 + $0x68] sm:$0xf]
        %v1879 = vld [vmem:[%s1550 + $0x6c] sm:$0x1]
        %v1880 = vld [vmem:[%s1550 + $0x70] sm:$0xf]
        %v1881 = vld [vmem:[%s1550 + $0x74] sm:$0x1]
        %v1882 = vld [vmem:[%s1550 + $0x78] sm:$0xf]
        %v1883 = vld [vmem:[%s1550 + $0x7c] sm:$0x1]
        %v1885 = vshrl.u32 %v1852, 16
        %v1887 = vrot.slane %v1885, 4
        %v1888 = vshll.u32 %v1852, 16
        %v1890 = vrot.slane %v1888, 5
        %v1891 = vor.u32 %v1887, %v1890
        %v1892 = vrot.slane %v1891, 4
        %v1894 = vshll.u32 %v1853, 16
        %v1896 = vrot.slane %v1894, 5
        %v1897 = vsel %vm531, %v1892, %v1896
        %v1899 = vshrl.u32 %v1854, 16
        %v1901 = vrot.slane %v1899, 4
        %v1902 = vshll.u32 %v1854, 16
        %v1904 = vrot.slane %v1902, 5
        %v1905 = vor.u32 %v1901, %v1904
        %v1906 = vrot.slane %v1905, 4
        %v1908 = vshll.u32 %v1855, 16
        %v1910 = vrot.slane %v1908, 5
        %v1911 = vsel %vm531, %v1906, %v1910
        %v1913 = vshrl.u32 %v1856, 16
        %v1915 = vrot.slane %v1913, 4
        %v1916 = vshll.u32 %v1856, 16
        %v1918 = vrot.slane %v1916, 5
        %v1919 = vor.u32 %v1915, %v1918
        %v1920 = vrot.slane %v1919, 4
        %v1922 = vshll.u32 %v1857, 16
        %v1924 = vrot.slane %v1922, 5
        %v1925 = vsel %vm531, %v1920, %v1924
        %v1927 = vshrl.u32 %v1858, 16
        %v1929 = vrot.slane %v1927, 4
        %v1930 = vshll.u32 %v1858, 16
        %v1932 = vrot.slane %v1930, 5
        %v1933 = vor.u32 %v1929, %v1932
        %v1934 = vrot.slane %v1933, 4
        %v1936 = vshll.u32 %v1859, 16
        %v1938 = vrot.slane %v1936, 5
        %v1939 = vsel %vm531, %v1934, %v1938
        %v1941 = vshrl.u32 %v1860, 16
        %v1943 = vrot.slane %v1941, 4
        %v1944 = vshll.u32 %v1860, 16
        %v1946 = vrot.slane %v1944, 5
        %v1947 = vor.u32 %v1943, %v1946
        %v1948 = vrot.slane %v1947, 4
        %v1950 = vshll.u32 %v1861, 16
        %v1952 = vrot.slane %v1950, 5
        %v1953 = vsel %vm531, %v1948, %v1952
        %v1955 = vshrl.u32 %v1862, 16
        %v1957 = vrot.slane %v1955, 4
        %v1958 = vshll.u32 %v1862, 16
        %v1960 = vrot.slane %v1958, 5
        %v1961 = vor.u32 %v1957, %v1960
        %v1962 = vrot.slane %v1961, 4
        %v1964 = vshll.u32 %v1863, 16
        %v1966 = vrot.slane %v1964, 5
        %v1967 = vsel %vm531, %v1962, %v1966
        %v1969 = vshrl.u32 %v1864, 16
        %v1971 = vrot.slane %v1969, 4
        %v1972 = vshll.u32 %v1864, 16
        %v1974 = vrot.slane %v1972, 5
        %v1975 = vor.u32 %v1971, %v1974
        %v1976 = vrot.slane %v1975, 4
        %v1978 = vshll.u32 %v1865, 16
        %v1980 = vrot.slane %v1978, 5
        %v1981 = vsel %vm531, %v1976, %v1980
        %v1983 = vshrl.u32 %v1866, 16
        %v1985 = vrot.slane %v1983, 4
        %v1986 = vshll.u32 %v1866, 16
        %v1988 = vrot.slane %v1986, 5
        %v1989 = vor.u32 %v1985, %v1988
        %v1990 = vrot.slane %v1989, 4
        %v1992 = vshll.u32 %v1867, 16
        %v1994 = vrot.slane %v1992, 5
        %v1995 = vsel %vm531, %v1990, %v1994
        %v1997 = vshrl.u32 %v1868, 16
        %v1999 = vrot.slane %v1997, 4
        %v2000 = vshll.u32 %v1868, 16
        %v2002 = vrot.slane %v2000, 5
        %v2003 = vor.u32 %v1999, %v2002
        %v2004 = vrot.slane %v2003, 4
        %v2006 = vshll.u32 %v1869, 16
        %v2008 = vrot.slane %v2006, 5
        %v2009 = vsel %vm531, %v2004, %v2008
        %v2011 = vshrl.u32 %v1870, 16
        %v2013 = vrot.slane %v2011, 4
        %v2014 = vshll.u32 %v1870, 16
        %v2016 = vrot.slane %v2014, 5
        %v2017 = vor.u32 %v2013, %v2016
        %v2018 = vrot.slane %v2017, 4
        %v2020 = vshll.u32 %v1871, 16
        %v2022 = vrot.slane %v2020, 5
        %v2023 = vsel %vm531, %v2018, %v2022
        %v2025 = vshrl.u32 %v1872, 16
        %v2027 = vrot.slane %v2025, 4
        %v2028 = vshll.u32 %v1872, 16
        %v2030 = vrot.slane %v2028, 5
        %v2031 = vor.u32 %v2027, %v2030
        %v2032 = vrot.slane %v2031, 4
        %v2034 = vshll.u32 %v1873, 16
        %v2036 = vrot.slane %v2034, 5
        %v2037 = vsel %vm531, %v2032, %v2036
        %v2039 = vshrl.u32 %v1874, 16
        %v2041 = vrot.slane %v2039, 4
        %v2042 = vshll.u32 %v1874, 16
        %v2044 = vrot.slane %v2042, 5
        %v2045 = vor.u32 %v2041, %v2044
        %v2046 = vrot.slane %v2045, 4
        %v2048 = vshll.u32 %v1875, 16
        %v2050 = vrot.slane %v2048, 5
        %v2051 = vsel %vm531, %v2046, %v2050
        %v2053 = vshrl.u32 %v1876, 16
        %v2055 = vrot.slane %v2053, 4
        %v2056 = vshll.u32 %v1876, 16
        %v2058 = vrot.slane %v2056, 5
        %v2059 = vor.u32 %v2055, %v2058
        %v2060 = vrot.slane %v2059, 4
        %v2062 = vshll.u32 %v1877, 16
        %v2064 = vrot.slane %v2062, 5
        %v2065 = vsel %vm531, %v2060, %v2064
        %v2067 = vshrl.u32 %v1878, 16
        %v2069 = vrot.slane %v2067, 4
        %v2070 = vshll.u32 %v1878, 16
        %v2072 = vrot.slane %v2070, 5
        %v2073 = vor.u32 %v2069, %v2072
        %v2074 = vrot.slane %v2073, 4
        %v2076 = vshll.u32 %v1879, 16
        %v2078 = vrot.slane %v2076, 5
        %v2079 = vsel %vm531, %v2074, %v2078
        %v2081 = vshrl.u32 %v1880, 16
        %v2083 = vrot.slane %v2081, 4
        %v2084 = vshll.u32 %v1880, 16
        %v2086 = vrot.slane %v2084, 5
        %v2087 = vor.u32 %v2083, %v2086
        %v2088 = vrot.slane %v2087, 4
        %v2090 = vshll.u32 %v1881, 16
        %v2092 = vrot.slane %v2090, 5
        %v2093 = vsel %vm531, %v2088, %v2092
        %v2095 = vshrl.u32 %v1882, 16
        %v2097 = vrot.slane %v2095, 4
        %v2098 = vshll.u32 %v1882, 16
        %v2100 = vrot.slane %v2098, 5
        %v2101 = vor.u32 %v2097, %v2100
        %v2102 = vrot.slane %v2101, 4
        %v2104 = vshll.u32 %v1883, 16
        %v2106 = vrot.slane %v2104, 5
        %v2107 = vsel %vm531, %v2102, %v2106
        %s2108 = scalar_lea.vmem %s2, 32
        %v2109 = vld [vmem:[%s2108] sm:$0xf]
        %v2110 = vunpack.c.l.b16 %v1897
        %v2111 = vunpack.c.l.b16 %v1911
        %v2112 = vunpack.c.l.b16 %v1925
        %v2113 = vunpack.c.l.b16 %v1939
        %v2114 = vunpack.c.l.b16 %v1953
        %v2115 = vunpack.c.l.b16 %v1967
        %v2116 = vunpack.c.l.b16 %v1981
        %v2117 = vunpack.c.l.b16 %v1995
        %v2118 = vunpack.c.l.b16 %v2009
        %v2119 = vunpack.c.l.b16 %v2023
        %v2120 = vunpack.c.l.b16 %v2037
        %v2121 = vunpack.c.l.b16 %v2051
        %v2122 = vunpack.c.l.b16 %v2065
        %v2123 = vunpack.c.l.b16 %v2079
        %v2124 = vunpack.c.l.b16 %v2093
        %v2125 = vunpack.c.l.b16 %v2107
        %v2126 = vpack.c.b16 %v2111, %v2110
        %v2127 = vpack.c.b16 %v2113, %v2112
        %v2128 = vpack.c.b16 %v2115, %v2114
        %v2129 = vpack.c.b16 %v2117, %v2116
        %v2130 = vpack.c.b16 %v2119, %v2118
        %v2131 = vpack.c.b16 %v2121, %v2120
        %v2132 = vpack.c.b16 %v2123, %v2122
        %v2133 = vpack.c.b16 %v2125, %v2124
        %v2135 = vsel %vm303, %v2126, 0
        %v2138 = vsel %vm303, %v2127, 0
        %v2141 = vsel %vm303, %v2128, 0
        %v2144 = vsel %vm303, %v2129, 0
        %v2147 = vsel %vm303, %v2130, 0
        %v2150 = vsel %vm303, %v2131, 0
        %v2153 = vsel %vm303, %v2132, 0
        %v2156 = vsel %vm303, %v2133, 0
        %v2159 = vsel %vm328, %v2109, 0
        %2161 = vmatpush.bf16.msra.mxu0 0
        %2162 = vmatpush.bf16.msra.mxu0 0
        %2163 = vmatpush.bf16.msra.mxu0 0
        %2164 = vmatpush.bf16.msra.mxu0 0
        %2165 = vmatpush.bf16.msra.mxu0 0
        %2166 = vmatpush.bf16.msra.mxu0 0
        %2167 = vmatpush.bf16.msra.mxu0 0
        %2168 = vmatpush.bf16.msra.mxu0 %v2159
        %2169 = vmatmul.bf16.gmra.mxu0 %v2135
        %v2170 = vpop.f32.mrf.mxu0
        %v2171 = vadd.f32 0.0, %v2170
        %v2172 = vpop.f32.mrf.mxu0
        %v2173 = vadd.f32 0.0, %v2172
        %2174 = vmatmul.bf16.gmra.mxu0 %v2138
        %v2175 = vpop.f32.mrf.mxu0
        %v2176 = vadd.f32 0.0, %v2175
        %v2177 = vpop.f32.mrf.mxu0
        %v2178 = vadd.f32 0.0, %v2177
        %2179 = vmatmul.bf16.gmra.mxu0 %v2141
        %v2180 = vpop.f32.mrf.mxu0
        %v2181 = vadd.f32 0.0, %v2180
        %v2182 = vpop.f32.mrf.mxu0
        %v2183 = vadd.f32 0.0, %v2182
        %2184 = vmatmul.bf16.gmra.mxu0 %v2144
        %v2185 = vpop.f32.mrf.mxu0
        %v2186 = vadd.f32 0.0, %v2185
        %v2187 = vpop.f32.mrf.mxu0
        %v2188 = vadd.f32 0.0, %v2187
        %2189 = vmatmul.bf16.gmra.mxu0 %v2147
        %v2190 = vpop.f32.mrf.mxu0
        %v2191 = vadd.f32 0.0, %v2190
        %v2192 = vpop.f32.mrf.mxu0
        %v2193 = vadd.f32 0.0, %v2192
        %2194 = vmatmul.bf16.gmra.mxu0 %v2150
        %v2195 = vpop.f32.mrf.mxu0
        %v2196 = vadd.f32 0.0, %v2195
        %v2197 = vpop.f32.mrf.mxu0
        %v2198 = vadd.f32 0.0, %v2197
        %2199 = vmatmul.bf16.gmra.mxu0 %v2153
        %v2200 = vpop.f32.mrf.mxu0
        %v2201 = vadd.f32 0.0, %v2200
        %v2202 = vpop.f32.mrf.mxu0
        %v2203 = vadd.f32 0.0, %v2202
        %2204 = vmatmul.bf16.gmra.mxu0 %v2156
        %v2205 = vpop.f32.mrf.mxu0
        %v2206 = vadd.f32 0.0, %v2205
        %v2207 = vpop.f32.mrf.mxu0
        %v2208 = vadd.f32 0.0, %v2207
        %2209 = vdwg.mxu0
        %v2210 = vadd.f32 %v1836, %v2171
        %v2211 = vadd.f32 %v1837, %v2173
        %v2212 = vadd.f32 %v1838, %v2176
        %v2213 = vadd.f32 %v1839, %v2178
        %v2214 = vadd.f32 %v1840, %v2181
        %v2215 = vadd.f32 %v1841, %v2183
        %v2216 = vadd.f32 %v1842, %v2186
        %v2217 = vadd.f32 %v1843, %v2188
        %v2218 = vadd.f32 %v1844, %v2191
        %v2219 = vadd.f32 %v1845, %v2193
        %v2220 = vadd.f32 %v1846, %v2196
        %v2221 = vadd.f32 %v1847, %v2198
        %v2222 = vadd.f32 %v1848, %v2201
        %v2223 = vadd.f32 %v1849, %v2203
        %v2224 = vadd.f32 %v1850, %v2206
        %v2225 = vadd.f32 %v1851, %v2208
        %v2226 = vpack.c.bf16 %v2210, %v2210
        %v2227 = vpack.c.bf16 %v2211, %v2211
        %v2228 = vpack.c.bf16 %v2212, %v2212
        %v2229 = vpack.c.bf16 %v2213, %v2213
        %v2230 = vpack.c.bf16 %v2214, %v2214
        %v2231 = vpack.c.bf16 %v2215, %v2215
        %v2232 = vpack.c.bf16 %v2216, %v2216
        %v2233 = vpack.c.bf16 %v2217, %v2217
        %v2234 = vpack.c.bf16 %v2218, %v2218
        %v2235 = vpack.c.bf16 %v2219, %v2219
        %v2236 = vpack.c.bf16 %v2220, %v2220
        %v2237 = vpack.c.bf16 %v2221, %v2221
        %v2238 = vpack.c.bf16 %v2222, %v2222
        %v2239 = vpack.c.bf16 %v2223, %v2223
        %v2240 = vpack.c.bf16 %v2224, %v2224
        %v2241 = vpack.c.bf16 %v2225, %v2225
        %2242 = vst [vmem:[%s209] sm:$0xf] %v2226
        %2243 = vst [vmem:[%s209 + $0x8] sm:$0xf] %v2227
        %2244 = vst [vmem:[%s209 + $0x10] sm:$0xf] %v2228
        %2245 = vst [vmem:[%s209 + $0x18] sm:$0xf] %v2229
        %2246 = vst [vmem:[%s209 + $0x20] sm:$0xf] %v2230
        %2247 = vst [vmem:[%s209 + $0x28] sm:$0xf] %v2231
        %2248 = vst [vmem:[%s209 + $0x30] sm:$0xf] %v2232
        %2249 = vst [vmem:[%s209 + $0x38] sm:$0xf] %v2233
        %2250 = vst [vmem:[%s209 + $0x40] sm:$0xf] %v2234
        %2251 = vst [vmem:[%s209 + $0x48] sm:$0xf] %v2235
        %2252 = vst [vmem:[%s209 + $0x50] sm:$0xf] %v2236
        %2253 = vst [vmem:[%s209 + $0x58] sm:$0xf] %v2237
        %2254 = vst [vmem:[%s209 + $0x60] sm:$0xf] %v2238
        %2255 = vst [vmem:[%s209 + $0x68] sm:$0xf] %v2239
        %2256 = vst [vmem:[%s209 + $0x70] sm:$0xf] %v2240
        %2257 = vst [vmem:[%s209 + $0x78] sm:$0xf] %v2241
        %v2258 = vadd.f32 %v2210, %v2211
        %v2259 = vadd.f32 %v2258, %v2212
        %v2260 = vadd.f32 %v2259, %v2213
        %v2261 = vadd.f32 %v2260, %v2214
        %v2262 = vadd.f32 %v2261, %v2215
        %v2263 = vadd.f32 %v2262, %v2216
        %v2264 = vadd.f32 %v2263, %v2217
        %v2265 = vadd.f32 %v2264, %v2218
        %v2266 = vadd.f32 %v2265, %v2219
        %v2267 = vadd.f32 %v2266, %v2220
        %v2268 = vadd.f32 %v2267, %v2221
        %v2269 = vadd.f32 %v2268, %v2222
        %v2270 = vadd.f32 %v2269, %v2223
        %v2271 = vadd.f32 %v2270, %v2224
        %v2272 = vadd.f32 %v2271, %v2225
        %v2273 = vrot.slane %v2272, 4
        %v2274 = vadd.f32 %v2272, %v2273
        %v2275 = vrot.slane %v2274, 2
        %v2276 = vadd.f32 %v2274, %v2275
        %v2277 = vrot.slane %v2276, 1
        %v2278 = vadd.f32 %v2276, %v2277
        %v2279 = vadd.f32 %v2278, 0.0
        %v2280 = vmul.f32 %v2210, %v2210
        %v2281 = vmul.f32 %v2211, %v2211
        %v2282 = vmul.f32 %v2212, %v2212
        %v2283 = vmul.f32 %v2213, %v2213
        %v2284 = vmul.f32 %v2214, %v2214
        %v2285 = vmul.f32 %v2215, %v2215
        %v2286 = vmul.f32 %v2216, %v2216
        %v2287 = vmul.f32 %v2217, %v2217
        %v2288 = vmul.f32 %v2218, %v2218
        %v2289 = vmul.f32 %v2219, %v2219
        %v2290 = vmul.f32 %v2220, %v2220
        %v2291 = vmul.f32 %v2221, %v2221
        %v2292 = vmul.f32 %v2222, %v2222
        %v2293 = vmul.f32 %v2223, %v2223
        %v2294 = vmul.f32 %v2224, %v2224
        %v2295 = vmul.f32 %v2225, %v2225
        %v2296 = vadd.f32 %v2280, %v2281
        %v2297 = vadd.f32 %v2296, %v2282
        %v2298 = vadd.f32 %v2297, %v2283
        %v2299 = vadd.f32 %v2298, %v2284
        %v2300 = vadd.f32 %v2299, %v2285
        %v2301 = vadd.f32 %v2300, %v2286
        %v2302 = vadd.f32 %v2301, %v2287
        %v2303 = vadd.f32 %v2302, %v2288
        %v2304 = vadd.f32 %v2303, %v2289
        %v2305 = vadd.f32 %v2304, %v2290
        %v2306 = vadd.f32 %v2305, %v2291
        %v2307 = vadd.f32 %v2306, %v2292
        %v2308 = vadd.f32 %v2307, %v2293
        %v2309 = vadd.f32 %v2308, %v2294
        %v2310 = vadd.f32 %v2309, %v2295
        %v2311 = vrot.slane %v2310, 4
        %v2312 = vadd.f32 %v2310, %v2311
        %v2313 = vrot.slane %v2312, 2
        %v2314 = vadd.f32 %v2312, %v2313
        %v2315 = vrot.slane %v2314, 1
        %v2316 = vadd.f32 %v2314, %v2315
        %v2317 = vadd.f32 %v2316, 0.0
        %v2318 = vld [vmem:[%s226] sm:$0xf]
        %v2319 = vld [vmem:[%s226 + $0x8] sm:$0xf]
        %v2320 = vld [vmem:[%s226 + $0x10] sm:$0xf]
        %v2321 = vld [vmem:[%s226 + $0x18] sm:$0xf]
        %v2322 = vld [vmem:[%s226 + $0x20] sm:$0xf]
        %v2323 = vld [vmem:[%s226 + $0x28] sm:$0xf]
        %v2324 = vld [vmem:[%s226 + $0x30] sm:$0xf]
        %v2325 = vld [vmem:[%s226 + $0x38] sm:$0xf]
        %v2326 = vld [vmem:[%s226 + $0x40] sm:$0xf]
        %v2327 = vld [vmem:[%s226 + $0x48] sm:$0xf]
        %v2328 = vld [vmem:[%s226 + $0x50] sm:$0xf]
        %v2329 = vld [vmem:[%s226 + $0x58] sm:$0xf]
        %v2330 = vld [vmem:[%s226 + $0x60] sm:$0xf]
        %v2331 = vld [vmem:[%s226 + $0x68] sm:$0xf]
        %v2332 = vld [vmem:[%s226 + $0x70] sm:$0xf]
        %v2333 = vld [vmem:[%s226 + $0x78] sm:$0xf]
        %v2334 = vld [vmem:[%s2] sm:$0xf]
        %v2335 = vld [vmem:[%s221] sm:$0xf]
        %v2336 = vld [vmem:[%s221 + $0x4] sm:$0x1]
        %v2337 = vld [vmem:[%s221 + $0x8] sm:$0xf]
        %v2338 = vld [vmem:[%s221 + $0xc] sm:$0x1]
        %v2339 = vld [vmem:[%s221 + $0x10] sm:$0xf]
        %v2340 = vld [vmem:[%s221 + $0x14] sm:$0x1]
        %v2341 = vld [vmem:[%s221 + $0x18] sm:$0xf]
        %v2342 = vld [vmem:[%s221 + $0x1c] sm:$0x1]
        %v2343 = vld [vmem:[%s221 + $0x20] sm:$0xf]
        %v2344 = vld [vmem:[%s221 + $0x24] sm:$0x1]
        %v2345 = vld [vmem:[%s221 + $0x28] sm:$0xf]
        %v2346 = vld [vmem:[%s221 + $0x2c] sm:$0x1]
        %v2347 = vld [vmem:[%s221 + $0x30] sm:$0xf]
        %v2348 = vld [vmem:[%s221 + $0x34] sm:$0x1]
        %v2349 = vld [vmem:[%s221 + $0x38] sm:$0xf]
        %v2350 = vld [vmem:[%s221 + $0x3c] sm:$0x1]
        %v2351 = vld [vmem:[%s221 + $0x40] sm:$0xf]
        %v2352 = vld [vmem:[%s221 + $0x44] sm:$0x1]
        %v2353 = vld [vmem:[%s221 + $0x48] sm:$0xf]
        %v2354 = vld [vmem:[%s221 + $0x4c] sm:$0x1]
        %v2355 = vld [vmem:[%s221 + $0x50] sm:$0xf]
        %v2356 = vld [vmem:[%s221 + $0x54] sm:$0x1]
        %v2357 = vld [vmem:[%s221 + $0x58] sm:$0xf]
        %v2358 = vld [vmem:[%s221 + $0x5c] sm:$0x1]
        %v2359 = vld [vmem:[%s221 + $0x60] sm:$0xf]
        %v2360 = vld [vmem:[%s221 + $0x64] sm:$0x1]
        %v2361 = vld [vmem:[%s221 + $0x68] sm:$0xf]
        %v2362 = vld [vmem:[%s221 + $0x6c] sm:$0x1]
        %v2363 = vld [vmem:[%s221 + $0x70] sm:$0xf]
        %v2364 = vld [vmem:[%s221 + $0x74] sm:$0x1]
        %v2365 = vld [vmem:[%s221 + $0x78] sm:$0xf]
        %v2366 = vld [vmem:[%s221 + $0x7c] sm:$0x1]
        %v2368 = vshrl.u32 %v2335, 16
        %v2370 = vrot.slane %v2368, 4
        %v2371 = vshll.u32 %v2335, 16
        %v2373 = vrot.slane %v2371, 5
        %v2374 = vor.u32 %v2370, %v2373
        %v2375 = vrot.slane %v2374, 4
        %v2377 = vshll.u32 %v2336, 16
        %v2379 = vrot.slane %v2377, 5
        %v2380 = vsel %vm531, %v2375, %v2379
        %v2382 = vshrl.u32 %v2337, 16
        %v2384 = vrot.slane %v2382, 4
        %v2385 = vshll.u32 %v2337, 16
        %v2387 = vrot.slane %v2385, 5
        %v2388 = vor.u32 %v2384, %v2387
        %v2389 = vrot.slane %v2388, 4
        %v2391 = vshll.u32 %v2338, 16
        %v2393 = vrot.slane %v2391, 5
        %v2394 = vsel %vm531, %v2389, %v2393
        %v2396 = vshrl.u32 %v2339, 16
        %v2398 = vrot.slane %v2396, 4
        %v2399 = vshll.u32 %v2339, 16
        %v2401 = vrot.slane %v2399, 5
        %v2402 = vor.u32 %v2398, %v2401
        %v2403 = vrot.slane %v2402, 4
        %v2405 = vshll.u32 %v2340, 16
        %v2407 = vrot.slane %v2405, 5
        %v2408 = vsel %vm531, %v2403, %v2407
        %v2410 = vshrl.u32 %v2341, 16
        %v2412 = vrot.slane %v2410, 4
        %v2413 = vshll.u32 %v2341, 16
        %v2415 = vrot.slane %v2413, 5
        %v2416 = vor.u32 %v2412, %v2415
        %v2417 = vrot.slane %v2416, 4
        %v2419 = vshll.u32 %v2342, 16
        %v2421 = vrot.slane %v2419, 5
        %v2422 = vsel %vm531, %v2417, %v2421
        %v2424 = vshrl.u32 %v2343, 16
        %v2426 = vrot.slane %v2424, 4
        %v2427 = vshll.u32 %v2343, 16
        %v2429 = vrot.slane %v2427, 5
        %v2430 = vor.u32 %v2426, %v2429
        %v2431 = vrot.slane %v2430, 4
        %v2433 = vshll.u32 %v2344, 16
        %v2435 = vrot.slane %v2433, 5
        %v2436 = vsel %vm531, %v2431, %v2435
        %v2438 = vshrl.u32 %v2345, 16
        %v2440 = vrot.slane %v2438, 4
        %v2441 = vshll.u32 %v2345, 16
        %v2443 = vrot.slane %v2441, 5
        %v2444 = vor.u32 %v2440, %v2443
        %v2445 = vrot.slane %v2444, 4
        %v2447 = vshll.u32 %v2346, 16
        %v2449 = vrot.slane %v2447, 5
        %v2450 = vsel %vm531, %v2445, %v2449
        %v2452 = vshrl.u32 %v2347, 16
        %v2454 = vrot.slane %v2452, 4
        %v2455 = vshll.u32 %v2347, 16
        %v2457 = vrot.slane %v2455, 5
        %v2458 = vor.u32 %v2454, %v2457
        %v2459 = vrot.slane %v2458, 4
        %v2461 = vshll.u32 %v2348, 16
        %v2463 = vrot.slane %v2461, 5
        %v2464 = vsel %vm531, %v2459, %v2463
        %v2466 = vshrl.u32 %v2349, 16
        %v2468 = vrot.slane %v2466, 4
        %v2469 = vshll.u32 %v2349, 16
        %v2471 = vrot.slane %v2469, 5
        %v2472 = vor.u32 %v2468, %v2471
        %v2473 = vrot.slane %v2472, 4
        %v2475 = vshll.u32 %v2350, 16
        %v2477 = vrot.slane %v2475, 5
        %v2478 = vsel %vm531, %v2473, %v2477
        %v2480 = vshrl.u32 %v2351, 16
        %v2482 = vrot.slane %v2480, 4
        %v2483 = vshll.u32 %v2351, 16
        %v2485 = vrot.slane %v2483, 5
        %v2486 = vor.u32 %v2482, %v2485
        %v2487 = vrot.slane %v2486, 4
        %v2489 = vshll.u32 %v2352, 16
        %v2491 = vrot.slane %v2489, 5
        %v2492 = vsel %vm531, %v2487, %v2491
        %v2494 = vshrl.u32 %v2353, 16
        %v2496 = vrot.slane %v2494, 4
        %v2497 = vshll.u32 %v2353, 16
        %v2499 = vrot.slane %v2497, 5
        %v2500 = vor.u32 %v2496, %v2499
        %v2501 = vrot.slane %v2500, 4
        %v2503 = vshll.u32 %v2354, 16
        %v2505 = vrot.slane %v2503, 5
        %v2506 = vsel %vm531, %v2501, %v2505
        %v2508 = vshrl.u32 %v2355, 16
        %v2510 = vrot.slane %v2508, 4
        %v2511 = vshll.u32 %v2355, 16
        %v2513 = vrot.slane %v2511, 5
        %v2514 = vor.u32 %v2510, %v2513
        %v2515 = vrot.slane %v2514, 4
        %v2517 = vshll.u32 %v2356, 16
        %v2519 = vrot.slane %v2517, 5
        %v2520 = vsel %vm531, %v2515, %v2519
        %v2522 = vshrl.u32 %v2357, 16
        %v2524 = vrot.slane %v2522, 4
        %v2525 = vshll.u32 %v2357, 16
        %v2527 = vrot.slane %v2525, 5
        %v2528 = vor.u32 %v2524, %v2527
        %v2529 = vrot.slane %v2528, 4
        %v2531 = vshll.u32 %v2358, 16
        %v2533 = vrot.slane %v2531, 5
        %v2534 = vsel %vm531, %v2529, %v2533
        %v2536 = vshrl.u32 %v2359, 16
        %v2538 = vrot.slane %v2536, 4
        %v2539 = vshll.u32 %v2359, 16
        %v2541 = vrot.slane %v2539, 5
        %v2542 = vor.u32 %v2538, %v2541
        %v2543 = vrot.slane %v2542, 4
        %v2545 = vshll.u32 %v2360, 16
        %v2547 = vrot.slane %v2545, 5
        %v2548 = vsel %vm531, %v2543, %v2547
        %v2550 = vshrl.u32 %v2361, 16
        %v2552 = vrot.slane %v2550, 4
        %v2553 = vshll.u32 %v2361, 16
        %v2555 = vrot.slane %v2553, 5
        %v2556 = vor.u32 %v2552, %v2555
        %v2557 = vrot.slane %v2556, 4
        %v2559 = vshll.u32 %v2362, 16
        %v2561 = vrot.slane %v2559, 5
        %v2562 = vsel %vm531, %v2557, %v2561
        %v2564 = vshrl.u32 %v2363, 16
        %v2566 = vrot.slane %v2564, 4
        %v2567 = vshll.u32 %v2363, 16
        %v2569 = vrot.slane %v2567, 5
        %v2570 = vor.u32 %v2566, %v2569
        %v2571 = vrot.slane %v2570, 4
        %v2573 = vshll.u32 %v2364, 16
        %v2575 = vrot.slane %v2573, 5
        %v2576 = vsel %vm531, %v2571, %v2575
        %v2578 = vshrl.u32 %v2365, 16
        %v2580 = vrot.slane %v2578, 4
        %v2581 = vshll.u32 %v2365, 16
        %v2583 = vrot.slane %v2581, 5
        %v2584 = vor.u32 %v2580, %v2583
        %v2585 = vrot.slane %v2584, 4
        %v2587 = vshll.u32 %v2366, 16
        %v2589 = vrot.slane %v2587, 5
        %v2590 = vsel %vm531, %v2585, %v2589
        %v2591 = vld [vmem:[%s261] sm:$0xf]
        %v2592 = vunpack.c.l.b16 %v2380
        %v2593 = vunpack.c.l.b16 %v2394
        %v2594 = vunpack.c.l.b16 %v2408
        %v2595 = vunpack.c.l.b16 %v2422
        %v2596 = vunpack.c.l.b16 %v2436
        %v2597 = vunpack.c.l.b16 %v2450
        %v2598 = vunpack.c.l.b16 %v2464
        %v2599 = vunpack.c.l.b16 %v2478
        %v2600 = vunpack.c.l.b16 %v2492
        %v2601 = vunpack.c.l.b16 %v2506
        %v2602 = vunpack.c.l.b16 %v2520
        %v2603 = vunpack.c.l.b16 %v2534
        %v2604 = vunpack.c.l.b16 %v2548
        %v2605 = vunpack.c.l.b16 %v2562
        %v2606 = vunpack.c.l.b16 %v2576
        %v2607 = vunpack.c.l.b16 %v2590
        %v2608 = vpack.c.b16 %v2593, %v2592
        %v2609 = vpack.c.b16 %v2595, %v2594
        %v2610 = vpack.c.b16 %v2597, %v2596
        %v2611 = vpack.c.b16 %v2599, %v2598
        %v2612 = vpack.c.b16 %v2601, %v2600
        %v2613 = vpack.c.b16 %v2603, %v2602
        %v2614 = vpack.c.b16 %v2605, %v2604
        %v2615 = vpack.c.b16 %v2607, %v2606
        %v2617 = vsel %vm303, %v2608, 0
        %v2620 = vsel %vm303, %v2609, 0
        %v2623 = vsel %vm303, %v2610, 0
        %v2626 = vsel %vm303, %v2611, 0
        %v2629 = vsel %vm303, %v2612, 0
        %v2632 = vsel %vm303, %v2613, 0
        %v2635 = vsel %vm303, %v2614, 0
        %v2638 = vsel %vm303, %v2615, 0
        %v2641 = vsel %vm328, %v2591, 0
        %2643 = vmatpush.bf16.msra.mxu0 0
        %2644 = vmatpush.bf16.msra.mxu0 0
        %2645 = vmatpush.bf16.msra.mxu0 0
        %2646 = vmatpush.bf16.msra.mxu0 0
        %2647 = vmatpush.bf16.msra.mxu0 0
        %2648 = vmatpush.bf16.msra.mxu0 0
        %2649 = vmatpush.bf16.msra.mxu0 0
        %2650 = vmatpush.bf16.msra.mxu0 %v2641
        %2651 = vmatmul.bf16.gmra.mxu0 %v2617
        %v2652 = vpop.f32.mrf.mxu0
        %v2653 = vadd.f32 0.0, %v2652
        %v2654 = vpop.f32.mrf.mxu0
        %v2655 = vadd.f32 0.0, %v2654
        %2656 = vmatmul.bf16.gmra.mxu0 %v2620
        %v2657 = vpop.f32.mrf.mxu0
        %v2658 = vadd.f32 0.0, %v2657
        %v2659 = vpop.f32.mrf.mxu0
        %v2660 = vadd.f32 0.0, %v2659
        %2661 = vmatmul.bf16.gmra.mxu0 %v2623
        %v2662 = vpop.f32.mrf.mxu0
        %v2663 = vadd.f32 0.0, %v2662
        %v2664 = vpop.f32.mrf.mxu0
        %v2665 = vadd.f32 0.0, %v2664
        %2666 = vmatmul.bf16.gmra.mxu0 %v2626
        %v2667 = vpop.f32.mrf.mxu0
        %v2668 = vadd.f32 0.0, %v2667
        %v2669 = vpop.f32.mrf.mxu0
        %v2670 = vadd.f32 0.0, %v2669
        %2671 = vmatmul.bf16.gmra.mxu0 %v2629
        %v2672 = vpop.f32.mrf.mxu0
        %v2673 = vadd.f32 0.0, %v2672
        %v2674 = vpop.f32.mrf.mxu0
        %v2675 = vadd.f32 0.0, %v2674
        %2676 = vmatmul.bf16.gmra.mxu0 %v2632
        %v2677 = vpop.f32.mrf.mxu0
        %v2678 = vadd.f32 0.0, %v2677
        %v2679 = vpop.f32.mrf.mxu0
        %v2680 = vadd.f32 0.0, %v2679
        %2681 = vmatmul.bf16.gmra.mxu0 %v2635
        %v2682 = vpop.f32.mrf.mxu0
        %v2683 = vadd.f32 0.0, %v2682
        %v2684 = vpop.f32.mrf.mxu0
        %v2685 = vadd.f32 0.0, %v2684
        %2686 = vmatmul.bf16.gmra.mxu0 %v2638
        %v2687 = vpop.f32.mrf.mxu0
        %v2688 = vadd.f32 0.0, %v2687
        %v2689 = vpop.f32.mrf.mxu0
        %v2690 = vadd.f32 0.0, %v2689
        %2691 = vdwg.mxu0
        %v2708 = vunpack.c.l.b16 %v2318
        %v2709 = vunpack.c.l.b16 %v2319
        %v2710 = vunpack.c.l.b16 %v2320
        %v2711 = vunpack.c.l.b16 %v2321
        %v2712 = vunpack.c.l.b16 %v2322
        %v2713 = vunpack.c.l.b16 %v2323
        %v2714 = vunpack.c.l.b16 %v2324
        %v2715 = vunpack.c.l.b16 %v2325
        %v2716 = vunpack.c.l.b16 %v2326
        %v2717 = vunpack.c.l.b16 %v2327
        %v2718 = vunpack.c.l.b16 %v2328
        %v2719 = vunpack.c.l.b16 %v2329
        %v2720 = vunpack.c.l.b16 %v2330
        %v2721 = vunpack.c.l.b16 %v2331
        %v2722 = vunpack.c.l.b16 %v2332
        %v2723 = vunpack.c.l.b16 %v2333
        %v2724 = vpack.c.b16 %v2709, %v2708
        %v2725 = vpack.c.b16 %v2711, %v2710
        %v2726 = vpack.c.b16 %v2713, %v2712
        %v2727 = vpack.c.b16 %v2715, %v2714
        %v2728 = vpack.c.b16 %v2717, %v2716
        %v2729 = vpack.c.b16 %v2719, %v2718
        %v2730 = vpack.c.b16 %v2721, %v2720
        %v2731 = vpack.c.b16 %v2723, %v2722
        %v2733 = vsel %vm303, %v2724, 0
        %v2736 = vsel %vm303, %v2725, 0
        %v2739 = vsel %vm303, %v2726, 0
        %v2742 = vsel %vm303, %v2727, 0
        %v2745 = vsel %vm303, %v2728, 0
        %v2748 = vsel %vm303, %v2729, 0
        %v2751 = vsel %vm303, %v2730, 0
        %v2754 = vsel %vm303, %v2731, 0
        %v2757 = vsel %vm328, %v2334, 0
        %2759 = vmatpush.bf16.msra.mxu0 0
        %2760 = vmatpush.bf16.msra.mxu0 0
        %2761 = vmatpush.bf16.msra.mxu0 0
        %2762 = vmatpush.bf16.msra.mxu0 0
        %2763 = vmatpush.bf16.msra.mxu0 0
        %2764 = vmatpush.bf16.msra.mxu0 0
        %2765 = vmatpush.bf16.msra.mxu0 0
        %2766 = vmatpush.bf16.msra.mxu0 %v2757
        %2767 = vmatmul.bf16.gmra.mxu0 %v2733
        %v2768 = vpop.f32.mrf.mxu0
        %v2769 = vadd.f32 %v2653, %v2768
        %v2770 = vpop.f32.mrf.mxu0
        %v2771 = vadd.f32 %v2655, %v2770
        %2772 = vmatmul.bf16.gmra.mxu0 %v2736
        %v2773 = vpop.f32.mrf.mxu0
        %v2774 = vadd.f32 %v2658, %v2773
        %v2775 = vpop.f32.mrf.mxu0
        %v2776 = vadd.f32 %v2660, %v2775
        %2777 = vmatmul.bf16.gmra.mxu0 %v2739
        %v2778 = vpop.f32.mrf.mxu0
        %v2779 = vadd.f32 %v2663, %v2778
        %v2780 = vpop.f32.mrf.mxu0
        %v2781 = vadd.f32 %v2665, %v2780
        %2782 = vmatmul.bf16.gmra.mxu0 %v2742
        %v2783 = vpop.f32.mrf.mxu0
        %v2784 = vadd.f32 %v2668, %v2783
        %v2785 = vpop.f32.mrf.mxu0
        %v2786 = vadd.f32 %v2670, %v2785
        %2787 = vmatmul.bf16.gmra.mxu0 %v2745
        %v2788 = vpop.f32.mrf.mxu0
        %v2789 = vadd.f32 %v2673, %v2788
        %v2790 = vpop.f32.mrf.mxu0
        %v2791 = vadd.f32 %v2675, %v2790
        %2792 = vmatmul.bf16.gmra.mxu0 %v2748
        %v2793 = vpop.f32.mrf.mxu0
        %v2794 = vadd.f32 %v2678, %v2793
        %v2795 = vpop.f32.mrf.mxu0
        %v2796 = vadd.f32 %v2680, %v2795
        %2797 = vmatmul.bf16.gmra.mxu0 %v2751
        %v2798 = vpop.f32.mrf.mxu0
        %v2799 = vadd.f32 %v2683, %v2798
        %v2800 = vpop.f32.mrf.mxu0
        %v2801 = vadd.f32 %v2685, %v2800
        %2802 = vmatmul.bf16.gmra.mxu0 %v2754
        %v2803 = vpop.f32.mrf.mxu0
        %v2804 = vadd.f32 %v2688, %v2803
        %v2805 = vpop.f32.mrf.mxu0
        %v2806 = vadd.f32 %v2690, %v2805
        %2807 = vdwg.mxu0
        %v2808 = vld [vmem:[%s226] sm:$0xf]
        %v2809 = vld [vmem:[%s226 + $0x4] sm:$0x1]
        %v2810 = vld [vmem:[%s226 + $0x8] sm:$0xf]
        %v2811 = vld [vmem:[%s226 + $0xc] sm:$0x1]
        %v2812 = vld [vmem:[%s226 + $0x10] sm:$0xf]
        %v2813 = vld [vmem:[%s226 + $0x14] sm:$0x1]
        %v2814 = vld [vmem:[%s226 + $0x18] sm:$0xf]
        %v2815 = vld [vmem:[%s226 + $0x1c] sm:$0x1]
        %v2816 = vld [vmem:[%s226 + $0x20] sm:$0xf]
        %v2817 = vld [vmem:[%s226 + $0x24] sm:$0x1]
        %v2818 = vld [vmem:[%s226 + $0x28] sm:$0xf]
        %v2819 = vld [vmem:[%s226 + $0x2c] sm:$0x1]
        %v2820 = vld [vmem:[%s226 + $0x30] sm:$0xf]
        %v2821 = vld [vmem:[%s226 + $0x34] sm:$0x1]
        %v2822 = vld [vmem:[%s226 + $0x38] sm:$0xf]
        %v2823 = vld [vmem:[%s226 + $0x3c] sm:$0x1]
        %v2824 = vld [vmem:[%s226 + $0x40] sm:$0xf]
        %v2825 = vld [vmem:[%s226 + $0x44] sm:$0x1]
        %v2826 = vld [vmem:[%s226 + $0x48] sm:$0xf]
        %v2827 = vld [vmem:[%s226 + $0x4c] sm:$0x1]
        %v2828 = vld [vmem:[%s226 + $0x50] sm:$0xf]
        %v2829 = vld [vmem:[%s226 + $0x54] sm:$0x1]
        %v2830 = vld [vmem:[%s226 + $0x58] sm:$0xf]
        %v2831 = vld [vmem:[%s226 + $0x5c] sm:$0x1]
        %v2832 = vld [vmem:[%s226 + $0x60] sm:$0xf]
        %v2833 = vld [vmem:[%s226 + $0x64] sm:$0x1]
        %v2834 = vld [vmem:[%s226 + $0x68] sm:$0xf]
        %v2835 = vld [vmem:[%s226 + $0x6c] sm:$0x1]
        %v2836 = vld [vmem:[%s226 + $0x70] sm:$0xf]
        %v2837 = vld [vmem:[%s226 + $0x74] sm:$0x1]
        %v2838 = vld [vmem:[%s226 + $0x78] sm:$0xf]
        %v2839 = vld [vmem:[%s226 + $0x7c] sm:$0x1]
        %v2841 = vshrl.u32 %v2808, 16
        %v2843 = vrot.slane %v2841, 4
        %v2844 = vshll.u32 %v2808, 16
        %v2846 = vrot.slane %v2844, 5
        %v2847 = vor.u32 %v2843, %v2846
        %v2848 = vrot.slane %v2847, 4
        %v2850 = vshll.u32 %v2809, 16
        %v2852 = vrot.slane %v2850, 5
        %v2853 = vsel %vm531, %v2848, %v2852
        %v2855 = vshrl.u32 %v2810, 16
        %v2857 = vrot.slane %v2855, 4
        %v2858 = vshll.u32 %v2810, 16
        %v2860 = vrot.slane %v2858, 5
        %v2861 = vor.u32 %v2857, %v2860
        %v2862 = vrot.slane %v2861, 4
        %v2864 = vshll.u32 %v2811, 16
        %v2866 = vrot.slane %v2864, 5
        %v2867 = vsel %vm531, %v2862, %v2866
        %v2869 = vshrl.u32 %v2812, 16
        %v2871 = vrot.slane %v2869, 4
        %v2872 = vshll.u32 %v2812, 16
        %v2874 = vrot.slane %v2872, 5
        %v2875 = vor.u32 %v2871, %v2874
        %v2876 = vrot.slane %v2875, 4
        %v2878 = vshll.u32 %v2813, 16
        %v2880 = vrot.slane %v2878, 5
        %v2881 = vsel %vm531, %v2876, %v2880
        %v2883 = vshrl.u32 %v2814, 16
        %v2885 = vrot.slane %v2883, 4
        %v2886 = vshll.u32 %v2814, 16
        %v2888 = vrot.slane %v2886, 5
        %v2889 = vor.u32 %v2885, %v2888
        %v2890 = vrot.slane %v2889, 4
        %v2892 = vshll.u32 %v2815, 16
        %v2894 = vrot.slane %v2892, 5
        %v2895 = vsel %vm531, %v2890, %v2894
        %v2897 = vshrl.u32 %v2816, 16
        %v2899 = vrot.slane %v2897, 4
        %v2900 = vshll.u32 %v2816, 16
        %v2902 = vrot.slane %v2900, 5
        %v2903 = vor.u32 %v2899, %v2902
        %v2904 = vrot.slane %v2903, 4
        %v2906 = vshll.u32 %v2817, 16
        %v2908 = vrot.slane %v2906, 5
        %v2909 = vsel %vm531, %v2904, %v2908
        %v2911 = vshrl.u32 %v2818, 16
        %v2913 = vrot.slane %v2911, 4
        %v2914 = vshll.u32 %v2818, 16
        %v2916 = vrot.slane %v2914, 5
        %v2917 = vor.u32 %v2913, %v2916
        %v2918 = vrot.slane %v2917, 4
        %v2920 = vshll.u32 %v2819, 16
        %v2922 = vrot.slane %v2920, 5
        %v2923 = vsel %vm531, %v2918, %v2922
        %v2925 = vshrl.u32 %v2820, 16
        %v2927 = vrot.slane %v2925, 4
        %v2928 = vshll.u32 %v2820, 16
        %v2930 = vrot.slane %v2928, 5
        %v2931 = vor.u32 %v2927, %v2930
        %v2932 = vrot.slane %v2931, 4
        %v2934 = vshll.u32 %v2821, 16
        %v2936 = vrot.slane %v2934, 5
        %v2937 = vsel %vm531, %v2932, %v2936
        %v2939 = vshrl.u32 %v2822, 16
        %v2941 = vrot.slane %v2939, 4
        %v2942 = vshll.u32 %v2822, 16
        %v2944 = vrot.slane %v2942, 5
        %v2945 = vor.u32 %v2941, %v2944
        %v2946 = vrot.slane %v2945, 4
        %v2948 = vshll.u32 %v2823, 16
        %v2950 = vrot.slane %v2948, 5
        %v2951 = vsel %vm531, %v2946, %v2950
        %v2953 = vshrl.u32 %v2824, 16
        %v2955 = vrot.slane %v2953, 4
        %v2956 = vshll.u32 %v2824, 16
        %v2958 = vrot.slane %v2956, 5
        %v2959 = vor.u32 %v2955, %v2958
        %v2960 = vrot.slane %v2959, 4
        %v2962 = vshll.u32 %v2825, 16
        %v2964 = vrot.slane %v2962, 5
        %v2965 = vsel %vm531, %v2960, %v2964
        %v2967 = vshrl.u32 %v2826, 16
        %v2969 = vrot.slane %v2967, 4
        %v2970 = vshll.u32 %v2826, 16
        %v2972 = vrot.slane %v2970, 5
        %v2973 = vor.u32 %v2969, %v2972
        %v2974 = vrot.slane %v2973, 4
        %v2976 = vshll.u32 %v2827, 16
        %v2978 = vrot.slane %v2976, 5
        %v2979 = vsel %vm531, %v2974, %v2978
        %v2981 = vshrl.u32 %v2828, 16
        %v2983 = vrot.slane %v2981, 4
        %v2984 = vshll.u32 %v2828, 16
        %v2986 = vrot.slane %v2984, 5
        %v2987 = vor.u32 %v2983, %v2986
        %v2988 = vrot.slane %v2987, 4
        %v2990 = vshll.u32 %v2829, 16
        %v2992 = vrot.slane %v2990, 5
        %v2993 = vsel %vm531, %v2988, %v2992
        %v2995 = vshrl.u32 %v2830, 16
        %v2997 = vrot.slane %v2995, 4
        %v2998 = vshll.u32 %v2830, 16
        %v3000 = vrot.slane %v2998, 5
        %v3001 = vor.u32 %v2997, %v3000
        %v3002 = vrot.slane %v3001, 4
        %v3004 = vshll.u32 %v2831, 16
        %v3006 = vrot.slane %v3004, 5
        %v3007 = vsel %vm531, %v3002, %v3006
        %v3009 = vshrl.u32 %v2832, 16
        %v3011 = vrot.slane %v3009, 4
        %v3012 = vshll.u32 %v2832, 16
        %v3014 = vrot.slane %v3012, 5
        %v3015 = vor.u32 %v3011, %v3014
        %v3016 = vrot.slane %v3015, 4
        %v3018 = vshll.u32 %v2833, 16
        %v3020 = vrot.slane %v3018, 5
        %v3021 = vsel %vm531, %v3016, %v3020
        %v3023 = vshrl.u32 %v2834, 16
        %v3025 = vrot.slane %v3023, 4
        %v3026 = vshll.u32 %v2834, 16
        %v3028 = vrot.slane %v3026, 5
        %v3029 = vor.u32 %v3025, %v3028
        %v3030 = vrot.slane %v3029, 4
        %v3032 = vshll.u32 %v2835, 16
        %v3034 = vrot.slane %v3032, 5
        %v3035 = vsel %vm531, %v3030, %v3034
        %v3037 = vshrl.u32 %v2836, 16
        %v3039 = vrot.slane %v3037, 4
        %v3040 = vshll.u32 %v2836, 16
        %v3042 = vrot.slane %v3040, 5
        %v3043 = vor.u32 %v3039, %v3042
        %v3044 = vrot.slane %v3043, 4
        %v3046 = vshll.u32 %v2837, 16
        %v3048 = vrot.slane %v3046, 5
        %v3049 = vsel %vm531, %v3044, %v3048
        %v3051 = vshrl.u32 %v2838, 16
        %v3053 = vrot.slane %v3051, 4
        %v3054 = vshll.u32 %v2838, 16
        %v3056 = vrot.slane %v3054, 5
        %v3057 = vor.u32 %v3053, %v3056
        %v3058 = vrot.slane %v3057, 4
        %v3060 = vshll.u32 %v2839, 16
        %v3062 = vrot.slane %v3060, 5
        %v3063 = vsel %vm531, %v3058, %v3062
        %v3064 = vld [vmem:[%s756] sm:$0xf]
        %v3065 = vunpack.c.l.b16 %v2853
        %v3066 = vunpack.c.l.b16 %v2867
        %v3067 = vunpack.c.l.b16 %v2881
        %v3068 = vunpack.c.l.b16 %v2895
        %v3069 = vunpack.c.l.b16 %v2909
        %v3070 = vunpack.c.l.b16 %v2923
        %v3071 = vunpack.c.l.b16 %v2937
        %v3072 = vunpack.c.l.b16 %v2951
        %v3073 = vunpack.c.l.b16 %v2965
        %v3074 = vunpack.c.l.b16 %v2979
        %v3075 = vunpack.c.l.b16 %v2993
        %v3076 = vunpack.c.l.b16 %v3007
        %v3077 = vunpack.c.l.b16 %v3021
        %v3078 = vunpack.c.l.b16 %v3035
        %v3079 = vunpack.c.l.b16 %v3049
        %v3080 = vunpack.c.l.b16 %v3063
        %v3081 = vpack.c.b16 %v3066, %v3065
        %v3082 = vpack.c.b16 %v3068, %v3067
        %v3083 = vpack.c.b16 %v3070, %v3069
        %v3084 = vpack.c.b16 %v3072, %v3071
        %v3085 = vpack.c.b16 %v3074, %v3073
        %v3086 = vpack.c.b16 %v3076, %v3075
        %v3087 = vpack.c.b16 %v3078, %v3077
        %v3088 = vpack.c.b16 %v3080, %v3079
        %v3090 = vsel %vm303, %v3081, 0
        %v3093 = vsel %vm303, %v3082, 0
        %v3096 = vsel %vm303, %v3083, 0
        %v3099 = vsel %vm303, %v3084, 0
        %v3102 = vsel %vm303, %v3085, 0
        %v3105 = vsel %vm303, %v3086, 0
        %v3108 = vsel %vm303, %v3087, 0
        %v3111 = vsel %vm303, %v3088, 0
        %v3114 = vsel %vm328, %v3064, 0
        %3116 = vmatpush.bf16.msra.mxu0 0
        %3117 = vmatpush.bf16.msra.mxu0 0
        %3118 = vmatpush.bf16.msra.mxu0 0
        %3119 = vmatpush.bf16.msra.mxu0 0
        %3120 = vmatpush.bf16.msra.mxu0 0
        %3121 = vmatpush.bf16.msra.mxu0 0
        %3122 = vmatpush.bf16.msra.mxu0 0
        %3123 = vmatpush.bf16.msra.mxu0 %v3114
        %3124 = vmatmul.bf16.gmra.mxu0 %v3090
        %v3125 = vpop.f32.mrf.mxu0
        %v3126 = vadd.f32 0.0, %v3125
        %v3127 = vpop.f32.mrf.mxu0
        %v3128 = vadd.f32 0.0, %v3127
        %3129 = vmatmul.bf16.gmra.mxu0 %v3093
        %v3130 = vpop.f32.mrf.mxu0
        %v3131 = vadd.f32 0.0, %v3130
        %v3132 = vpop.f32.mrf.mxu0
        %v3133 = vadd.f32 0.0, %v3132
        %3134 = vmatmul.bf16.gmra.mxu0 %v3096
        %v3135 = vpop.f32.mrf.mxu0
        %v3136 = vadd.f32 0.0, %v3135
        %v3137 = vpop.f32.mrf.mxu0
        %v3138 = vadd.f32 0.0, %v3137
        %3139 = vmatmul.bf16.gmra.mxu0 %v3099
        %v3140 = vpop.f32.mrf.mxu0
        %v3141 = vadd.f32 0.0, %v3140
        %v3142 = vpop.f32.mrf.mxu0
        %v3143 = vadd.f32 0.0, %v3142
        %3144 = vmatmul.bf16.gmra.mxu0 %v3102
        %v3145 = vpop.f32.mrf.mxu0
        %v3146 = vadd.f32 0.0, %v3145
        %v3147 = vpop.f32.mrf.mxu0
        %v3148 = vadd.f32 0.0, %v3147
        %3149 = vmatmul.bf16.gmra.mxu0 %v3105
        %v3150 = vpop.f32.mrf.mxu0
        %v3151 = vadd.f32 0.0, %v3150
        %v3152 = vpop.f32.mrf.mxu0
        %v3153 = vadd.f32 0.0, %v3152
        %3154 = vmatmul.bf16.gmra.mxu0 %v3108
        %v3155 = vpop.f32.mrf.mxu0
        %v3156 = vadd.f32 0.0, %v3155
        %v3157 = vpop.f32.mrf.mxu0
        %v3158 = vadd.f32 0.0, %v3157
        %3159 = vmatmul.bf16.gmra.mxu0 %v3111
        %v3160 = vpop.f32.mrf.mxu0
        %v3161 = vadd.f32 0.0, %v3160
        %v3162 = vpop.f32.mrf.mxu0
        %v3163 = vadd.f32 0.0, %v3162
        %3164 = vdwg.mxu0
        %v3165 = vadd.f32 %v2769, %v3126
        %v3166 = vadd.f32 %v2771, %v3128
        %v3167 = vadd.f32 %v2774, %v3131
        %v3168 = vadd.f32 %v2776, %v3133
        %v3169 = vadd.f32 %v2779, %v3136
        %v3170 = vadd.f32 %v2781, %v3138
        %v3171 = vadd.f32 %v2784, %v3141
        %v3172 = vadd.f32 %v2786, %v3143
        %v3173 = vadd.f32 %v2789, %v3146
        %v3174 = vadd.f32 %v2791, %v3148
        %v3175 = vadd.f32 %v2794, %v3151
        %v3176 = vadd.f32 %v2796, %v3153
        %v3177 = vadd.f32 %v2799, %v3156
        %v3178 = vadd.f32 %v2801, %v3158
        %v3179 = vadd.f32 %v2804, %v3161
        %v3180 = vadd.f32 %v2806, %v3163
        %v3181 = vld [vmem:[%s1025] sm:$0xf]
        %v3182 = vld [vmem:[%s1025 + $0x8] sm:$0xf]
        %v3183 = vld [vmem:[%s1025 + $0x10] sm:$0xf]
        %v3184 = vld [vmem:[%s1025 + $0x18] sm:$0xf]
        %v3185 = vld [vmem:[%s1025 + $0x20] sm:$0xf]
        %v3186 = vld [vmem:[%s1025 + $0x28] sm:$0xf]
        %v3187 = vld [vmem:[%s1025 + $0x30] sm:$0xf]
        %v3188 = vld [vmem:[%s1025 + $0x38] sm:$0xf]
        %v3189 = vld [vmem:[%s1025 + $0x40] sm:$0xf]
        %v3190 = vld [vmem:[%s1025 + $0x48] sm:$0xf]
        %v3191 = vld [vmem:[%s1025 + $0x50] sm:$0xf]
        %v3192 = vld [vmem:[%s1025 + $0x58] sm:$0xf]
        %v3193 = vld [vmem:[%s1025 + $0x60] sm:$0xf]
        %v3194 = vld [vmem:[%s1025 + $0x68] sm:$0xf]
        %v3195 = vld [vmem:[%s1025 + $0x70] sm:$0xf]
        %v3196 = vld [vmem:[%s1025 + $0x78] sm:$0xf]
        %v3197 = vld [vmem:[%s891] sm:$0xf]
        %v3214 = vunpack.c.l.b16 %v3181
        %v3215 = vunpack.c.l.b16 %v3182
        %v3216 = vunpack.c.l.b16 %v3183
        %v3217 = vunpack.c.l.b16 %v3184
        %v3218 = vunpack.c.l.b16 %v3185
        %v3219 = vunpack.c.l.b16 %v3186
        %v3220 = vunpack.c.l.b16 %v3187
        %v3221 = vunpack.c.l.b16 %v3188
        %v3222 = vunpack.c.l.b16 %v3189
        %v3223 = vunpack.c.l.b16 %v3190
        %v3224 = vunpack.c.l.b16 %v3191
        %v3225 = vunpack.c.l.b16 %v3192
        %v3226 = vunpack.c.l.b16 %v3193
        %v3227 = vunpack.c.l.b16 %v3194
        %v3228 = vunpack.c.l.b16 %v3195
        %v3229 = vunpack.c.l.b16 %v3196
        %v3230 = vpack.c.b16 %v3215, %v3214
        %v3231 = vpack.c.b16 %v3217, %v3216
        %v3232 = vpack.c.b16 %v3219, %v3218
        %v3233 = vpack.c.b16 %v3221, %v3220
        %v3234 = vpack.c.b16 %v3223, %v3222
        %v3235 = vpack.c.b16 %v3225, %v3224
        %v3236 = vpack.c.b16 %v3227, %v3226
        %v3237 = vpack.c.b16 %v3229, %v3228
        %v3239 = vsel %vm303, %v3230, 0
        %v3242 = vsel %vm303, %v3231, 0
        %v3245 = vsel %vm303, %v3232, 0
        %v3248 = vsel %vm303, %v3233, 0
        %v3251 = vsel %vm303, %v3234, 0
        %v3254 = vsel %vm303, %v3235, 0
        %v3257 = vsel %vm303, %v3236, 0
        %v3260 = vsel %vm303, %v3237, 0
        %v3263 = vsel %vm328, %v3197, 0
        %3265 = vmatpush.bf16.msra.mxu0 0
        %3266 = vmatpush.bf16.msra.mxu0 0
        %3267 = vmatpush.bf16.msra.mxu0 0
        %3268 = vmatpush.bf16.msra.mxu0 0
        %3269 = vmatpush.bf16.msra.mxu0 0
        %3270 = vmatpush.bf16.msra.mxu0 0
        %3271 = vmatpush.bf16.msra.mxu0 0
        %3272 = vmatpush.bf16.msra.mxu0 %v3263
        %3273 = vmatmul.bf16.gmra.mxu0 %v3239
        %v3274 = vpop.f32.mrf.mxu0
        %v3275 = vadd.f32 0.0, %v3274
        %v3276 = vpop.f32.mrf.mxu0
        %v3277 = vadd.f32 0.0, %v3276
        %3278 = vmatmul.bf16.gmra.mxu0 %v3242
        %v3279 = vpop.f32.mrf.mxu0
        %v3280 = vadd.f32 0.0, %v3279
        %v3281 = vpop.f32.mrf.mxu0
        %v3282 = vadd.f32 0.0, %v3281
        %3283 = vmatmul.bf16.gmra.mxu0 %v3245
        %v3284 = vpop.f32.mrf.mxu0
        %v3285 = vadd.f32 0.0, %v3284
        %v3286 = vpop.f32.mrf.mxu0
        %v3287 = vadd.f32 0.0, %v3286
        %3288 = vmatmul.bf16.gmra.mxu0 %v3248
        %v3289 = vpop.f32.mrf.mxu0
        %v3290 = vadd.f32 0.0, %v3289
        %v3291 = vpop.f32.mrf.mxu0
        %v3292 = vadd.f32 0.0, %v3291
        %3293 = vmatmul.bf16.gmra.mxu0 %v3251
        %v3294 = vpop.f32.mrf.mxu0
        %v3295 = vadd.f32 0.0, %v3294
        %v3296 = vpop.f32.mrf.mxu0
        %v3297 = vadd.f32 0.0, %v3296
        %3298 = vmatmul.bf16.gmra.mxu0 %v3254
        %v3299 = vpop.f32.mrf.mxu0
        %v3300 = vadd.f32 0.0, %v3299
        %v3301 = vpop.f32.mrf.mxu0
        %v3302 = vadd.f32 0.0, %v3301
        %3303 = vmatmul.bf16.gmra.mxu0 %v3257
        %v3304 = vpop.f32.mrf.mxu0
        %v3305 = vadd.f32 0.0, %v3304
        %v3306 = vpop.f32.mrf.mxu0
        %v3307 = vadd.f32 0.0, %v3306
        %3308 = vmatmul.bf16.gmra.mxu0 %v3260
        %v3309 = vpop.f32.mrf.mxu0
        %v3310 = vadd.f32 0.0, %v3309
        %v3311 = vpop.f32.mrf.mxu0
        %v3312 = vadd.f32 0.0, %v3311
        %3313 = vdwg.mxu0
        %v3314 = vadd.f32 %v3165, %v3275
        %v3315 = vadd.f32 %v3166, %v3277
        %v3316 = vadd.f32 %v3167, %v3280
        %v3317 = vadd.f32 %v3168, %v3282
        %v3318 = vadd.f32 %v3169, %v3285
        %v3319 = vadd.f32 %v3170, %v3287
        %v3320 = vadd.f32 %v3171, %v3290
        %v3321 = vadd.f32 %v3172, %v3292
        %v3322 = vadd.f32 %v3173, %v3295
        %v3323 = vadd.f32 %v3174, %v3297
        %v3324 = vadd.f32 %v3175, %v3300
        %v3325 = vadd.f32 %v3176, %v3302
        %v3326 = vadd.f32 %v3177, %v3305
        %v3327 = vadd.f32 %v3178, %v3307
        %v3328 = vadd.f32 %v3179, %v3310
        %v3329 = vadd.f32 %v3180, %v3312
        %v3330 = vld [vmem:[%s874] sm:$0xf]
        %v3331 = vld [vmem:[%s874 + $0x4] sm:$0x1]
        %v3332 = vld [vmem:[%s874 + $0x8] sm:$0xf]
        %v3333 = vld [vmem:[%s874 + $0xc] sm:$0x1]
        %v3334 = vld [vmem:[%s874 + $0x10] sm:$0xf]
        %v3335 = vld [vmem:[%s874 + $0x14] sm:$0x1]
        %v3336 = vld [vmem:[%s874 + $0x18] sm:$0xf]
        %v3337 = vld [vmem:[%s874 + $0x1c] sm:$0x1]
        %v3338 = vld [vmem:[%s874 + $0x20] sm:$0xf]
        %v3339 = vld [vmem:[%s874 + $0x24] sm:$0x1]
        %v3340 = vld [vmem:[%s874 + $0x28] sm:$0xf]
        %v3341 = vld [vmem:[%s874 + $0x2c] sm:$0x1]
        %v3342 = vld [vmem:[%s874 + $0x30] sm:$0xf]
        %v3343 = vld [vmem:[%s874 + $0x34] sm:$0x1]
        %v3344 = vld [vmem:[%s874 + $0x38] sm:$0xf]
        %v3345 = vld [vmem:[%s874 + $0x3c] sm:$0x1]
        %v3346 = vld [vmem:[%s874 + $0x40] sm:$0xf]
        %v3347 = vld [vmem:[%s874 + $0x44] sm:$0x1]
        %v3348 = vld [vmem:[%s874 + $0x48] sm:$0xf]
        %v3349 = vld [vmem:[%s874 + $0x4c] sm:$0x1]
        %v3350 = vld [vmem:[%s874 + $0x50] sm:$0xf]
        %v3351 = vld [vmem:[%s874 + $0x54] sm:$0x1]
        %v3352 = vld [vmem:[%s874 + $0x58] sm:$0xf]
        %v3353 = vld [vmem:[%s874 + $0x5c] sm:$0x1]
        %v3354 = vld [vmem:[%s874 + $0x60] sm:$0xf]
        %v3355 = vld [vmem:[%s874 + $0x64] sm:$0x1]
        %v3356 = vld [vmem:[%s874 + $0x68] sm:$0xf]
        %v3357 = vld [vmem:[%s874 + $0x6c] sm:$0x1]
        %v3358 = vld [vmem:[%s874 + $0x70] sm:$0xf]
        %v3359 = vld [vmem:[%s874 + $0x74] sm:$0x1]
        %v3360 = vld [vmem:[%s874 + $0x78] sm:$0xf]
        %v3361 = vld [vmem:[%s874 + $0x7c] sm:$0x1]
        %v3363 = vshrl.u32 %v3330, 16
        %v3365 = vrot.slane %v3363, 4
        %v3366 = vshll.u32 %v3330, 16
        %v3368 = vrot.slane %v3366, 5
        %v3369 = vor.u32 %v3365, %v3368
        %v3370 = vrot.slane %v3369, 4
        %v3372 = vshll.u32 %v3331, 16
        %v3374 = vrot.slane %v3372, 5
        %v3375 = vsel %vm531, %v3370, %v3374
        %v3377 = vshrl.u32 %v3332, 16
        %v3379 = vrot.slane %v3377, 4
        %v3380 = vshll.u32 %v3332, 16
        %v3382 = vrot.slane %v3380, 5
        %v3383 = vor.u32 %v3379, %v3382
        %v3384 = vrot.slane %v3383, 4
        %v3386 = vshll.u32 %v3333, 16
        %v3388 = vrot.slane %v3386, 5
        %v3389 = vsel %vm531, %v3384, %v3388
        %v3391 = vshrl.u32 %v3334, 16
        %v3393 = vrot.slane %v3391, 4
        %v3394 = vshll.u32 %v3334, 16
        %v3396 = vrot.slane %v3394, 5
        %v3397 = vor.u32 %v3393, %v3396
        %v3398 = vrot.slane %v3397, 4
        %v3400 = vshll.u32 %v3335, 16
        %v3402 = vrot.slane %v3400, 5
        %v3403 = vsel %vm531, %v3398, %v3402
        %v3405 = vshrl.u32 %v3336, 16
        %v3407 = vrot.slane %v3405, 4
        %v3408 = vshll.u32 %v3336, 16
        %v3410 = vrot.slane %v3408, 5
        %v3411 = vor.u32 %v3407, %v3410
        %v3412 = vrot.slane %v3411, 4
        %v3414 = vshll.u32 %v3337, 16
        %v3416 = vrot.slane %v3414, 5
        %v3417 = vsel %vm531, %v3412, %v3416
        %v3419 = vshrl.u32 %v3338, 16
        %v3421 = vrot.slane %v3419, 4
        %v3422 = vshll.u32 %v3338, 16
        %v3424 = vrot.slane %v3422, 5
        %v3425 = vor.u32 %v3421, %v3424
        %v3426 = vrot.slane %v3425, 4
        %v3428 = vshll.u32 %v3339, 16
        %v3430 = vrot.slane %v3428, 5
        %v3431 = vsel %vm531, %v3426, %v3430
        %v3433 = vshrl.u32 %v3340, 16
        %v3435 = vrot.slane %v3433, 4
        %v3436 = vshll.u32 %v3340, 16
        %v3438 = vrot.slane %v3436, 5
        %v3439 = vor.u32 %v3435, %v3438
        %v3440 = vrot.slane %v3439, 4
        %v3442 = vshll.u32 %v3341, 16
        %v3444 = vrot.slane %v3442, 5
        %v3445 = vsel %vm531, %v3440, %v3444
        %v3447 = vshrl.u32 %v3342, 16
        %v3449 = vrot.slane %v3447, 4
        %v3450 = vshll.u32 %v3342, 16
        %v3452 = vrot.slane %v3450, 5
        %v3453 = vor.u32 %v3449, %v3452
        %v3454 = vrot.slane %v3453, 4
        %v3456 = vshll.u32 %v3343, 16
        %v3458 = vrot.slane %v3456, 5
        %v3459 = vsel %vm531, %v3454, %v3458
        %v3461 = vshrl.u32 %v3344, 16
        %v3463 = vrot.slane %v3461, 4
        %v3464 = vshll.u32 %v3344, 16
        %v3466 = vrot.slane %v3464, 5
        %v3467 = vor.u32 %v3463, %v3466
        %v3468 = vrot.slane %v3467, 4
        %v3470 = vshll.u32 %v3345, 16
        %v3472 = vrot.slane %v3470, 5
        %v3473 = vsel %vm531, %v3468, %v3472
        %v3475 = vshrl.u32 %v3346, 16
        %v3477 = vrot.slane %v3475, 4
        %v3478 = vshll.u32 %v3346, 16
        %v3480 = vrot.slane %v3478, 5
        %v3481 = vor.u32 %v3477, %v3480
        %v3482 = vrot.slane %v3481, 4
        %v3484 = vshll.u32 %v3347, 16
        %v3486 = vrot.slane %v3484, 5
        %v3487 = vsel %vm531, %v3482, %v3486
        %v3489 = vshrl.u32 %v3348, 16
        %v3491 = vrot.slane %v3489, 4
        %v3492 = vshll.u32 %v3348, 16
        %v3494 = vrot.slane %v3492, 5
        %v3495 = vor.u32 %v3491, %v3494
        %v3496 = vrot.slane %v3495, 4
        %v3498 = vshll.u32 %v3349, 16
        %v3500 = vrot.slane %v3498, 5
        %v3501 = vsel %vm531, %v3496, %v3500
        %v3503 = vshrl.u32 %v3350, 16
        %v3505 = vrot.slane %v3503, 4
        %v3506 = vshll.u32 %v3350, 16
        %v3508 = vrot.slane %v3506, 5
        %v3509 = vor.u32 %v3505, %v3508
        %v3510 = vrot.slane %v3509, 4
        %v3512 = vshll.u32 %v3351, 16
        %v3514 = vrot.slane %v3512, 5
        %v3515 = vsel %vm531, %v3510, %v3514
        %v3517 = vshrl.u32 %v3352, 16
        %v3519 = vrot.slane %v3517, 4
        %v3520 = vshll.u32 %v3352, 16
        %v3522 = vrot.slane %v3520, 5
        %v3523 = vor.u32 %v3519, %v3522
        %v3524 = vrot.slane %v3523, 4
        %v3526 = vshll.u32 %v3353, 16
        %v3528 = vrot.slane %v3526, 5
        %v3529 = vsel %vm531, %v3524, %v3528
        %v3531 = vshrl.u32 %v3354, 16
        %v3533 = vrot.slane %v3531, 4
        %v3534 = vshll.u32 %v3354, 16
        %v3536 = vrot.slane %v3534, 5
        %v3537 = vor.u32 %v3533, %v3536
        %v3538 = vrot.slane %v3537, 4
        %v3540 = vshll.u32 %v3355, 16
        %v3542 = vrot.slane %v3540, 5
        %v3543 = vsel %vm531, %v3538, %v3542
        %v3545 = vshrl.u32 %v3356, 16
        %v3547 = vrot.slane %v3545, 4
        %v3548 = vshll.u32 %v3356, 16
        %v3550 = vrot.slane %v3548, 5
        %v3551 = vor.u32 %v3547, %v3550
        %v3552 = vrot.slane %v3551, 4
        %v3554 = vshll.u32 %v3357, 16
        %v3556 = vrot.slane %v3554, 5
        %v3557 = vsel %vm531, %v3552, %v3556
        %v3559 = vshrl.u32 %v3358, 16
        %v3561 = vrot.slane %v3559, 4
        %v3562 = vshll.u32 %v3358, 16
        %v3564 = vrot.slane %v3562, 5
        %v3565 = vor.u32 %v3561, %v3564
        %v3566 = vrot.slane %v3565, 4
        %v3568 = vshll.u32 %v3359, 16
        %v3570 = vrot.slane %v3568, 5
        %v3571 = vsel %vm531, %v3566, %v3570
        %v3573 = vshrl.u32 %v3360, 16
        %v3575 = vrot.slane %v3573, 4
        %v3576 = vshll.u32 %v3360, 16
        %v3578 = vrot.slane %v3576, 5
        %v3579 = vor.u32 %v3575, %v3578
        %v3580 = vrot.slane %v3579, 4
        %v3582 = vshll.u32 %v3361, 16
        %v3584 = vrot.slane %v3582, 5
        %v3585 = vsel %vm531, %v3580, %v3584
        %v3586 = vld [vmem:[%s1042] sm:$0xf]
        %v3587 = vunpack.c.l.b16 %v3375
        %v3588 = vunpack.c.l.b16 %v3389
        %v3589 = vunpack.c.l.b16 %v3403
        %v3590 = vunpack.c.l.b16 %v3417
        %v3591 = vunpack.c.l.b16 %v3431
        %v3592 = vunpack.c.l.b16 %v3445
        %v3593 = vunpack.c.l.b16 %v3459
        %v3594 = vunpack.c.l.b16 %v3473
        %v3595 = vunpack.c.l.b16 %v3487
        %v3596 = vunpack.c.l.b16 %v3501
        %v3597 = vunpack.c.l.b16 %v3515
        %v3598 = vunpack.c.l.b16 %v3529
        %v3599 = vunpack.c.l.b16 %v3543
        %v3600 = vunpack.c.l.b16 %v3557
        %v3601 = vunpack.c.l.b16 %v3571
        %v3602 = vunpack.c.l.b16 %v3585
        %v3603 = vpack.c.b16 %v3588, %v3587
        %v3604 = vpack.c.b16 %v3590, %v3589
        %v3605 = vpack.c.b16 %v3592, %v3591
        %v3606 = vpack.c.b16 %v3594, %v3593
        %v3607 = vpack.c.b16 %v3596, %v3595
        %v3608 = vpack.c.b16 %v3598, %v3597
        %v3609 = vpack.c.b16 %v3600, %v3599
        %v3610 = vpack.c.b16 %v3602, %v3601
        %v3612 = vsel %vm303, %v3603, 0
        %v3615 = vsel %vm303, %v3604, 0
        %v3618 = vsel %vm303, %v3605, 0
        %v3621 = vsel %vm303, %v3606, 0
        %v3624 = vsel %vm303, %v3607, 0
        %v3627 = vsel %vm303, %v3608, 0
        %v3630 = vsel %vm303, %v3609, 0
        %v3633 = vsel %vm303, %v3610, 0
        %v3636 = vsel %vm328, %v3586, 0
        %3638 = vmatpush.bf16.msra.mxu0 0
        %3639 = vmatpush.bf16.msra.mxu0 0
        %3640 = vmatpush.bf16.msra.mxu0 0
        %3641 = vmatpush.bf16.msra.mxu0 0
        %3642 = vmatpush.bf16.msra.mxu0 0
        %3643 = vmatpush.bf16.msra.mxu0 0
        %3644 = vmatpush.bf16.msra.mxu0 0
        %3645 = vmatpush.bf16.msra.mxu0 %v3636
        %3646 = vmatmul.bf16.gmra.mxu0 %v3612
        %v3647 = vpop.f32.mrf.mxu0
        %v3648 = vadd.f32 0.0, %v3647
        %v3649 = vpop.f32.mrf.mxu0
        %v3650 = vadd.f32 0.0, %v3649
        %3651 = vmatmul.bf16.gmra.mxu0 %v3615
        %v3652 = vpop.f32.mrf.mxu0
        %v3653 = vadd.f32 0.0, %v3652
        %v3654 = vpop.f32.mrf.mxu0
        %v3655 = vadd.f32 0.0, %v3654
        %3656 = vmatmul.bf16.gmra.mxu0 %v3618
        %v3657 = vpop.f32.mrf.mxu0
        %v3658 = vadd.f32 0.0, %v3657
        %v3659 = vpop.f32.mrf.mxu0
        %v3660 = vadd.f32 0.0, %v3659
        %3661 = vmatmul.bf16.gmra.mxu0 %v3621
        %v3662 = vpop.f32.mrf.mxu0
        %v3663 = vadd.f32 0.0, %v3662
        %v3664 = vpop.f32.mrf.mxu0
        %v3665 = vadd.f32 0.0, %v3664
        %3666 = vmatmul.bf16.gmra.mxu0 %v3624
        %v3667 = vpop.f32.mrf.mxu0
        %v3668 = vadd.f32 0.0, %v3667
        %v3669 = vpop.f32.mrf.mxu0
        %v3670 = vadd.f32 0.0, %v3669
        %3671 = vmatmul.bf16.gmra.mxu0 %v3627
        %v3672 = vpop.f32.mrf.mxu0
        %v3673 = vadd.f32 0.0, %v3672
        %v3674 = vpop.f32.mrf.mxu0
        %v3675 = vadd.f32 0.0, %v3674
        %3676 = vmatmul.bf16.gmra.mxu0 %v3630
        %v3677 = vpop.f32.mrf.mxu0
        %v3678 = vadd.f32 0.0, %v3677
        %v3679 = vpop.f32.mrf.mxu0
        %v3680 = vadd.f32 0.0, %v3679
        %3681 = vmatmul.bf16.gmra.mxu0 %v3633
        %v3682 = vpop.f32.mrf.mxu0
        %v3683 = vadd.f32 0.0, %v3682
        %v3684 = vpop.f32.mrf.mxu0
        %v3685 = vadd.f32 0.0, %v3684
        %3686 = vdwg.mxu0
        %v3687 = vadd.f32 %v3314, %v3648
        %v3688 = vadd.f32 %v3315, %v3650
        %v3689 = vadd.f32 %v3316, %v3653
        %v3690 = vadd.f32 %v3317, %v3655
        %v3691 = vadd.f32 %v3318, %v3658
        %v3692 = vadd.f32 %v3319, %v3660
        %v3693 = vadd.f32 %v3320, %v3663
        %v3694 = vadd.f32 %v3321, %v3665
        %v3695 = vadd.f32 %v3322, %v3668
        %v3696 = vadd.f32 %v3323, %v3670
        %v3697 = vadd.f32 %v3324, %v3673
        %v3698 = vadd.f32 %v3325, %v3675
        %v3699 = vadd.f32 %v3326, %v3678
        %v3700 = vadd.f32 %v3327, %v3680
        %v3701 = vadd.f32 %v3328, %v3683
        %v3702 = vadd.f32 %v3329, %v3685
        %v3703 = vld [vmem:[%s1025] sm:$0xf]
        %v3704 = vld [vmem:[%s1025 + $0x4] sm:$0x1]
        %v3705 = vld [vmem:[%s1025 + $0x8] sm:$0xf]
        %v3706 = vld [vmem:[%s1025 + $0xc] sm:$0x1]
        %v3707 = vld [vmem:[%s1025 + $0x10] sm:$0xf]
        %v3708 = vld [vmem:[%s1025 + $0x14] sm:$0x1]
        %v3709 = vld [vmem:[%s1025 + $0x18] sm:$0xf]
        %v3710 = vld [vmem:[%s1025 + $0x1c] sm:$0x1]
        %v3711 = vld [vmem:[%s1025 + $0x20] sm:$0xf]
        %v3712 = vld [vmem:[%s1025 + $0x24] sm:$0x1]
        %v3713 = vld [vmem:[%s1025 + $0x28] sm:$0xf]
        %v3714 = vld [vmem:[%s1025 + $0x2c] sm:$0x1]
        %v3715 = vld [vmem:[%s1025 + $0x30] sm:$0xf]
        %v3716 = vld [vmem:[%s1025 + $0x34] sm:$0x1]
        %v3717 = vld [vmem:[%s1025 + $0x38] sm:$0xf]
        %v3718 = vld [vmem:[%s1025 + $0x3c] sm:$0x1]
        %v3719 = vld [vmem:[%s1025 + $0x40] sm:$0xf]
        %v3720 = vld [vmem:[%s1025 + $0x44] sm:$0x1]
        %v3721 = vld [vmem:[%s1025 + $0x48] sm:$0xf]
        %v3722 = vld [vmem:[%s1025 + $0x4c] sm:$0x1]
        %v3723 = vld [vmem:[%s1025 + $0x50] sm:$0xf]
        %v3724 = vld [vmem:[%s1025 + $0x54] sm:$0x1]
        %v3725 = vld [vmem:[%s1025 + $0x58] sm:$0xf]
        %v3726 = vld [vmem:[%s1025 + $0x5c] sm:$0x1]
        %v3727 = vld [vmem:[%s1025 + $0x60] sm:$0xf]
        %v3728 = vld [vmem:[%s1025 + $0x64] sm:$0x1]
        %v3729 = vld [vmem:[%s1025 + $0x68] sm:$0xf]
        %v3730 = vld [vmem:[%s1025 + $0x6c] sm:$0x1]
        %v3731 = vld [vmem:[%s1025 + $0x70] sm:$0xf]
        %v3732 = vld [vmem:[%s1025 + $0x74] sm:$0x1]
        %v3733 = vld [vmem:[%s1025 + $0x78] sm:$0xf]
        %v3734 = vld [vmem:[%s1025 + $0x7c] sm:$0x1]
        %v3736 = vshrl.u32 %v3703, 16
        %v3738 = vrot.slane %v3736, 4
        %v3739 = vshll.u32 %v3703, 16
        %v3741 = vrot.slane %v3739, 5
        %v3742 = vor.u32 %v3738, %v3741
        %v3743 = vrot.slane %v3742, 4
        %v3745 = vshll.u32 %v3704, 16
        %v3747 = vrot.slane %v3745, 5
        %v3748 = vsel %vm531, %v3743, %v3747
        %v3750 = vshrl.u32 %v3705, 16
        %v3752 = vrot.slane %v3750, 4
        %v3753 = vshll.u32 %v3705, 16
        %v3755 = vrot.slane %v3753, 5
        %v3756 = vor.u32 %v3752, %v3755
        %v3757 = vrot.slane %v3756, 4
        %v3759 = vshll.u32 %v3706, 16
        %v3761 = vrot.slane %v3759, 5
        %v3762 = vsel %vm531, %v3757, %v3761
        %v3764 = vshrl.u32 %v3707, 16
        %v3766 = vrot.slane %v3764, 4
        %v3767 = vshll.u32 %v3707, 16
        %v3769 = vrot.slane %v3767, 5
        %v3770 = vor.u32 %v3766, %v3769
        %v3771 = vrot.slane %v3770, 4
        %v3773 = vshll.u32 %v3708, 16
        %v3775 = vrot.slane %v3773, 5
        %v3776 = vsel %vm531, %v3771, %v3775
        %v3778 = vshrl.u32 %v3709, 16
        %v3780 = vrot.slane %v3778, 4
        %v3781 = vshll.u32 %v3709, 16
        %v3783 = vrot.slane %v3781, 5
        %v3784 = vor.u32 %v3780, %v3783
        %v3785 = vrot.slane %v3784, 4
        %v3787 = vshll.u32 %v3710, 16
        %v3789 = vrot.slane %v3787, 5
        %v3790 = vsel %vm531, %v3785, %v3789
        %v3792 = vshrl.u32 %v3711, 16
        %v3794 = vrot.slane %v3792, 4
        %v3795 = vshll.u32 %v3711, 16
        %v3797 = vrot.slane %v3795, 5
        %v3798 = vor.u32 %v3794, %v3797
        %v3799 = vrot.slane %v3798, 4
        %v3801 = vshll.u32 %v3712, 16
        %v3803 = vrot.slane %v3801, 5
        %v3804 = vsel %vm531, %v3799, %v3803
        %v3806 = vshrl.u32 %v3713, 16
        %v3808 = vrot.slane %v3806, 4
        %v3809 = vshll.u32 %v3713, 16
        %v3811 = vrot.slane %v3809, 5
        %v3812 = vor.u32 %v3808, %v3811
        %v3813 = vrot.slane %v3812, 4
        %v3815 = vshll.u32 %v3714, 16
        %v3817 = vrot.slane %v3815, 5
        %v3818 = vsel %vm531, %v3813, %v3817
        %v3820 = vshrl.u32 %v3715, 16
        %v3822 = vrot.slane %v3820, 4
        %v3823 = vshll.u32 %v3715, 16
        %v3825 = vrot.slane %v3823, 5
        %v3826 = vor.u32 %v3822, %v3825
        %v3827 = vrot.slane %v3826, 4
        %v3829 = vshll.u32 %v3716, 16
        %v3831 = vrot.slane %v3829, 5
        %v3832 = vsel %vm531, %v3827, %v3831
        %v3834 = vshrl.u32 %v3717, 16
        %v3836 = vrot.slane %v3834, 4
        %v3837 = vshll.u32 %v3717, 16
        %v3839 = vrot.slane %v3837, 5
        %v3840 = vor.u32 %v3836, %v3839
        %v3841 = vrot.slane %v3840, 4
        %v3843 = vshll.u32 %v3718, 16
        %v3845 = vrot.slane %v3843, 5
        %v3846 = vsel %vm531, %v3841, %v3845
        %v3848 = vshrl.u32 %v3719, 16
        %v3850 = vrot.slane %v3848, 4
        %v3851 = vshll.u32 %v3719, 16
        %v3853 = vrot.slane %v3851, 5
        %v3854 = vor.u32 %v3850, %v3853
        %v3855 = vrot.slane %v3854, 4
        %v3857 = vshll.u32 %v3720, 16
        %v3859 = vrot.slane %v3857, 5
        %v3860 = vsel %vm531, %v3855, %v3859
        %v3862 = vshrl.u32 %v3721, 16
        %v3864 = vrot.slane %v3862, 4
        %v3865 = vshll.u32 %v3721, 16
        %v3867 = vrot.slane %v3865, 5
        %v3868 = vor.u32 %v3864, %v3867
        %v3869 = vrot.slane %v3868, 4
        %v3871 = vshll.u32 %v3722, 16
        %v3873 = vrot.slane %v3871, 5
        %v3874 = vsel %vm531, %v3869, %v3873
        %v3876 = vshrl.u32 %v3723, 16
        %v3878 = vrot.slane %v3876, 4
        %v3879 = vshll.u32 %v3723, 16
        %v3881 = vrot.slane %v3879, 5
        %v3882 = vor.u32 %v3878, %v3881
        %v3883 = vrot.slane %v3882, 4
        %v3885 = vshll.u32 %v3724, 16
        %v3887 = vrot.slane %v3885, 5
        %v3888 = vsel %vm531, %v3883, %v3887
        %v3890 = vshrl.u32 %v3725, 16
        %v3892 = vrot.slane %v3890, 4
        %v3893 = vshll.u32 %v3725, 16
        %v3895 = vrot.slane %v3893, 5
        %v3896 = vor.u32 %v3892, %v3895
        %v3897 = vrot.slane %v3896, 4
        %v3899 = vshll.u32 %v3726, 16
        %v3901 = vrot.slane %v3899, 5
        %v3902 = vsel %vm531, %v3897, %v3901
        %v3904 = vshrl.u32 %v3727, 16
        %v3906 = vrot.slane %v3904, 4
        %v3907 = vshll.u32 %v3727, 16
        %v3909 = vrot.slane %v3907, 5
        %v3910 = vor.u32 %v3906, %v3909
        %v3911 = vrot.slane %v3910, 4
        %v3913 = vshll.u32 %v3728, 16
        %v3915 = vrot.slane %v3913, 5
        %v3916 = vsel %vm531, %v3911, %v3915
        %v3918 = vshrl.u32 %v3729, 16
        %v3920 = vrot.slane %v3918, 4
        %v3921 = vshll.u32 %v3729, 16
        %v3923 = vrot.slane %v3921, 5
        %v3924 = vor.u32 %v3920, %v3923
        %v3925 = vrot.slane %v3924, 4
        %v3927 = vshll.u32 %v3730, 16
        %v3929 = vrot.slane %v3927, 5
        %v3930 = vsel %vm531, %v3925, %v3929
        %v3932 = vshrl.u32 %v3731, 16
        %v3934 = vrot.slane %v3932, 4
        %v3935 = vshll.u32 %v3731, 16
        %v3937 = vrot.slane %v3935, 5
        %v3938 = vor.u32 %v3934, %v3937
        %v3939 = vrot.slane %v3938, 4
        %v3941 = vshll.u32 %v3732, 16
        %v3943 = vrot.slane %v3941, 5
        %v3944 = vsel %vm531, %v3939, %v3943
        %v3946 = vshrl.u32 %v3733, 16
        %v3948 = vrot.slane %v3946, 4
        %v3949 = vshll.u32 %v3733, 16
        %v3951 = vrot.slane %v3949, 5
        %v3952 = vor.u32 %v3948, %v3951
        %v3953 = vrot.slane %v3952, 4
        %v3955 = vshll.u32 %v3734, 16
        %v3957 = vrot.slane %v3955, 5
        %v3958 = vsel %vm531, %v3953, %v3957
        %v3959 = vld [vmem:[%s1432] sm:$0xf]
        %v3960 = vunpack.c.l.b16 %v3748
        %v3961 = vunpack.c.l.b16 %v3762
        %v3962 = vunpack.c.l.b16 %v3776
        %v3963 = vunpack.c.l.b16 %v3790
        %v3964 = vunpack.c.l.b16 %v3804
        %v3965 = vunpack.c.l.b16 %v3818
        %v3966 = vunpack.c.l.b16 %v3832
        %v3967 = vunpack.c.l.b16 %v3846
        %v3968 = vunpack.c.l.b16 %v3860
        %v3969 = vunpack.c.l.b16 %v3874
        %v3970 = vunpack.c.l.b16 %v3888
        %v3971 = vunpack.c.l.b16 %v3902
        %v3972 = vunpack.c.l.b16 %v3916
        %v3973 = vunpack.c.l.b16 %v3930
        %v3974 = vunpack.c.l.b16 %v3944
        %v3975 = vunpack.c.l.b16 %v3958
        %v3976 = vpack.c.b16 %v3961, %v3960
        %v3977 = vpack.c.b16 %v3963, %v3962
        %v3978 = vpack.c.b16 %v3965, %v3964
        %v3979 = vpack.c.b16 %v3967, %v3966
        %v3980 = vpack.c.b16 %v3969, %v3968
        %v3981 = vpack.c.b16 %v3971, %v3970
        %v3982 = vpack.c.b16 %v3973, %v3972
        %v3983 = vpack.c.b16 %v3975, %v3974
        %v3985 = vsel %vm303, %v3976, 0
        %v3988 = vsel %vm303, %v3977, 0
        %v3991 = vsel %vm303, %v3978, 0
        %v3994 = vsel %vm303, %v3979, 0
        %v3997 = vsel %vm303, %v3980, 0
        %v4000 = vsel %vm303, %v3981, 0
        %v4003 = vsel %vm303, %v3982, 0
        %v4006 = vsel %vm303, %v3983, 0
        %v4009 = vsel %vm328, %v3959, 0
        %4011 = vmatpush.bf16.msra.mxu0 0
        %4012 = vmatpush.bf16.msra.mxu0 0
        %4013 = vmatpush.bf16.msra.mxu0 0
        %4014 = vmatpush.bf16.msra.mxu0 0
        %4015 = vmatpush.bf16.msra.mxu0 0
        %4016 = vmatpush.bf16.msra.mxu0 0
        %4017 = vmatpush.bf16.msra.mxu0 0
        %4018 = vmatpush.bf16.msra.mxu0 %v4009
        %4019 = vmatmul.bf16.gmra.mxu0 %v3985
        %v4020 = vpop.f32.mrf.mxu0
        %v4021 = vadd.f32 0.0, %v4020
        %v4022 = vpop.f32.mrf.mxu0
        %v4023 = vadd.f32 0.0, %v4022
        %4024 = vmatmul.bf16.gmra.mxu0 %v3988
        %v4025 = vpop.f32.mrf.mxu0
        %v4026 = vadd.f32 0.0, %v4025
        %v4027 = vpop.f32.mrf.mxu0
        %v4028 = vadd.f32 0.0, %v4027
        %4029 = vmatmul.bf16.gmra.mxu0 %v3991
        %v4030 = vpop.f32.mrf.mxu0
        %v4031 = vadd.f32 0.0, %v4030
        %v4032 = vpop.f32.mrf.mxu0
        %v4033 = vadd.f32 0.0, %v4032
        %4034 = vmatmul.bf16.gmra.mxu0 %v3994
        %v4035 = vpop.f32.mrf.mxu0
        %v4036 = vadd.f32 0.0, %v4035
        %v4037 = vpop.f32.mrf.mxu0
        %v4038 = vadd.f32 0.0, %v4037
        %4039 = vmatmul.bf16.gmra.mxu0 %v3997
        %v4040 = vpop.f32.mrf.mxu0
        %v4041 = vadd.f32 0.0, %v4040
        %v4042 = vpop.f32.mrf.mxu0
        %v4043 = vadd.f32 0.0, %v4042
        %4044 = vmatmul.bf16.gmra.mxu0 %v4000
        %v4045 = vpop.f32.mrf.mxu0
        %v4046 = vadd.f32 0.0, %v4045
        %v4047 = vpop.f32.mrf.mxu0
        %v4048 = vadd.f32 0.0, %v4047
        %4049 = vmatmul.bf16.gmra.mxu0 %v4003
        %v4050 = vpop.f32.mrf.mxu0
        %v4051 = vadd.f32 0.0, %v4050
        %v4052 = vpop.f32.mrf.mxu0
        %v4053 = vadd.f32 0.0, %v4052
        %4054 = vmatmul.bf16.gmra.mxu0 %v4006
        %v4055 = vpop.f32.mrf.mxu0
        %v4056 = vadd.f32 0.0, %v4055
        %v4057 = vpop.f32.mrf.mxu0
        %v4058 = vadd.f32 0.0, %v4057
        %4059 = vdwg.mxu0
        %v4060 = vadd.f32 %v3687, %v4021
        %v4061 = vadd.f32 %v3688, %v4023
        %v4062 = vadd.f32 %v3689, %v4026
        %v4063 = vadd.f32 %v3690, %v4028
        %v4064 = vadd.f32 %v3691, %v4031
        %v4065 = vadd.f32 %v3692, %v4033
        %v4066 = vadd.f32 %v3693, %v4036
        %v4067 = vadd.f32 %v3694, %v4038
        %v4068 = vadd.f32 %v3695, %v4041
        %v4069 = vadd.f32 %v3696, %v4043
        %v4070 = vadd.f32 %v3697, %v4046
        %v4071 = vadd.f32 %v3698, %v4048
        %v4072 = vadd.f32 %v3699, %v4051
        %v4073 = vadd.f32 %v3700, %v4053
        %v4074 = vadd.f32 %v3701, %v4056
        %v4075 = vadd.f32 %v3702, %v4058
        %v4076 = vld [vmem:[%s1701] sm:$0xf]
        %v4077 = vld [vmem:[%s1701 + $0x8] sm:$0xf]
        %v4078 = vld [vmem:[%s1701 + $0x10] sm:$0xf]
        %v4079 = vld [vmem:[%s1701 + $0x18] sm:$0xf]
        %v4080 = vld [vmem:[%s1701 + $0x20] sm:$0xf]
        %v4081 = vld [vmem:[%s1701 + $0x28] sm:$0xf]
        %v4082 = vld [vmem:[%s1701 + $0x30] sm:$0xf]
        %v4083 = vld [vmem:[%s1701 + $0x38] sm:$0xf]
        %v4084 = vld [vmem:[%s1701 + $0x40] sm:$0xf]
        %v4085 = vld [vmem:[%s1701 + $0x48] sm:$0xf]
        %v4086 = vld [vmem:[%s1701 + $0x50] sm:$0xf]
        %v4087 = vld [vmem:[%s1701 + $0x58] sm:$0xf]
        %v4088 = vld [vmem:[%s1701 + $0x60] sm:$0xf]
        %v4089 = vld [vmem:[%s1701 + $0x68] sm:$0xf]
        %v4090 = vld [vmem:[%s1701 + $0x70] sm:$0xf]
        %v4091 = vld [vmem:[%s1701 + $0x78] sm:$0xf]
        %v4092 = vld [vmem:[%s1567] sm:$0xf]
        %v4109 = vunpack.c.l.b16 %v4076
        %v4110 = vunpack.c.l.b16 %v4077
        %v4111 = vunpack.c.l.b16 %v4078
        %v4112 = vunpack.c.l.b16 %v4079
        %v4113 = vunpack.c.l.b16 %v4080
        %v4114 = vunpack.c.l.b16 %v4081
        %v4115 = vunpack.c.l.b16 %v4082
        %v4116 = vunpack.c.l.b16 %v4083
        %v4117 = vunpack.c.l.b16 %v4084
        %v4118 = vunpack.c.l.b16 %v4085
        %v4119 = vunpack.c.l.b16 %v4086
        %v4120 = vunpack.c.l.b16 %v4087
        %v4121 = vunpack.c.l.b16 %v4088
        %v4122 = vunpack.c.l.b16 %v4089
        %v4123 = vunpack.c.l.b16 %v4090
        %v4124 = vunpack.c.l.b16 %v4091
        %v4125 = vpack.c.b16 %v4110, %v4109
        %v4126 = vpack.c.b16 %v4112, %v4111
        %v4127 = vpack.c.b16 %v4114, %v4113
        %v4128 = vpack.c.b16 %v4116, %v4115
        %v4129 = vpack.c.b16 %v4118, %v4117
        %v4130 = vpack.c.b16 %v4120, %v4119
        %v4131 = vpack.c.b16 %v4122, %v4121
        %v4132 = vpack.c.b16 %v4124, %v4123
        %v4134 = vsel %vm303, %v4125, 0
        %v4137 = vsel %vm303, %v4126, 0
        %v4140 = vsel %vm303, %v4127, 0
        %v4143 = vsel %vm303, %v4128, 0
        %v4146 = vsel %vm303, %v4129, 0
        %v4149 = vsel %vm303, %v4130, 0
        %v4152 = vsel %vm303, %v4131, 0
        %v4155 = vsel %vm303, %v4132, 0
        %v4158 = vsel %vm328, %v4092, 0
        %4160 = vmatpush.bf16.msra.mxu0 0
        %4161 = vmatpush.bf16.msra.mxu0 0
        %4162 = vmatpush.bf16.msra.mxu0 0
        %4163 = vmatpush.bf16.msra.mxu0 0
        %4164 = vmatpush.bf16.msra.mxu0 0
        %4165 = vmatpush.bf16.msra.mxu0 0
        %4166 = vmatpush.bf16.msra.mxu0 0
        %4167 = vmatpush.bf16.msra.mxu0 %v4158
        %4168 = vmatmul.bf16.gmra.mxu0 %v4134
        %v4169 = vpop.f32.mrf.mxu0
        %v4170 = vadd.f32 0.0, %v4169
        %v4171 = vpop.f32.mrf.mxu0
        %v4172 = vadd.f32 0.0, %v4171
        %4173 = vmatmul.bf16.gmra.mxu0 %v4137
        %v4174 = vpop.f32.mrf.mxu0
        %v4175 = vadd.f32 0.0, %v4174
        %v4176 = vpop.f32.mrf.mxu0
        %v4177 = vadd.f32 0.0, %v4176
        %4178 = vmatmul.bf16.gmra.mxu0 %v4140
        %v4179 = vpop.f32.mrf.mxu0
        %v4180 = vadd.f32 0.0, %v4179
        %v4181 = vpop.f32.mrf.mxu0
        %v4182 = vadd.f32 0.0, %v4181
        %4183 = vmatmul.bf16.gmra.mxu0 %v4143
        %v4184 = vpop.f32.mrf.mxu0
        %v4185 = vadd.f32 0.0, %v4184
        %v4186 = vpop.f32.mrf.mxu0
        %v4187 = vadd.f32 0.0, %v4186
        %4188 = vmatmul.bf16.gmra.mxu0 %v4146
        %v4189 = vpop.f32.mrf.mxu0
        %v4190 = vadd.f32 0.0, %v4189
        %v4191 = vpop.f32.mrf.mxu0
        %v4192 = vadd.f32 0.0, %v4191
        %4193 = vmatmul.bf16.gmra.mxu0 %v4149
        %v4194 = vpop.f32.mrf.mxu0
        %v4195 = vadd.f32 0.0, %v4194
        %v4196 = vpop.f32.mrf.mxu0
        %v4197 = vadd.f32 0.0, %v4196
        %4198 = vmatmul.bf16.gmra.mxu0 %v4152
        %v4199 = vpop.f32.mrf.mxu0
        %v4200 = vadd.f32 0.0, %v4199
        %v4201 = vpop.f32.mrf.mxu0
        %v4202 = vadd.f32 0.0, %v4201
        %4203 = vmatmul.bf16.gmra.mxu0 %v4155
        %v4204 = vpop.f32.mrf.mxu0
        %v4205 = vadd.f32 0.0, %v4204
        %v4206 = vpop.f32.mrf.mxu0
        %v4207 = vadd.f32 0.0, %v4206
        %4208 = vdwg.mxu0
        %v4209 = vadd.f32 %v4060, %v4170
        %v4210 = vadd.f32 %v4061, %v4172
        %v4211 = vadd.f32 %v4062, %v4175
        %v4212 = vadd.f32 %v4063, %v4177
        %v4213 = vadd.f32 %v4064, %v4180
        %v4214 = vadd.f32 %v4065, %v4182
        %v4215 = vadd.f32 %v4066, %v4185
        %v4216 = vadd.f32 %v4067, %v4187
        %v4217 = vadd.f32 %v4068, %v4190
        %v4218 = vadd.f32 %v4069, %v4192
        %v4219 = vadd.f32 %v4070, %v4195
        %v4220 = vadd.f32 %v4071, %v4197
        %v4221 = vadd.f32 %v4072, %v4200
        %v4222 = vadd.f32 %v4073, %v4202
        %v4223 = vadd.f32 %v4074, %v4205
        %v4224 = vadd.f32 %v4075, %v4207
        %v4225 = vld [vmem:[%s1550] sm:$0xf]
        %v4226 = vld [vmem:[%s1550 + $0x4] sm:$0x1]
        %v4227 = vld [vmem:[%s1550 + $0x8] sm:$0xf]
        %v4228 = vld [vmem:[%s1550 + $0xc] sm:$0x1]
        %v4229 = vld [vmem:[%s1550 + $0x10] sm:$0xf]
        %v4230 = vld [vmem:[%s1550 + $0x14] sm:$0x1]
        %v4231 = vld [vmem:[%s1550 + $0x18] sm:$0xf]
        %v4232 = vld [vmem:[%s1550 + $0x1c] sm:$0x1]
        %v4233 = vld [vmem:[%s1550 + $0x20] sm:$0xf]
        %v4234 = vld [vmem:[%s1550 + $0x24] sm:$0x1]
        %v4235 = vld [vmem:[%s1550 + $0x28] sm:$0xf]
        %v4236 = vld [vmem:[%s1550 + $0x2c] sm:$0x1]
        %v4237 = vld [vmem:[%s1550 + $0x30] sm:$0xf]
        %v4238 = vld [vmem:[%s1550 + $0x34] sm:$0x1]
        %v4239 = vld [vmem:[%s1550 + $0x38] sm:$0xf]
        %v4240 = vld [vmem:[%s1550 + $0x3c] sm:$0x1]
        %v4241 = vld [vmem:[%s1550 + $0x40] sm:$0xf]
        %v4242 = vld [vmem:[%s1550 + $0x44] sm:$0x1]
        %v4243 = vld [vmem:[%s1550 + $0x48] sm:$0xf]
        %v4244 = vld [vmem:[%s1550 + $0x4c] sm:$0x1]
        %v4245 = vld [vmem:[%s1550 + $0x50] sm:$0xf]
        %v4246 = vld [vmem:[%s1550 + $0x54] sm:$0x1]
        %v4247 = vld [vmem:[%s1550 + $0x58] sm:$0xf]
        %v4248 = vld [vmem:[%s1550 + $0x5c] sm:$0x1]
        %v4249 = vld [vmem:[%s1550 + $0x60] sm:$0xf]
        %v4250 = vld [vmem:[%s1550 + $0x64] sm:$0x1]
        %v4251 = vld [vmem:[%s1550 + $0x68] sm:$0xf]
        %v4252 = vld [vmem:[%s1550 + $0x6c] sm:$0x1]
        %v4253 = vld [vmem:[%s1550 + $0x70] sm:$0xf]
        %v4254 = vld [vmem:[%s1550 + $0x74] sm:$0x1]
        %v4255 = vld [vmem:[%s1550 + $0x78] sm:$0xf]
        %v4256 = vld [vmem:[%s1550 + $0x7c] sm:$0x1]
        %v4258 = vshrl.u32 %v4225, 16
        %v4260 = vrot.slane %v4258, 4
        %v4261 = vshll.u32 %v4225, 16
        %v4263 = vrot.slane %v4261, 5
        %v4264 = vor.u32 %v4260, %v4263
        %v4265 = vrot.slane %v4264, 4
        %v4267 = vshll.u32 %v4226, 16
        %v4269 = vrot.slane %v4267, 5
        %v4270 = vsel %vm531, %v4265, %v4269
        %v4272 = vshrl.u32 %v4227, 16
        %v4274 = vrot.slane %v4272, 4
        %v4275 = vshll.u32 %v4227, 16
        %v4277 = vrot.slane %v4275, 5
        %v4278 = vor.u32 %v4274, %v4277
        %v4279 = vrot.slane %v4278, 4
        %v4281 = vshll.u32 %v4228, 16
        %v4283 = vrot.slane %v4281, 5
        %v4284 = vsel %vm531, %v4279, %v4283
        %v4286 = vshrl.u32 %v4229, 16
        %v4288 = vrot.slane %v4286, 4
        %v4289 = vshll.u32 %v4229, 16
        %v4291 = vrot.slane %v4289, 5
        %v4292 = vor.u32 %v4288, %v4291
        %v4293 = vrot.slane %v4292, 4
        %v4295 = vshll.u32 %v4230, 16
        %v4297 = vrot.slane %v4295, 5
        %v4298 = vsel %vm531, %v4293, %v4297
        %v4300 = vshrl.u32 %v4231, 16
        %v4302 = vrot.slane %v4300, 4
        %v4303 = vshll.u32 %v4231, 16
        %v4305 = vrot.slane %v4303, 5
        %v4306 = vor.u32 %v4302, %v4305
        %v4307 = vrot.slane %v4306, 4
        %v4309 = vshll.u32 %v4232, 16
        %v4311 = vrot.slane %v4309, 5
        %v4312 = vsel %vm531, %v4307, %v4311
        %v4314 = vshrl.u32 %v4233, 16
        %v4316 = vrot.slane %v4314, 4
        %v4317 = vshll.u32 %v4233, 16
        %v4319 = vrot.slane %v4317, 5
        %v4320 = vor.u32 %v4316, %v4319
        %v4321 = vrot.slane %v4320, 4
        %v4323 = vshll.u32 %v4234, 16
        %v4325 = vrot.slane %v4323, 5
        %v4326 = vsel %vm531, %v4321, %v4325
        %v4328 = vshrl.u32 %v4235, 16
        %v4330 = vrot.slane %v4328, 4
        %v4331 = vshll.u32 %v4235, 16
        %v4333 = vrot.slane %v4331, 5
        %v4334 = vor.u32 %v4330, %v4333
        %v4335 = vrot.slane %v4334, 4
        %v4337 = vshll.u32 %v4236, 16
        %v4339 = vrot.slane %v4337, 5
        %v4340 = vsel %vm531, %v4335, %v4339
        %v4342 = vshrl.u32 %v4237, 16
        %v4344 = vrot.slane %v4342, 4
        %v4345 = vshll.u32 %v4237, 16
        %v4347 = vrot.slane %v4345, 5
        %v4348 = vor.u32 %v4344, %v4347
        %v4349 = vrot.slane %v4348, 4
        %v4351 = vshll.u32 %v4238, 16
        %v4353 = vrot.slane %v4351, 5
        %v4354 = vsel %vm531, %v4349, %v4353
        %v4356 = vshrl.u32 %v4239, 16
        %v4358 = vrot.slane %v4356, 4
        %v4359 = vshll.u32 %v4239, 16
        %v4361 = vrot.slane %v4359, 5
        %v4362 = vor.u32 %v4358, %v4361
        %v4363 = vrot.slane %v4362, 4
        %v4365 = vshll.u32 %v4240, 16
        %v4367 = vrot.slane %v4365, 5
        %v4368 = vsel %vm531, %v4363, %v4367
        %v4370 = vshrl.u32 %v4241, 16
        %v4372 = vrot.slane %v4370, 4
        %v4373 = vshll.u32 %v4241, 16
        %v4375 = vrot.slane %v4373, 5
        %v4376 = vor.u32 %v4372, %v4375
        %v4377 = vrot.slane %v4376, 4
        %v4379 = vshll.u32 %v4242, 16
        %v4381 = vrot.slane %v4379, 5
        %v4382 = vsel %vm531, %v4377, %v4381
        %v4384 = vshrl.u32 %v4243, 16
        %v4386 = vrot.slane %v4384, 4
        %v4387 = vshll.u32 %v4243, 16
        %v4389 = vrot.slane %v4387, 5
        %v4390 = vor.u32 %v4386, %v4389
        %v4391 = vrot.slane %v4390, 4
        %v4393 = vshll.u32 %v4244, 16
        %v4395 = vrot.slane %v4393, 5
        %v4396 = vsel %vm531, %v4391, %v4395
        %v4398 = vshrl.u32 %v4245, 16
        %v4400 = vrot.slane %v4398, 4
        %v4401 = vshll.u32 %v4245, 16
        %v4403 = vrot.slane %v4401, 5
        %v4404 = vor.u32 %v4400, %v4403
        %v4405 = vrot.slane %v4404, 4
        %v4407 = vshll.u32 %v4246, 16
        %v4409 = vrot.slane %v4407, 5
        %v4410 = vsel %vm531, %v4405, %v4409
        %v4412 = vshrl.u32 %v4247, 16
        %v4414 = vrot.slane %v4412, 4
        %v4415 = vshll.u32 %v4247, 16
        %v4417 = vrot.slane %v4415, 5
        %v4418 = vor.u32 %v4414, %v4417
        %v4419 = vrot.slane %v4418, 4
        %v4421 = vshll.u32 %v4248, 16
        %v4423 = vrot.slane %v4421, 5
        %v4424 = vsel %vm531, %v4419, %v4423
        %v4426 = vshrl.u32 %v4249, 16
        %v4428 = vrot.slane %v4426, 4
        %v4429 = vshll.u32 %v4249, 16
        %v4431 = vrot.slane %v4429, 5
        %v4432 = vor.u32 %v4428, %v4431
        %v4433 = vrot.slane %v4432, 4
        %v4435 = vshll.u32 %v4250, 16
        %v4437 = vrot.slane %v4435, 5
        %v4438 = vsel %vm531, %v4433, %v4437
        %v4440 = vshrl.u32 %v4251, 16
        %v4442 = vrot.slane %v4440, 4
        %v4443 = vshll.u32 %v4251, 16
        %v4445 = vrot.slane %v4443, 5
        %v4446 = vor.u32 %v4442, %v4445
        %v4447 = vrot.slane %v4446, 4
        %v4449 = vshll.u32 %v4252, 16
        %v4451 = vrot.slane %v4449, 5
        %v4452 = vsel %vm531, %v4447, %v4451
        %v4454 = vshrl.u32 %v4253, 16
        %v4456 = vrot.slane %v4454, 4
        %v4457 = vshll.u32 %v4253, 16
        %v4459 = vrot.slane %v4457, 5
        %v4460 = vor.u32 %v4456, %v4459
        %v4461 = vrot.slane %v4460, 4
        %v4463 = vshll.u32 %v4254, 16
        %v4465 = vrot.slane %v4463, 5
        %v4466 = vsel %vm531, %v4461, %v4465
        %v4468 = vshrl.u32 %v4255, 16
        %v4470 = vrot.slane %v4468, 4
        %v4471 = vshll.u32 %v4255, 16
        %v4473 = vrot.slane %v4471, 5
        %v4474 = vor.u32 %v4470, %v4473
        %v4475 = vrot.slane %v4474, 4
        %v4477 = vshll.u32 %v4256, 16
        %v4479 = vrot.slane %v4477, 5
        %v4480 = vsel %vm531, %v4475, %v4479
        %v4481 = vld [vmem:[%s1718] sm:$0xf]
        %v4482 = vunpack.c.l.b16 %v4270
        %v4483 = vunpack.c.l.b16 %v4284
        %v4484 = vunpack.c.l.b16 %v4298
        %v4485 = vunpack.c.l.b16 %v4312
        %v4486 = vunpack.c.l.b16 %v4326
        %v4487 = vunpack.c.l.b16 %v4340
        %v4488 = vunpack.c.l.b16 %v4354
        %v4489 = vunpack.c.l.b16 %v4368
        %v4490 = vunpack.c.l.b16 %v4382
        %v4491 = vunpack.c.l.b16 %v4396
        %v4492 = vunpack.c.l.b16 %v4410
        %v4493 = vunpack.c.l.b16 %v4424
        %v4494 = vunpack.c.l.b16 %v4438
        %v4495 = vunpack.c.l.b16 %v4452
        %v4496 = vunpack.c.l.b16 %v4466
        %v4497 = vunpack.c.l.b16 %v4480
        %v4498 = vpack.c.b16 %v4483, %v4482
        %v4499 = vpack.c.b16 %v4485, %v4484
        %v4500 = vpack.c.b16 %v4487, %v4486
        %v4501 = vpack.c.b16 %v4489, %v4488
        %v4502 = vpack.c.b16 %v4491, %v4490
        %v4503 = vpack.c.b16 %v4493, %v4492
        %v4504 = vpack.c.b16 %v4495, %v4494
        %v4505 = vpack.c.b16 %v4497, %v4496
        %v4507 = vsel %vm303, %v4498, 0
        %v4510 = vsel %vm303, %v4499, 0
        %v4513 = vsel %vm303, %v4500, 0
        %v4516 = vsel %vm303, %v4501, 0
        %v4519 = vsel %vm303, %v4502, 0
        %v4522 = vsel %vm303, %v4503, 0
        %v4525 = vsel %vm303, %v4504, 0
        %v4528 = vsel %vm303, %v4505, 0
        %v4531 = vsel %vm328, %v4481, 0
        %4533 = vmatpush.bf16.msra.mxu0 0
        %4534 = vmatpush.bf16.msra.mxu0 0
        %4535 = vmatpush.bf16.msra.mxu0 0
        %4536 = vmatpush.bf16.msra.mxu0 0
        %4537 = vmatpush.bf16.msra.mxu0 0
        %4538 = vmatpush.bf16.msra.mxu0 0
        %4539 = vmatpush.bf16.msra.mxu0 0
        %4540 = vmatpush.bf16.msra.mxu0 %v4531
        %4541 = vmatmul.bf16.gmra.mxu0 %v4507
        %v4542 = vpop.f32.mrf.mxu0
        %v4543 = vadd.f32 0.0, %v4542
        %v4544 = vpop.f32.mrf.mxu0
        %v4545 = vadd.f32 0.0, %v4544
        %4546 = vmatmul.bf16.gmra.mxu0 %v4510
        %v4547 = vpop.f32.mrf.mxu0
        %v4548 = vadd.f32 0.0, %v4547
        %v4549 = vpop.f32.mrf.mxu0
        %v4550 = vadd.f32 0.0, %v4549
        %4551 = vmatmul.bf16.gmra.mxu0 %v4513
        %v4552 = vpop.f32.mrf.mxu0
        %v4553 = vadd.f32 0.0, %v4552
        %v4554 = vpop.f32.mrf.mxu0
        %v4555 = vadd.f32 0.0, %v4554
        %4556 = vmatmul.bf16.gmra.mxu0 %v4516
        %v4557 = vpop.f32.mrf.mxu0
        %v4558 = vadd.f32 0.0, %v4557
        %v4559 = vpop.f32.mrf.mxu0
        %v4560 = vadd.f32 0.0, %v4559
        %4561 = vmatmul.bf16.gmra.mxu0 %v4519
        %v4562 = vpop.f32.mrf.mxu0
        %v4563 = vadd.f32 0.0, %v4562
        %v4564 = vpop.f32.mrf.mxu0
        %v4565 = vadd.f32 0.0, %v4564
        %4566 = vmatmul.bf16.gmra.mxu0 %v4522
        %v4567 = vpop.f32.mrf.mxu0
        %v4568 = vadd.f32 0.0, %v4567
        %v4569 = vpop.f32.mrf.mxu0
        %v4570 = vadd.f32 0.0, %v4569
        %4571 = vmatmul.bf16.gmra.mxu0 %v4525
        %v4572 = vpop.f32.mrf.mxu0
        %v4573 = vadd.f32 0.0, %v4572
        %v4574 = vpop.f32.mrf.mxu0
        %v4575 = vadd.f32 0.0, %v4574
        %4576 = vmatmul.bf16.gmra.mxu0 %v4528
        %v4577 = vpop.f32.mrf.mxu0
        %v4578 = vadd.f32 0.0, %v4577
        %v4579 = vpop.f32.mrf.mxu0
        %v4580 = vadd.f32 0.0, %v4579
        %4581 = vdwg.mxu0
        %v4582 = vadd.f32 %v4209, %v4543
        %v4583 = vadd.f32 %v4210, %v4545
        %v4584 = vadd.f32 %v4211, %v4548
        %v4585 = vadd.f32 %v4212, %v4550
        %v4586 = vadd.f32 %v4213, %v4553
        %v4587 = vadd.f32 %v4214, %v4555
        %v4588 = vadd.f32 %v4215, %v4558
        %v4589 = vadd.f32 %v4216, %v4560
        %v4590 = vadd.f32 %v4217, %v4563
        %v4591 = vadd.f32 %v4218, %v4565
        %v4592 = vadd.f32 %v4219, %v4568
        %v4593 = vadd.f32 %v4220, %v4570
        %v4594 = vadd.f32 %v4221, %v4573
        %v4595 = vadd.f32 %v4222, %v4575
        %v4596 = vadd.f32 %v4223, %v4578
        %v4597 = vadd.f32 %v4224, %v4580
        %v4598 = vld [vmem:[%s1701] sm:$0xf]
        %v4599 = vld [vmem:[%s1701 + $0x4] sm:$0x1]
        %v4600 = vld [vmem:[%s1701 + $0x8] sm:$0xf]
        %v4601 = vld [vmem:[%s1701 + $0xc] sm:$0x1]
        %v4602 = vld [vmem:[%s1701 + $0x10] sm:$0xf]
        %v4603 = vld [vmem:[%s1701 + $0x14] sm:$0x1]
        %v4604 = vld [vmem:[%s1701 + $0x18] sm:$0xf]
        %v4605 = vld [vmem:[%s1701 + $0x1c] sm:$0x1]
        %v4606 = vld [vmem:[%s1701 + $0x20] sm:$0xf]
        %v4607 = vld [vmem:[%s1701 + $0x24] sm:$0x1]
        %v4608 = vld [vmem:[%s1701 + $0x28] sm:$0xf]
        %v4609 = vld [vmem:[%s1701 + $0x2c] sm:$0x1]
        %v4610 = vld [vmem:[%s1701 + $0x30] sm:$0xf]
        %v4611 = vld [vmem:[%s1701 + $0x34] sm:$0x1]
        %v4612 = vld [vmem:[%s1701 + $0x38] sm:$0xf]
        %v4613 = vld [vmem:[%s1701 + $0x3c] sm:$0x1]
        %v4614 = vld [vmem:[%s1701 + $0x40] sm:$0xf]
        %v4615 = vld [vmem:[%s1701 + $0x44] sm:$0x1]
        %v4616 = vld [vmem:[%s1701 + $0x48] sm:$0xf]
        %v4617 = vld [vmem:[%s1701 + $0x4c] sm:$0x1]
        %v4618 = vld [vmem:[%s1701 + $0x50] sm:$0xf]
        %v4619 = vld [vmem:[%s1701 + $0x54] sm:$0x1]
        %v4620 = vld [vmem:[%s1701 + $0x58] sm:$0xf]
        %v4621 = vld [vmem:[%s1701 + $0x5c] sm:$0x1]
        %v4622 = vld [vmem:[%s1701 + $0x60] sm:$0xf]
        %v4623 = vld [vmem:[%s1701 + $0x64] sm:$0x1]
        %v4624 = vld [vmem:[%s1701 + $0x68] sm:$0xf]
        %v4625 = vld [vmem:[%s1701 + $0x6c] sm:$0x1]
        %v4626 = vld [vmem:[%s1701 + $0x70] sm:$0xf]
        %v4627 = vld [vmem:[%s1701 + $0x74] sm:$0x1]
        %v4628 = vld [vmem:[%s1701 + $0x78] sm:$0xf]
        %v4629 = vld [vmem:[%s1701 + $0x7c] sm:$0x1]
        %v4631 = vshrl.u32 %v4598, 16
        %v4633 = vrot.slane %v4631, 4
        %v4634 = vshll.u32 %v4598, 16
        %v4636 = vrot.slane %v4634, 5
        %v4637 = vor.u32 %v4633, %v4636
        %v4638 = vrot.slane %v4637, 4
        %v4640 = vshll.u32 %v4599, 16
        %v4642 = vrot.slane %v4640, 5
        %v4643 = vsel %vm531, %v4638, %v4642
        %v4645 = vshrl.u32 %v4600, 16
        %v4647 = vrot.slane %v4645, 4
        %v4648 = vshll.u32 %v4600, 16
        %v4650 = vrot.slane %v4648, 5
        %v4651 = vor.u32 %v4647, %v4650
        %v4652 = vrot.slane %v4651, 4
        %v4654 = vshll.u32 %v4601, 16
        %v4656 = vrot.slane %v4654, 5
        %v4657 = vsel %vm531, %v4652, %v4656
        %v4659 = vshrl.u32 %v4602, 16
        %v4661 = vrot.slane %v4659, 4
        %v4662 = vshll.u32 %v4602, 16
        %v4664 = vrot.slane %v4662, 5
        %v4665 = vor.u32 %v4661, %v4664
        %v4666 = vrot.slane %v4665, 4
        %v4668 = vshll.u32 %v4603, 16
        %v4670 = vrot.slane %v4668, 5
        %v4671 = vsel %vm531, %v4666, %v4670
        %v4673 = vshrl.u32 %v4604, 16
        %v4675 = vrot.slane %v4673, 4
        %v4676 = vshll.u32 %v4604, 16
        %v4678 = vrot.slane %v4676, 5
        %v4679 = vor.u32 %v4675, %v4678
        %v4680 = vrot.slane %v4679, 4
        %v4682 = vshll.u32 %v4605, 16
        %v4684 = vrot.slane %v4682, 5
        %v4685 = vsel %vm531, %v4680, %v4684
        %v4687 = vshrl.u32 %v4606, 16
        %v4689 = vrot.slane %v4687, 4
        %v4690 = vshll.u32 %v4606, 16
        %v4692 = vrot.slane %v4690, 5
        %v4693 = vor.u32 %v4689, %v4692
        %v4694 = vrot.slane %v4693, 4
        %v4696 = vshll.u32 %v4607, 16
        %v4698 = vrot.slane %v4696, 5
        %v4699 = vsel %vm531, %v4694, %v4698
        %v4701 = vshrl.u32 %v4608, 16
        %v4703 = vrot.slane %v4701, 4
        %v4704 = vshll.u32 %v4608, 16
        %v4706 = vrot.slane %v4704, 5
        %v4707 = vor.u32 %v4703, %v4706
        %v4708 = vrot.slane %v4707, 4
        %v4710 = vshll.u32 %v4609, 16
        %v4712 = vrot.slane %v4710, 5
        %v4713 = vsel %vm531, %v4708, %v4712
        %v4715 = vshrl.u32 %v4610, 16
        %v4717 = vrot.slane %v4715, 4
        %v4718 = vshll.u32 %v4610, 16
        %v4720 = vrot.slane %v4718, 5
        %v4721 = vor.u32 %v4717, %v4720
        %v4722 = vrot.slane %v4721, 4
        %v4724 = vshll.u32 %v4611, 16
        %v4726 = vrot.slane %v4724, 5
        %v4727 = vsel %vm531, %v4722, %v4726
        %v4729 = vshrl.u32 %v4612, 16
        %v4731 = vrot.slane %v4729, 4
        %v4732 = vshll.u32 %v4612, 16
        %v4734 = vrot.slane %v4732, 5
        %v4735 = vor.u32 %v4731, %v4734
        %v4736 = vrot.slane %v4735, 4
        %v4738 = vshll.u32 %v4613, 16
        %v4740 = vrot.slane %v4738, 5
        %v4741 = vsel %vm531, %v4736, %v4740
        %v4743 = vshrl.u32 %v4614, 16
        %v4745 = vrot.slane %v4743, 4
        %v4746 = vshll.u32 %v4614, 16
        %v4748 = vrot.slane %v4746, 5
        %v4749 = vor.u32 %v4745, %v4748
        %v4750 = vrot.slane %v4749, 4
        %v4752 = vshll.u32 %v4615, 16
        %v4754 = vrot.slane %v4752, 5
        %v4755 = vsel %vm531, %v4750, %v4754
        %v4757 = vshrl.u32 %v4616, 16
        %v4759 = vrot.slane %v4757, 4
        %v4760 = vshll.u32 %v4616, 16
        %v4762 = vrot.slane %v4760, 5
        %v4763 = vor.u32 %v4759, %v4762
        %v4764 = vrot.slane %v4763, 4
        %v4766 = vshll.u32 %v4617, 16
        %v4768 = vrot.slane %v4766, 5
        %v4769 = vsel %vm531, %v4764, %v4768
        %v4771 = vshrl.u32 %v4618, 16
        %v4773 = vrot.slane %v4771, 4
        %v4774 = vshll.u32 %v4618, 16
        %v4776 = vrot.slane %v4774, 5
        %v4777 = vor.u32 %v4773, %v4776
        %v4778 = vrot.slane %v4777, 4
        %v4780 = vshll.u32 %v4619, 16
        %v4782 = vrot.slane %v4780, 5
        %v4783 = vsel %vm531, %v4778, %v4782
        %v4785 = vshrl.u32 %v4620, 16
        %v4787 = vrot.slane %v4785, 4
        %v4788 = vshll.u32 %v4620, 16
        %v4790 = vrot.slane %v4788, 5
        %v4791 = vor.u32 %v4787, %v4790
        %v4792 = vrot.slane %v4791, 4
        %v4794 = vshll.u32 %v4621, 16
        %v4796 = vrot.slane %v4794, 5
        %v4797 = vsel %vm531, %v4792, %v4796
        %v4799 = vshrl.u32 %v4622, 16
        %v4801 = vrot.slane %v4799, 4
        %v4802 = vshll.u32 %v4622, 16
        %v4804 = vrot.slane %v4802, 5
        %v4805 = vor.u32 %v4801, %v4804
        %v4806 = vrot.slane %v4805, 4
        %v4808 = vshll.u32 %v4623, 16
        %v4810 = vrot.slane %v4808, 5
        %v4811 = vsel %vm531, %v4806, %v4810
        %v4813 = vshrl.u32 %v4624, 16
        %v4815 = vrot.slane %v4813, 4
        %v4816 = vshll.u32 %v4624, 16
        %v4818 = vrot.slane %v4816, 5
        %v4819 = vor.u32 %v4815, %v4818
        %v4820 = vrot.slane %v4819, 4
        %v4822 = vshll.u32 %v4625, 16
        %v4824 = vrot.slane %v4822, 5
        %v4825 = vsel %vm531, %v4820, %v4824
        %v4827 = vshrl.u32 %v4626, 16
        %v4829 = vrot.slane %v4827, 4
        %v4830 = vshll.u32 %v4626, 16
        %v4832 = vrot.slane %v4830, 5
        %v4833 = vor.u32 %v4829, %v4832
        %v4834 = vrot.slane %v4833, 4
        %v4836 = vshll.u32 %v4627, 16
        %v4838 = vrot.slane %v4836, 5
        %v4839 = vsel %vm531, %v4834, %v4838
        %v4841 = vshrl.u32 %v4628, 16
        %v4843 = vrot.slane %v4841, 4
        %v4844 = vshll.u32 %v4628, 16
        %v4846 = vrot.slane %v4844, 5
        %v4847 = vor.u32 %v4843, %v4846
        %v4848 = vrot.slane %v4847, 4
        %v4850 = vshll.u32 %v4629, 16
        %v4852 = vrot.slane %v4850, 5
        %v4853 = vsel %vm531, %v4848, %v4852
        %v4854 = vld [vmem:[%s2108] sm:$0xf]
        %v4855 = vunpack.c.l.b16 %v4643
        %v4856 = vunpack.c.l.b16 %v4657
        %v4857 = vunpack.c.l.b16 %v4671
        %v4858 = vunpack.c.l.b16 %v4685
        %v4859 = vunpack.c.l.b16 %v4699
        %v4860 = vunpack.c.l.b16 %v4713
        %v4861 = vunpack.c.l.b16 %v4727
        %v4862 = vunpack.c.l.b16 %v4741
        %v4863 = vunpack.c.l.b16 %v4755
        %v4864 = vunpack.c.l.b16 %v4769
        %v4865 = vunpack.c.l.b16 %v4783
        %v4866 = vunpack.c.l.b16 %v4797
        %v4867 = vunpack.c.l.b16 %v4811
        %v4868 = vunpack.c.l.b16 %v4825
        %v4869 = vunpack.c.l.b16 %v4839
        %v4870 = vunpack.c.l.b16 %v4853
        %v4871 = vpack.c.b16 %v4856, %v4855
        %v4872 = vpack.c.b16 %v4858, %v4857
        %v4873 = vpack.c.b16 %v4860, %v4859
        %v4874 = vpack.c.b16 %v4862, %v4861
        %v4875 = vpack.c.b16 %v4864, %v4863
        %v4876 = vpack.c.b16 %v4866, %v4865
        %v4877 = vpack.c.b16 %v4868, %v4867
        %v4878 = vpack.c.b16 %v4870, %v4869
        %v4880 = vsel %vm303, %v4871, 0
        %v4883 = vsel %vm303, %v4872, 0
        %v4886 = vsel %vm303, %v4873, 0
        %v4889 = vsel %vm303, %v4874, 0
        %v4892 = vsel %vm303, %v4875, 0
        %v4895 = vsel %vm303, %v4876, 0
        %v4898 = vsel %vm303, %v4877, 0
        %v4901 = vsel %vm303, %v4878, 0
        %v4904 = vsel %vm328, %v4854, 0
        %4906 = vmatpush.bf16.msra.mxu0 0
        %4907 = vmatpush.bf16.msra.mxu0 0
        %4908 = vmatpush.bf16.msra.mxu0 0
        %4909 = vmatpush.bf16.msra.mxu0 0
        %4910 = vmatpush.bf16.msra.mxu0 0
        %4911 = vmatpush.bf16.msra.mxu0 0
        %4912 = vmatpush.bf16.msra.mxu0 0
        %4913 = vmatpush.bf16.msra.mxu0 %v4904
        %4914 = vmatmul.bf16.gmra.mxu0 %v4880
        %v4915 = vpop.f32.mrf.mxu0
        %v4916 = vadd.f32 0.0, %v4915
        %v4917 = vpop.f32.mrf.mxu0
        %v4918 = vadd.f32 0.0, %v4917
        %4919 = vmatmul.bf16.gmra.mxu0 %v4883
        %v4920 = vpop.f32.mrf.mxu0
        %v4921 = vadd.f32 0.0, %v4920
        %v4922 = vpop.f32.mrf.mxu0
        %v4923 = vadd.f32 0.0, %v4922
        %4924 = vmatmul.bf16.gmra.mxu0 %v4886
        %v4925 = vpop.f32.mrf.mxu0
        %v4926 = vadd.f32 0.0, %v4925
        %v4927 = vpop.f32.mrf.mxu0
        %v4928 = vadd.f32 0.0, %v4927
        %4929 = vmatmul.bf16.gmra.mxu0 %v4889
        %v4930 = vpop.f32.mrf.mxu0
        %v4931 = vadd.f32 0.0, %v4930
        %v4932 = vpop.f32.mrf.mxu0
        %v4933 = vadd.f32 0.0, %v4932
        %4934 = vmatmul.bf16.gmra.mxu0 %v4892
        %v4935 = vpop.f32.mrf.mxu0
        %v4936 = vadd.f32 0.0, %v4935
        %v4937 = vpop.f32.mrf.mxu0
        %v4938 = vadd.f32 0.0, %v4937
        %4939 = vmatmul.bf16.gmra.mxu0 %v4895
        %v4940 = vpop.f32.mrf.mxu0
        %v4941 = vadd.f32 0.0, %v4940
        %v4942 = vpop.f32.mrf.mxu0
        %v4943 = vadd.f32 0.0, %v4942
        %4944 = vmatmul.bf16.gmra.mxu0 %v4898
        %v4945 = vpop.f32.mrf.mxu0
        %v4946 = vadd.f32 0.0, %v4945
        %v4947 = vpop.f32.mrf.mxu0
        %v4948 = vadd.f32 0.0, %v4947
        %4949 = vmatmul.bf16.gmra.mxu0 %v4901
        %v4950 = vpop.f32.mrf.mxu0
        %v4951 = vadd.f32 0.0, %v4950
        %v4952 = vpop.f32.mrf.mxu0
        %v4953 = vadd.f32 0.0, %v4952
        %4954 = vdwg.mxu0
        %v4955 = vadd.f32 %v4582, %v4916
        %v4956 = vadd.f32 %v4583, %v4918
        %v4957 = vadd.f32 %v4584, %v4921
        %v4958 = vadd.f32 %v4585, %v4923
        %v4959 = vadd.f32 %v4586, %v4926
        %v4960 = vadd.f32 %v4587, %v4928
        %v4961 = vadd.f32 %v4588, %v4931
        %v4962 = vadd.f32 %v4589, %v4933
        %v4963 = vadd.f32 %v4590, %v4936
        %v4964 = vadd.f32 %v4591, %v4938
        %v4965 = vadd.f32 %v4592, %v4941
        %v4966 = vadd.f32 %v4593, %v4943
        %v4967 = vadd.f32 %v4594, %v4946
        %v4968 = vadd.f32 %v4595, %v4948
        %v4969 = vadd.f32 %v4596, %v4951
        %v4970 = vadd.f32 %v4597, %v4953
        %v4971 = vpack.c.bf16 %v4955, %v4955
        %v4972 = vpack.c.bf16 %v4956, %v4956
        %v4973 = vpack.c.bf16 %v4957, %v4957
        %v4974 = vpack.c.bf16 %v4958, %v4958
        %v4975 = vpack.c.bf16 %v4959, %v4959
        %v4976 = vpack.c.bf16 %v4960, %v4960
        %v4977 = vpack.c.bf16 %v4961, %v4961
        %v4978 = vpack.c.bf16 %v4962, %v4962
        %v4979 = vpack.c.bf16 %v4963, %v4963
        %v4980 = vpack.c.bf16 %v4964, %v4964
        %v4981 = vpack.c.bf16 %v4965, %v4965
        %v4982 = vpack.c.bf16 %v4966, %v4966
        %v4983 = vpack.c.bf16 %v4967, %v4967
        %v4984 = vpack.c.bf16 %v4968, %v4968
        %v4985 = vpack.c.bf16 %v4969, %v4969
        %v4986 = vpack.c.bf16 %v4970, %v4970
        %4987 = vst [vmem:[%s209 + $0x4] sm:$0xf] %v4971
        %4988 = vst [vmem:[%s209 + $0xc] sm:$0xf] %v4972
        %4989 = vst [vmem:[%s209 + $0x14] sm:$0xf] %v4973
        %4990 = vst [vmem:[%s209 + $0x1c] sm:$0xf] %v4974
        %4991 = vst [vmem:[%s209 + $0x24] sm:$0xf] %v4975
        %4992 = vst [vmem:[%s209 + $0x2c] sm:$0xf] %v4976
        %4993 = vst [vmem:[%s209 + $0x34] sm:$0xf] %v4977
        %4994 = vst [vmem:[%s209 + $0x3c] sm:$0xf] %v4978
        %4995 = vst [vmem:[%s209 + $0x44] sm:$0xf] %v4979
        %4996 = vst [vmem:[%s209 + $0x4c] sm:$0xf] %v4980
        %4997 = vst [vmem:[%s209 + $0x54] sm:$0xf] %v4981
        %4998 = vst [vmem:[%s209 + $0x5c] sm:$0xf] %v4982
        %4999 = vst [vmem:[%s209 + $0x64] sm:$0xf] %v4983
        %5000 = vst [vmem:[%s209 + $0x6c] sm:$0xf] %v4984
        %5001 = vst [vmem:[%s209 + $0x74] sm:$0xf] %v4985
        %5002 = vst [vmem:[%s209 + $0x7c] sm:$0xf] %v4986
        %v5003 = vadd.f32 %v4955, %v4956
        %v5004 = vadd.f32 %v5003, %v4957
        %v5005 = vadd.f32 %v5004, %v4958
        %v5006 = vadd.f32 %v5005, %v4959
        %v5007 = vadd.f32 %v5006, %v4960
        %v5008 = vadd.f32 %v5007, %v4961
        %v5009 = vadd.f32 %v5008, %v4962
        %v5010 = vadd.f32 %v5009, %v4963
        %v5011 = vadd.f32 %v5010, %v4964
        %v5012 = vadd.f32 %v5011, %v4965
        %v5013 = vadd.f32 %v5012, %v4966
        %v5014 = vadd.f32 %v5013, %v4967
        %v5015 = vadd.f32 %v5014, %v4968
        %v5016 = vadd.f32 %v5015, %v4969
        %v5017 = vadd.f32 %v5016, %v4970
        %v5018 = vrot.slane %v5017, 4
        %v5019 = vadd.f32 %v5017, %v5018
        %v5020 = vrot.slane %v5019, 2
        %v5021 = vadd.f32 %v5019, %v5020
        %v5022 = vrot.slane %v5021, 1
        %v5023 = vadd.f32 %v5021, %v5022
        %v5024 = vadd.f32 %v2279, %v5023
        %v5025 = vmul.f32 %v4955, %v4955
        %v5026 = vmul.f32 %v4956, %v4956
        %v5027 = vmul.f32 %v4957, %v4957
        %v5028 = vmul.f32 %v4958, %v4958
        %v5029 = vmul.f32 %v4959, %v4959
        %v5030 = vmul.f32 %v4960, %v4960
        %v5031 = vmul.f32 %v4961, %v4961
        %v5032 = vmul.f32 %v4962, %v4962
        %v5033 = vmul.f32 %v4963, %v4963
        %v5034 = vmul.f32 %v4964, %v4964
        %v5035 = vmul.f32 %v4965, %v4965
        %v5036 = vmul.f32 %v4966, %v4966
        %v5037 = vmul.f32 %v4967, %v4967
        %v5038 = vmul.f32 %v4968, %v4968
        %v5039 = vmul.f32 %v4969, %v4969
        %v5040 = vmul.f32 %v4970, %v4970
        %v5041 = vadd.f32 %v5025, %v5026
        %v5042 = vadd.f32 %v5041, %v5027
        %v5043 = vadd.f32 %v5042, %v5028
        %v5044 = vadd.f32 %v5043, %v5029
        %v5045 = vadd.f32 %v5044, %v5030
        %v5046 = vadd.f32 %v5045, %v5031
        %v5047 = vadd.f32 %v5046, %v5032
        %v5048 = vadd.f32 %v5047, %v5033
        %v5049 = vadd.f32 %v5048, %v5034
        %v5050 = vadd.f32 %v5049, %v5035
        %v5051 = vadd.f32 %v5050, %v5036
        %v5052 = vadd.f32 %v5051, %v5037
        %v5053 = vadd.f32 %v5052, %v5038
        %v5054 = vadd.f32 %v5053, %v5039
        %v5055 = vadd.f32 %v5054, %v5040
        %v5056 = vrot.slane %v5055, 4
        %v5057 = vadd.f32 %v5055, %v5056
        %v5058 = vrot.slane %v5057, 2
        %v5059 = vadd.f32 %v5057, %v5058
        %v5060 = vrot.slane %v5059, 1
        %v5061 = vadd.f32 %v5059, %v5060
        %v5062 = vadd.f32 %v2317, %v5061
        %5063 = vst [vmem:[%s216] sm:$0x1] %v5024
        %5064 = vst [vmem:[%s216 + $0x1] sm:$0x1] %v5062
        %s5065 = sand.u32 %s103, 1
        %s5066 = scalar_lea.sflag [#allocation3], %s5065
        %s5067 = sand.u32 %s103, 1
        %s5068 = smul.addr %s5067, 128
        %s5069 = scalar_lea.vmem [#allocation2], %s5068
        %s5070 = sand.u32 %s129, 1
        %s5071 = scalar_lea.sflag [#allocation5], %s5070
        %s5072 = sand.u32 %s129, 1
        %s5073 = smul.addr %s5072, 2
        %s5074 = scalar_lea.vmem [#allocation4], %s5073
        // Predicated region
        $region33: #{tpu_custom_call.1} parent=31 // pred_check
          %p5075 = pneg %p113
        $region34: #{tpu_custom_call.1} parent=31 // pred_check_branch
          %5077 = sbr.rel (%p5075) target = $region36
        $region35: #{tpu_custom_call.1} parent=31 // pred_region
          %5079 = vsyncadd %s5066, 0
          %s5080 = smul.addr %s22, 32
          %s5081 = smul.addr %s5080, 4
          %s5082 = scalar_lea.hbm %s3, %s5081
          %s5083 = sshll.u32 %s5069, 4
          %s5084 = int_to_ptr.vmem [resolvable:$true] %s5083
          %s5085 = sshll.u32 %s5082, 4
          %s5086 = int_to_ptr.hbm [resolvable:$true] %s5085
          %5091 = dma.vmem_to_hbm [thread:$0]  %s5084, 2048, %s5086, %s5066, 128, 128, 8
        $region36: #{tpu_custom_call.1} parent=31 // pred_fallthru
          _
        // Predicated region
        $region37: #{tpu_custom_call.1} parent=31 // pred_check
          %p5092 = pneg %p139
        $region38: #{tpu_custom_call.1} parent=31 // pred_check_branch
          %5094 = sbr.rel (%p5092) target = $region40
        $region39: #{tpu_custom_call.1} parent=31 // pred_region
          %5096 = vsyncadd %s5071, 0
          %s5097 = smul.addr %s22, 2
          %s5098 = scalar_lea.hbm %s4, %s5097
          %s5100 = sshll.u32 %s5074, 4
          %s5101 = int_to_ptr.vmem [resolvable:$true] %s5100
          %s5102 = sshll.u32 %s5098, 4
          %s5103 = int_to_ptr.hbm [resolvable:$true] %s5102
          %5105 = dma.vmem_to_hbm [thread:$0]  %s5101, 32, %s5103, %s5071
        $region40: #{tpu_custom_call.1} parent=31 // pred_fallthru
          _
      $region32: #{tpu_custom_call.1} parent=5 // pred_fallthru
        _
      %p5106 = scmp.le.s32.totalorder 2, %s17
      // Predicated region
      $region41: #{tpu_custom_call.1} parent=5 // pred_check
        %p5107 = pneg %p5106
      $region42: #{tpu_custom_call.1} parent=5 // pred_check_branch
        %5109 = sbr.rel (%p5107) target = $region44
      $region43: #{tpu_custom_call.1} parent=5 // pred_region
        %s5110 = ssub.s32 %s17, 2
        // Predicated region
        $region45: #{tpu_custom_call.1} parent=43 // pred_check
          %p5111 = pneg %p119
        $region46: #{tpu_custom_call.1} parent=43 // pred_check_branch
          %5113 = sbr.rel (%p5111) target = $region48
        $region47: #{tpu_custom_call.1} parent=43 // pred_region
          %s5114 = sand.u32 %s104, 1
          %s5115 = scalar_lea.sflag [#allocation3], %s5114
          %s5116 = sand.u32 %s104, 1
          %s5117 = smul.addr %s5116, 128
          %s5118 = scalar_lea.vmem [#allocation2], %s5117
          %5120 = dma.done %s5115, 2048
        $region48: #{tpu_custom_call.1} parent=43 // pred_fallthru
          _
        // Predicated region
        $region49: #{tpu_custom_call.1} parent=43 // pred_check
          %p5121 = pneg %p145
        $region50: #{tpu_custom_call.1} parent=43 // pred_check_branch
          %5123 = sbr.rel (%p5121) target = $region52
        $region51: #{tpu_custom_call.1} parent=43 // pred_region
          %s5124 = sand.u32 %s130, 1
          %s5125 = scalar_lea.sflag [#allocation5], %s5124
          %s5126 = sand.u32 %s130, 1
          %s5127 = smul.addr %s5126, 2
          %s5128 = scalar_lea.vmem [#allocation4], %s5127
          %5130 = dma.done %s5125, 32
        $region52: #{tpu_custom_call.1} parent=43 // pred_fallthru
          _
      $region44: #{tpu_custom_call.1} parent=5 // pred_fallthru
        _
    $region6: #{tpu_custom_call.1} parent=1 // loop_footer
      %s21 = sadd.s32 1, %s17
    $region7: #{tpu_custom_call.1} parent=1 // loop_footer_branch
      %16 = sbr.rel target = $region3
    $region8: #{tpu_custom_call.1} parent=1 // loop_exit
      _
    %5131 = vsyncpa [#allocation3], 1
    %s5132 = scalar_lea.sflag [#allocation3], 1
    %5133 = vsyncpa %s5132, 1
    %5134 = vsyncpa [#allocation5], 1
    %s5135 = scalar_lea.sflag [#allocation5], 1
    %5136 = vsyncpa %s5135, 1

</llo_original>
